<compile_context>
chip_gen: v6e
topology: v6e:2x2x1
jax: 0.10.0
libtpu: 0.0.40
codegen_flags: <defaults>
</compile_context>

<pallas_src>
import numpy as np
import jax
import jax.numpy as jnp
from jax.experimental import pallas as pl
from jax.experimental.pallas import tpu as pltpu


# ----------------------------------------------------------------------------
# Fused kernel: fc(+view) + 3x (ConvTranspose2d + ReLU), TB batch elems / step
# Rows of every tensor: (batch, 4h+w) with h,w in [0,4).  Lanes: nested output
# parities x channels.
# ----------------------------------------------------------------------------
def _deconvnet_kernel(lhs_ref, wfc_ref, bfc_ref, w1_ref, b1_ref,
                      w2_ref, b2_ref, w3_ref, b3_ref,
                      mw_ref, mh_ref, mhw_ref, o_ref):
    f32 = jnp.float32
    mw = mw_ref[...]        # (M,1) zero where w==3   (shift (0,+1) invalid)
    mh = mh_ref[...]        # (M,1) zero where h==3   (shift (+1,0) invalid)
    mhw = mhw_ref[...]      # (M,1) zero where h==3 or w==3

    def xcat(a):
        # [a | a<<(0,1) | a<<(1,0) | a<<(1,1)] along lanes.  Shifts are plain
        # row shifts of the whole block; masks are batch-periodic so rows never
        # leak across batch elements (leaked rows are exactly the masked ones).
        lanes = a.shape[1]
        z1 = jnp.zeros((1, lanes), a.dtype)
        z4 = jnp.zeros((4, lanes), a.dtype)
        z5 = jnp.zeros((5, lanes), a.dtype)
        s01 = jnp.concatenate([a[1:, :], z1], axis=0) * mw
        s10 = jnp.concatenate([a[4:, :], z4], axis=0) * mh
        s11 = jnp.concatenate([a[5:, :], z5], axis=0) * mhw
        return jnp.concatenate([a, s01, s10, s11], axis=1)

    # fc + view(16,4,4) + ReLU folded into one matmul on the block-diagonal lhs
    a1 = jnp.dot(lhs_ref[...], wfc_ref[...], preferred_element_type=f32)
    a1 = jnp.maximum(a1 + bfc_ref[...], 0.0)                      # (M, 16)

    # deconv1 + ReLU : 8x8 grid kept as 4 parity planes along lanes
    y1 = jnp.dot(xcat(a1), w1_ref[...], preferred_element_type=f32)
    y1 = jnp.maximum(y1 + b1_ref[...], 0.0)                       # (M, 128)

    # deconv2 + ReLU : 16x16 grid kept as 16 parity planes along lanes
    y2 = jnp.dot(xcat(y1), w2_ref[...], preferred_element_type=f32)
    y2 = jnp.maximum(y2 + b2_ref[...], 0.0)                       # (M, 1024)

    # deconv3 + ReLU : 32x32 grid kept as 64 parity planes along lanes (Cout=1)
    y3 = jnp.dot(xcat(y2), w3_ref[...], preferred_element_type=f32)
    o_ref[...] = jnp.maximum(y3 + b3_ref[...], 0.0)               # (M, 64)


# ----------------------------------------------------------------------------
# Parameters (PyTorch layouts) + one-time kernel-ready preprocessing
# ----------------------------------------------------------------------------
def init_params(key):
    ks = jax.random.split(key, 8)
    def u(k, shape, fan_in):
        bound = 1.0 / jnp.sqrt(fan_in)
        return jax.random.uniform(k, shape, jnp.float32, -bound, bound)
    return {
        "fc_w": u(ks[0], (256, 7), 7),                 # nn.Linear(7, 256)
        "fc_b": u(ks[1], (256,), 7),
        "d1_w": u(ks[2], (16, 32, 3, 3), 16 * 9),      # ConvTranspose2d (Cin,Cout,3,3)
        "d1_b": u(ks[3], (32,), 16 * 9),
        "d2_w": u(ks[4], (32, 64, 3, 3), 32 * 9),
        "d2_b": u(ks[5], (64,), 32 * 9),
        "d3_w": u(ks[6], (64, 1, 3, 3), 64 * 9),
        "d3_b": u(ks[7], (1,), 64 * 9),
    }


def _block_w1(w, bias):
    """(Cin,Cout,3,3) -> (4*Cin, 4*Cout): rows (d, cin), cols (s1, cout)."""
    cin, cout, kk, _ = w.shape
    W = np.zeros((4 * cin, 4 * cout), np.float32)
    for dh in range(2):
        for dw in range(2):
            r0 = (2 * dh + dw) * cin
            for sh in range(2):
                for sw in range(2):
                    kh, kw = sh + 1 - 2 * dh, sw + 1 - 2 * dw
                    if 0 <= kh < kk and 0 <= kw < kk:
                        c0 = (2 * sh + sw) * cout
                        W[r0:r0 + cin, c0:c0 + cout] = w[:, :, kh, kw]
    return W, np.tile(bias, 4).reshape(1, 4 * cout).astype(np.float32)


def _block_w2(w, bias):
    """(Cin,Cout,3,3) -> (16*Cin, 16*Cout): rows (e, s1', cin), cols (s1, s2, cout).
    Folds the parity->row recomposition of layer 1 into the layer-2 weight."""
    cin, cout, kk, _ = w.shape
    W = np.zeros((16 * cin, 16 * cout), np.float32)
    for s1h in range(2):
        for s1w in range(2):
            for s2h in range(2):
                for s2w in range(2):
                    c0 = ((2 * s1h + s1w) * 4 + (2 * s2h + s2w)) * cout
                    for dh in range(2):
                        for dw in range(2):
                            kh, kw = s2h + 1 - 2 * dh, s2w + 1 - 2 * dw
                            if not (0 <= kh < kk and 0 <= kw < kk):
                                continue
                            nh, nw = s1h + dh, s1w + dw
                            eh, p1h = nh // 2, nh % 2
                            ew, p1w = nw // 2, nw % 2
                            r0 = ((2 * eh + ew) * 4 + (2 * p1h + p1w)) * cin
                            W[r0:r0 + cin, c0:c0 + cout] = w[:, :, kh, kw]
    return W, np.tile(bias, 16).reshape(1, 16 * cout).astype(np.float32)


def _block_w3(w, bias):
    """(Cin,Cout,3,3) -> (64*Cin, 64*Cout): rows (e, s1', s2', cin), cols (s1,s2,s3,cout)."""
    cin, cout, kk, _ = w.shape
    W = np.zeros((64 * cin, 64 * cout), np.float32)
    for s1h in range(2):
      for s1w in range(2):
        for s2h in range(2):
          for s2w in range(2):
            for s3h in range(2):
              for s3w in range(2):
                c0 = ((2 * s1h + s1w) * 16 + (2 * s2h + s2w) * 4
                      + (2 * s3h + s3w)) * cout
                for dh in range(2):
                    for dw in range(2):
                        kh, kw = s3h + 1 - 2 * dh, s3w + 1 - 2 * dw
                        if not (0 <= kh < kk and 0 <= kw < kk):
                            continue
                        nh = 2 * s1h + s2h + dh
                        nw = 2 * s1w + s2w + dw
                        eh, qh = nh // 4, nh % 4
                        ew, qw = nw // 4, nw % 4
                        p1h, p2h = qh // 2, qh % 2
                        p1w, p2w = qw // 2, qw % 2
                        r0 = ((2 * eh + ew) * 16 + (2 * p1h + p1w) * 4
                              + (2 * p2h + p2w)) * cin
                        W[r0:r0 + cin, c0:c0 + cout] = w[:, :, kh, kw]
    return W, np.tile(bias, 64).reshape(1, 64 * cout).astype(np.float32)


def prepare_params(params):
    """One-time weight preprocessing (hoisted off the forward path)."""
    wfc = np.asarray(params["fc_w"])                    # (256, 7), j = 16c + r
    bfc = np.asarray(params["fc_b"])                    # (256,)
    # a1[(b,r),c] = sum_k x[b,k] * wfc[16c+r, k]  ->  Wstack[7r+k, c]
    wstack = wfc.reshape(16, 16, 7).transpose(1, 2, 0).reshape(112, 16)
    bgrid16 = bfc.reshape(16, 16).T                     # [r, c] = bfc[16c + r]
    w1, b1 = _block_w1(np.asarray(params["d1_w"]), np.asarray(params["d1_b"]))
    w2, b2 = _block_w2(np.asarray(params["d2_w"]), np.asarray(params["d2_b"]))
    w3, b3 = _block_w3(np.asarray(params["d3_w"]), np.asarray(params["d3_b"]))
    return {
        "fc_w": jnp.asarray(wstack, jnp.float32),       # (112, 16)
        "fc_bgrid": jnp.asarray(bgrid16, jnp.float32),  # (16, 16)
        "d1_w": jnp.asarray(w1), "d1_b": jnp.asarray(b1),   # (64,128), (1,128)
        "d2_w": jnp.asarray(w2), "d2_b": jnp.asarray(b2),   # (512,1024), (1,1024)
        "d3_w": jnp.asarray(w3), "d3_b": jnp.asarray(b3),   # (4096,64), (1,64)
    }


# ----------------------------------------------------------------------------
# Forward
# ----------------------------------------------------------------------------
@jax.jit
def deconvnet_forward(prep, x):
    """x: (B, 7) f32 -> (B, 1, 32, 32) f32 (matches PyTorch DeconvNet.forward)."""
    B = x.shape[0]
    TB = max(1, min(8, B))          # batch elems per grid step (tunable; <=8 fits v7x VMEM)
    Bpad = ((B + TB - 1) // TB) * TB
    M = TB * 16

    # Block-diagonal LHS for the folded fc+view matmul (tiny: B*16 x 112).
    eye16 = jnp.eye(16, dtype=jnp.float32)
    lhs = (x[:, None, None, :] * eye16[None, :, :, None]).reshape(B * 16, 112)
    if Bpad != B:
        lhs = jnp.pad(lhs, ((0, (Bpad - B) * 16), (0, 0)))

    # Per-step constants (period-16 in rows, tiled to the TB block).
    bfc_grid = jnp.tile(prep["fc_bgrid"], (TB, 1))                 # (M, 16)
    r = jnp.arange(M, dtype=jnp.int32) % 16
    h, w = r // 4, r % 4
    mask_w = (w < 3).astype(jnp.float32).reshape(M, 1)
    mask_h = (h < 3).astype(jnp.float32).reshape(M, 1)
    mask_hw = ((h < 3) & (w < 3)).astype(jnp.float32).reshape(M, 1)

    out_flat = pl.pallas_call(
        _deconvnet_kernel,
        out_shape=jax.ShapeDtypeStruct((Bpad * 16, 64), jnp.float32),
        grid_spec=pltpu.PrefetchScalarGridSpec(
            num_scalar_prefetch=0,
            grid=(Bpad // TB,),
            in_specs=[
                pl.BlockSpec((M, 112), lambda i: (i, 0)),     # block-diag fc LHS
                pl.BlockSpec((112, 16), lambda i: (0, 0)),    # folded fc weight
                pl.BlockSpec((M, 16), lambda i: (0, 0)),      # fc bias grid
                pl.BlockSpec((64, 128), lambda i: (0, 0)),    # deconv1 block weight
                pl.BlockSpec((1, 128), lambda i: (0, 0)),
                pl.BlockSpec((512, 1024), lambda i: (0, 0)),  # deconv2 block weight
                pl.BlockSpec((1, 1024), lambda i: (0, 0)),
                pl.BlockSpec((4096, 64), lambda i: (0, 0)),   # deconv3 block weight
                pl.BlockSpec((1, 64), lambda i: (0, 0)),
                pl.BlockSpec((M, 1), lambda i: (0, 0)),       # shift masks
                pl.BlockSpec((M, 1), lambda i: (0, 0)),
                pl.BlockSpec((M, 1), lambda i: (0, 0)),
            ],
            out_specs=pl.BlockSpec((M, 64), lambda i: (i, 0)),
        ),
        compiler_params=pltpu.CompilerParams(
            dimension_semantics=("parallel",),
            vmem_limit_bytes=32 * 1024 * 1024),
    )(lhs, prep["fc_w"], bfc_grid, prep["d1_w"], prep["d1_b"],
      prep["d2_w"], prep["d2_b"], prep["d3_w"], prep["d3_b"],
      mask_w, mask_h, mask_hw)

    # Un-nest the parity-in-lanes layout ONCE on the tiny final output:
    # rows = (b, h, w); lanes = (s1h, s1w, s2h, s2w, s3h, s3w);
    # oh = 8h + 4*s1h + 2*s2h + s3h, ow analogous.
    y = out_flat[: B * 16].reshape(B, 4, 4, 2, 2, 2, 2, 2, 2)
    y = y.transpose(0, 1, 3, 5, 7, 2, 4, 6, 8)
    return y.reshape(B, 1, 32, 32)


# ----------------------------------------------------------------------------
# Pure-JAX reference (PyTorch semantics) for validation
# ----------------------------------------------------------------------------
def reference_forward(params, x):
    hp = jax.lax.Precision.HIGHEST
    h = jnp.dot(x, params["fc_w"].T, precision=hp) + params["fc_b"]
    h = jnp.maximum(h, 0.0)
    h = h.reshape(x.shape[0], 16, 4, 4)
    for wk, bk in (("d1_w", "d1_b"), ("d2_w", "d2_b"), ("d3_w", "d3_b")):
        w, b = params[wk], params[bk]
        wc = jnp.flip(w, (2, 3)).transpose(1, 0, 2, 3)      # (Cout, Cin, 3, 3)
        h = jax.lax.conv_general_dilated(
            h, wc, window_strides=(1, 1), padding=((1, 2), (1, 2)),
            lhs_dilation=(2, 2),
            dimension_numbers=("NCHW", "OIHW", "NCHW"),
            precision=hp)
        h = jnp.maximum(h + b.reshape(1, -1, 1, 1), 0.0)
    return h


if __name__ == "__main__":
    key = jax.random.PRNGKey(0)
    pkey, xkey = jax.random.split(key)
    params = init_params(pkey)
    prep = prepare_params(params)                          # one-time weight prep
    x = jax.random.normal(xkey, (2, 7), jnp.float32)       # batch=2, in_features=7

    out = deconvnet_forward(prep, x)
    out = jax.block_until_ready(out)

    assert out.shape == (2, 1, 32, 32), out.shape
    assert out.dtype == jnp.float32
    assert bool(jnp.all(out >= 0.0))                       # ReLU output
    assert bool(jnp.all(jnp.isfinite(out)))

    ref = reference_forward(params, x)
    err = float(jnp.max(jnp.abs(out - ref)))
    assert err < 1e-3, f"mismatch vs reference: max|diff|={err}"
    print("KERNEL_OK")
</pallas_src>

<mosaic_0001>
module attributes {stable_mosaic.version = 11 : i64} {
  func.func @_deconvnet_kernel(%arg0: i32, %arg1: memref<32x112xf32, #tpu.memory_space<vmem>>, %arg2: memref<112x16xf32, #tpu.memory_space<vmem>>, %arg3: memref<32x16xf32, #tpu.memory_space<vmem>>, %arg4: memref<64x128xf32, #tpu.memory_space<vmem>>, %arg5: memref<1x128xf32, #tpu.memory_space<vmem>>, %arg6: memref<512x1024xf32, #tpu.memory_space<vmem>>, %arg7: memref<1x1024xf32, #tpu.memory_space<vmem>>, %arg8: memref<4096x64xf32, #tpu.memory_space<vmem>>, %arg9: memref<1x64xf32, #tpu.memory_space<vmem>>, %arg10: memref<32x1xf32, #tpu.memory_space<vmem>>, %arg11: memref<32x1xf32, #tpu.memory_space<vmem>>, %arg12: memref<32x1xf32, #tpu.memory_space<vmem>>, %arg13: memref<32x64xf32, #tpu.memory_space<vmem>>) attributes {dimension_semantics = [#tpu.dimension_semantics<parallel>], iteration_bounds = array<i64: 1>, scalar_prefetch = 0 : i64, scratch_operands = 0 : i64, tpu.core_type = #tpu.core_type<tc>, window_params = [{transform_indices = @transform_0, window_bounds = array<i64: 32, 112>}, {pipeline_mode = #tpu.pipeline_mode<synchronous>, transform_indices = @transform_1, window_bounds = array<i64: 112, 16>}, {pipeline_mode = #tpu.pipeline_mode<synchronous>, transform_indices = @transform_2, window_bounds = array<i64: 32, 16>}, {pipeline_mode = #tpu.pipeline_mode<synchronous>, transform_indices = @transform_3, window_bounds = array<i64: 64, 128>}, {pipeline_mode = #tpu.pipeline_mode<synchronous>, transform_indices = @transform_4, window_bounds = array<i64: 1, 128>}, {pipeline_mode = #tpu.pipeline_mode<synchronous>, transform_indices = @transform_5, window_bounds = array<i64: 512, 1024>}, {pipeline_mode = #tpu.pipeline_mode<synchronous>, transform_indices = @transform_6, window_bounds = array<i64: 1, 1024>}, {pipeline_mode = #tpu.pipeline_mode<synchronous>, transform_indices = @transform_7, window_bounds = array<i64: 4096, 64>}, {pipeline_mode = #tpu.pipeline_mode<synchronous>, transform_indices = @transform_8, window_bounds = array<i64: 1, 64>}, {pipeline_mode = #tpu.pipeline_mode<synchronous>, transform_indices = @transform_9, window_bounds = array<i64: 32, 1>}, {pipeline_mode = #tpu.pipeline_mode<synchronous>, transform_indices = @transform_10, window_bounds = array<i64: 32, 1>}, {pipeline_mode = #tpu.pipeline_mode<synchronous>, transform_indices = @transform_11, window_bounds = array<i64: 32, 1>}, {transform_indices = @transform_12, window_bounds = array<i64: 32, 64>}]} {
    %c0 = arith.constant 0 : index
    %c0_0 = arith.constant 0 : index
    %0 = vector.load %arg10[%c0, %c0_0] : memref<32x1xf32, #tpu.memory_space<vmem>>, vector<32x1xf32>
    %c0_1 = arith.constant 0 : index
    %c0_2 = arith.constant 0 : index
    %1 = vector.load %arg11[%c0_1, %c0_2] : memref<32x1xf32, #tpu.memory_space<vmem>>, vector<32x1xf32>
    %c0_3 = arith.constant 0 : index
    %c0_4 = arith.constant 0 : index
    %2 = vector.load %arg12[%c0_3, %c0_4] : memref<32x1xf32, #tpu.memory_space<vmem>>, vector<32x1xf32>
    %c0_5 = arith.constant 0 : index
    %c0_6 = arith.constant 0 : index
    %3 = vector.load %arg1[%c0_5, %c0_6] : memref<32x112xf32, #tpu.memory_space<vmem>>, vector<32x112xf32>
    %c0_7 = arith.constant 0 : index
    %c0_8 = arith.constant 0 : index
    %4 = vector.load %arg2[%c0_7, %c0_8] : memref<112x16xf32, #tpu.memory_space<vmem>>, vector<112x16xf32>
    %cst = arith.constant dense<0.000000e+00> : vector<32x16xf32>
    %5 = tpu.matmul %3, %4, %cst {dimension_numbers = #tpu.dot_dimension_numbers<[1], [0], [0], [1], [0, 0, 1, 1], [], []>} : vector<32x112xf32>, vector<112x16xf32>, vector<32x16xf32> -> vector<32x16xf32>
    %c0_9 = arith.constant 0 : index
    %c0_10 = arith.constant 0 : index
    %6 = vector.load %arg3[%c0_9, %c0_10] : memref<32x16xf32, #tpu.memory_space<vmem>>, vector<32x16xf32>
    %7 = arith.addf %5, %6 : vector<32x16xf32>
    %cst_11 = arith.constant 0.000000e+00 : f32
    %8 = vector.broadcast %cst_11 : f32 to vector<32x16xf32>
    %9 = arith.maximumf %7, %8 : vector<32x16xf32>
    %cst_12 = arith.constant 0.000000e+00 : f32
    %10 = vector.broadcast %cst_12 : f32 to vector<1x16xf32>
    %cst_13 = arith.constant 0.000000e+00 : f32
    %11 = vector.broadcast %cst_13 : f32 to vector<4x16xf32>
    %cst_14 = arith.constant 0.000000e+00 : f32
    %12 = vector.broadcast %cst_14 : f32 to vector<5x16xf32>
    %13 = vector.extract_strided_slice %9 {offsets = [1, 0], sizes = [31, 16], strides = [1, 1]} : vector<32x16xf32> to vector<31x16xf32>
    %14 = tpu.concatenate %13, %10 in 0 : vector<31x16xf32>, vector<1x16xf32> -> vector<32x16xf32>
    %15 = vector.broadcast %0 : vector<32x1xf32> to vector<32x16xf32>
    %16 = arith.mulf %14, %15 : vector<32x16xf32>
    %17 = vector.extract_strided_slice %9 {offsets = [4, 0], sizes = [28, 16], strides = [1, 1]} : vector<32x16xf32> to vector<28x16xf32>
    %18 = tpu.concatenate %17, %11 in 0 : vector<28x16xf32>, vector<4x16xf32> -> vector<32x16xf32>
    %19 = vector.broadcast %1 : vector<32x1xf32> to vector<32x16xf32>
    %20 = arith.mulf %18, %19 : vector<32x16xf32>
    %21 = vector.extract_strided_slice %9 {offsets = [5, 0], sizes = [27, 16], strides = [1, 1]} : vector<32x16xf32> to vector<27x16xf32>
    %22 = tpu.concatenate %21, %12 in 0 : vector<27x16xf32>, vector<5x16xf32> -> vector<32x16xf32>
    %23 = vector.broadcast %2 : vector<32x1xf32> to vector<32x16xf32>
    %24 = arith.mulf %22, %23 : vector<32x16xf32>
    %25 = tpu.concatenate %9, %16, %20, %24 in 1 : vector<32x16xf32>, vector<32x16xf32>, vector<32x16xf32>, vector<32x16xf32> -> vector<32x64xf32>
    %c0_15 = arith.constant 0 : index
    %c0_16 = arith.constant 0 : index
    %26 = vector.load %arg4[%c0_15, %c0_16] : memref<64x128xf32, #tpu.memory_space<vmem>>, vector<64x128xf32>
    %cst_17 = arith.constant dense<0.000000e+00> : vector<32x128xf32>
    %27 = tpu.matmul %25, %26, %cst_17 {dimension_numbers = #tpu.dot_dimension_numbers<[1], [0], [0], [1], [0, 0, 1, 1], [], []>} : vector<32x64xf32>, vector<64x128xf32>, vector<32x128xf32> -> vector<32x128xf32>
    %c0_18 = arith.constant 0 : index
    %c0_19 = arith.constant 0 : index
    %28 = vector.load %arg5[%c0_18, %c0_19] : memref<1x128xf32, #tpu.memory_space<vmem>>, vector<1x128xf32>
    %29 = vector.broadcast %28 : vector<1x128xf32> to vector<32x128xf32>
    %30 = arith.addf %27, %29 : vector<32x128xf32>
    %cst_20 = arith.constant 0.000000e+00 : f32
    %31 = vector.broadcast %cst_20 : f32 to vector<32x128xf32>
    %32 = arith.maximumf %30, %31 : vector<32x128xf32>
    %cst_21 = arith.constant 0.000000e+00 : f32
    %33 = vector.broadcast %cst_21 : f32 to vector<1x128xf32>
    %cst_22 = arith.constant 0.000000e+00 : f32
    %34 = vector.broadcast %cst_22 : f32 to vector<4x128xf32>
    %cst_23 = arith.constant 0.000000e+00 : f32
    %35 = vector.broadcast %cst_23 : f32 to vector<5x128xf32>
    %36 = vector.extract_strided_slice %32 {offsets = [1, 0], sizes = [31, 128], strides = [1, 1]} : vector<32x128xf32> to vector<31x128xf32>
    %37 = tpu.concatenate %36, %33 in 0 : vector<31x128xf32>, vector<1x128xf32> -> vector<32x128xf32>
    %38 = vector.broadcast %0 : vector<32x1xf32> to vector<32x128xf32>
    %39 = arith.mulf %37, %38 : vector<32x128xf32>
    %40 = vector.extract_strided_slice %32 {offsets = [4, 0], sizes = [28, 128], strides = [1, 1]} : vector<32x128xf32> to vector<28x128xf32>
    %41 = tpu.concatenate %40, %34 in 0 : vector<28x128xf32>, vector<4x128xf32> -> vector<32x128xf32>
    %42 = vector.broadcast %1 : vector<32x1xf32> to vector<32x128xf32>
    %43 = arith.mulf %41, %42 : vector<32x128xf32>
    %44 = vector.extract_strided_slice %32 {offsets = [5, 0], sizes = [27, 128], strides = [1, 1]} : vector<32x128xf32> to vector<27x128xf32>
    %45 = tpu.concatenate %44, %35 in 0 : vector<27x128xf32>, vector<5x128xf32> -> vector<32x128xf32>
    %46 = vector.broadcast %2 : vector<32x1xf32> to vector<32x128xf32>
    %47 = arith.mulf %45, %46 : vector<32x128xf32>
    %48 = tpu.concatenate %32, %39, %43, %47 in 1 : vector<32x128xf32>, vector<32x128xf32>, vector<32x128xf32>, vector<32x128xf32> -> vector<32x512xf32>
    %c0_24 = arith.constant 0 : index
    %c0_25 = arith.constant 0 : index
    %49 = vector.load %arg6[%c0_24, %c0_25] : memref<512x1024xf32, #tpu.memory_space<vmem>>, vector<512x1024xf32>
    %cst_26 = arith.constant dense<0.000000e+00> : vector<32x1024xf32>
    %50 = tpu.matmul %48, %49, %cst_26 {dimension_numbers = #tpu.dot_dimension_numbers<[1], [0], [0], [1], [0, 0, 1, 1], [], []>} : vector<32x512xf32>, vector<512x1024xf32>, vector<32x1024xf32> -> vector<32x1024xf32>
    %c0_27 = arith.constant 0 : index
    %c0_28 = arith.constant 0 : index
    %51 = vector.load %arg7[%c0_27, %c0_28] : memref<1x1024xf32, #tpu.memory_space<vmem>>, vector<1x1024xf32>
    %52 = vector.broadcast %51 : vector<1x1024xf32> to vector<32x1024xf32>
    %53 = arith.addf %50, %52 : vector<32x1024xf32>
    %cst_29 = arith.constant 0.000000e+00 : f32
    %54 = vector.broadcast %cst_29 : f32 to vector<32x1024xf32>
    %55 = arith.maximumf %53, %54 : vector<32x1024xf32>
    %cst_30 = arith.constant 0.000000e+00 : f32
    %56 = vector.broadcast %cst_30 : f32 to vector<1x1024xf32>
    %cst_31 = arith.constant 0.000000e+00 : f32
    %57 = vector.broadcast %cst_31 : f32 to vector<4x1024xf32>
    %cst_32 = arith.constant 0.000000e+00 : f32
    %58 = vector.broadcast %cst_32 : f32 to vector<5x1024xf32>
    %59 = vector.extract_strided_slice %55 {offsets = [1, 0], sizes = [31, 1024], strides = [1, 1]} : vector<32x1024xf32> to vector<31x1024xf32>
    %60 = tpu.concatenate %59, %56 in 0 : vector<31x1024xf32>, vector<1x1024xf32> -> vector<32x1024xf32>
    %61 = vector.broadcast %0 : vector<32x1xf32> to vector<32x1024xf32>
    %62 = arith.mulf %60, %61 : vector<32x1024xf32>
    %63 = vector.extract_strided_slice %55 {offsets = [4, 0], sizes = [28, 1024], strides = [1, 1]} : vector<32x1024xf32> to vector<28x1024xf32>
    %64 = tpu.concatenate %63, %57 in 0 : vector<28x1024xf32>, vector<4x1024xf32> -> vector<32x1024xf32>
    %65 = vector.broadcast %1 : vector<32x1xf32> to vector<32x1024xf32>
    %66 = arith.mulf %64, %65 : vector<32x1024xf32>
    %67 = vector.extract_strided_slice %55 {offsets = [5, 0], sizes = [27, 1024], strides = [1, 1]} : vector<32x1024xf32> to vector<27x1024xf32>
    %68 = tpu.concatenate %67, %58 in 0 : vector<27x1024xf32>, vector<5x1024xf32> -> vector<32x1024xf32>
    %69 = vector.broadcast %2 : vector<32x1xf32> to vector<32x1024xf32>
    %70 = arith.mulf %68, %69 : vector<32x1024xf32>
    %71 = tpu.concatenate %55, %62, %66, %70 in 1 : vector<32x1024xf32>, vector<32x1024xf32>, vector<32x1024xf32>, vector<32x1024xf32> -> vector<32x4096xf32>
    %c0_33 = arith.constant 0 : index
    %c0_34 = arith.constant 0 : index
    %72 = vector.load %arg8[%c0_33, %c0_34] : memref<4096x64xf32, #tpu.memory_space<vmem>>, vector<4096x64xf32>
    %cst_35 = arith.constant dense<0.000000e+00> : vector<32x64xf32>
    %73 = tpu.matmul %71, %72, %cst_35 {dimension_numbers = #tpu.dot_dimension_numbers<[1], [0], [0], [1], [0, 0, 1, 1], [], []>} : vector<32x4096xf32>, vector<4096x64xf32>, vector<32x64xf32> -> vector<32x64xf32>
    %c0_36 = arith.constant 0 : index
    %c0_37 = arith.constant 0 : index
    %74 = vector.load %arg9[%c0_36, %c0_37] : memref<1x64xf32, #tpu.memory_space<vmem>>, vector<1x64xf32>
    %75 = vector.broadcast %74 : vector<1x64xf32> to vector<32x64xf32>
    %76 = arith.addf %73, %75 : vector<32x64xf32>
    %cst_38 = arith.constant 0.000000e+00 : f32
    %77 = vector.broadcast %cst_38 : f32 to vector<32x64xf32>
    %78 = arith.maximumf %76, %77 : vector<32x64xf32>
    %c0_39 = arith.constant 0 : index
    %c0_40 = arith.constant 0 : index
    %79 = vector.load %arg13[%c0_39, %c0_40] : memref<32x64xf32, #tpu.memory_space<vmem>>, vector<32x64xf32>
    tpu.vector_store %arg13[%c0_39, %c0_40], %78 {strides = array<i32>} : memref<32x64xf32, #tpu.memory_space<vmem>>, vector<32x64xf32>,
    return
  }
  func.func @transform_0(%arg0: i32) -> (i32, i32) {
    %c0_i32 = arith.constant 0 : i32
    %c0_i32_0 = arith.constant 0 : i32
    return %arg0, %c0_i32 : i32, i32
  }
  func.func @transform_1(%arg0: i32) -> (i32, i32) {
    %c0_i32 = arith.constant 0 : i32
    %c0_i32_0 = arith.constant 0 : i32
    %c0_i32_1 = arith.constant 0 : i32
    return %c0_i32, %c0_i32_0 : i32, i32
  }
  func.func @transform_2(%arg0: i32) -> (i32, i32) {
    %c0_i32 = arith.constant 0 : i32
    %c0_i32_0 = arith.constant 0 : i32
    %c0_i32_1 = arith.constant 0 : i32
    return %c0_i32, %c0_i32_0 : i32, i32
  }
  func.func @transform_3(%arg0: i32) -> (i32, i32) {
    %c0_i32 = arith.constant 0 : i32
    %c0_i32_0 = arith.constant 0 : i32
    %c0_i32_1 = arith.constant 0 : i32
    return %c0_i32, %c0_i32_0 : i32, i32
  }
  func.func @transform_4(%arg0: i32) -> (i32, i32) {
    %c0_i32 = arith.constant 0 : i32
    %c0_i32_0 = arith.constant 0 : i32
    %c0_i32_1 = arith.constant 0 : i32
    return %c0_i32, %c0_i32_0 : i32, i32
  }
  func.func @transform_5(%arg0: i32) -> (i32, i32) {
    %c0_i32 = arith.constant 0 : i32
    %c0_i32_0 = arith.constant 0 : i32
    %c0_i32_1 = arith.constant 0 : i32
    return %c0_i32, %c0_i32_0 : i32, i32
  }
  func.func @transform_6(%arg0: i32) -> (i32, i32) {
    %c0_i32 = arith.constant 0 : i32
    %c0_i32_0 = arith.constant 0 : i32
    %c0_i32_1 = arith.constant 0 : i32
    return %c0_i32, %c0_i32_0 : i32, i32
  }
  func.func @transform_7(%arg0: i32) -> (i32, i32) {
    %c0_i32 = arith.constant 0 : i32
    %c0_i32_0 = arith.constant 0 : i32
    %c0_i32_1 = arith.constant 0 : i32
    return %c0_i32, %c0_i32_0 : i32, i32
  }
  func.func @transform_8(%arg0: i32) -> (i32, i32) {
    %c0_i32 = arith.constant 0 : i32
    %c0_i32_0 = arith.constant 0 : i32
    %c0_i32_1 = arith.constant 0 : i32
    return %c0_i32, %c0_i32_0 : i32, i32
  }
  func.func @transform_9(%arg0: i32) -> (i32, i32) {
    %c0_i32 = arith.constant 0 : i32
    %c0_i32_0 = arith.constant 0 : i32
    %c0_i32_1 = arith.constant 0 : i32
    return %c0_i32, %c0_i32_0 : i32, i32
  }
  func.func @transform_10(%arg0: i32) -> (i32, i32) {
    %c0_i32 = arith.constant 0 : i32
    %c0_i32_0 = arith.constant 0 : i32
    %c0_i32_1 = arith.constant 0 : i32
    return %c0_i32, %c0_i32_0 : i32, i32
  }
  func.func @transform_11(%arg0: i32) -> (i32, i32) {
    %c0_i32 = arith.constant 0 : i32
    %c0_i32_0 = arith.constant 0 : i32
    %c0_i32_1 = arith.constant 0 : i32
    return %c0_i32, %c0_i32_0 : i32, i32
  }
  func.func @transform_12(%arg0: i32) -> (i32, i32) {
    %c0_i32 = arith.constant 0 : i32
    %c0_i32_0 = arith.constant 0 : i32
    return %arg0, %c0_i32 : i32, i32
  }
}

</mosaic_0001>

<llo_original>
// kernel: deconvnet_forward.1
$region0: #{deconvnet_forward.1}
  #allocation0 [shape = 'u32[]', space=smem, size = 0x4, offset = 0x4, fixed_abs, tag = 'smem constant byte address 0x4 - core index']
  #allocation1 [shape = 'u32[144,128]{1,0:T(1,128)}', space=vmem, size = 0x12000, scoped, tag = 'internal scratch']
  %s0 = inlined_call_operand.vmem [shape: f32[32,112], index: 0, kind: input, shape index: {}]
  %s1 = inlined_call_operand.vmem [shape: f32[112,16], index: 1, kind: input, shape index: {}]
  %s2 = inlined_call_operand.vmem [shape: f32[32,16], index: 2, kind: input, shape index: {}]
  %s3 = inlined_call_operand.vmem [shape: f32[64,128], index: 3, kind: input, shape index: {}]
  %s4 = inlined_call_operand.vmem [shape: f32[1,128], index: 4, kind: input, shape index: {}]
  %s5 = inlined_call_operand.vmem [shape: f32[512,1024], index: 5, kind: input, shape index: {}]
  %s6 = inlined_call_operand.vmem [shape: f32[1,1024], index: 6, kind: input, shape index: {}]
  %s7 = inlined_call_operand.vmem [shape: f32[4096,64], index: 7, kind: input, shape index: {}]
  %s8 = inlined_call_operand.vmem [shape: f32[1,64], index: 8, kind: input, shape index: {}]
  %s9 = inlined_call_operand.vmem [shape: f32[32,1], index: 9, kind: input, shape index: {}]
  %s10 = inlined_call_operand.vmem [shape: f32[32,1], index: 10, kind: input, shape index: {}]
  %s11 = inlined_call_operand.vmem [shape: f32[32,1], index: 11, kind: input, shape index: {}]
  %s12 = inlined_call_operand.vmem [shape: f32[32,64], index: 12, kind: output, shape index: {}]
  %s13 = sld [smem:[#allocation0]]
  $region58: #{deconvnet_forward.1} parent=0
    _
  %s15 = ssub.s32 1, %s13
  %s16 = scalar_select 0, %s15, %s13
  // Predicated region
  $region2: #{deconvnet_forward.1} parent=0 // pred_check
    _
  $region3: #{deconvnet_forward.1} parent=0 // pred_check_branch
    %18 = sbr.rel (0) target = $region5
  $region4: #{deconvnet_forward.1} parent=0 // pred_region
    _
  $region5: #{deconvnet_forward.1} parent=0 // pred_fallthru
    _
  // Predicated region
  $region6: #{deconvnet_forward.1} parent=0 // pred_check
    _
  $region7: #{deconvnet_forward.1} parent=0 // pred_check_branch
    %20 = sbr.rel (0) target = $region9
  $region8: #{deconvnet_forward.1} parent=0 // pred_region
    _
  $region9: #{deconvnet_forward.1} parent=0 // pred_fallthru
    _
  // Predicated region
  $region10: #{deconvnet_forward.1} parent=0 // pred_check
    _
  $region11: #{deconvnet_forward.1} parent=0 // pred_check_branch
    %22 = sbr.rel (0) target = $region13
  $region12: #{deconvnet_forward.1} parent=0 // pred_region
    _
  $region13: #{deconvnet_forward.1} parent=0 // pred_fallthru
    _
  // Predicated region
  $region14: #{deconvnet_forward.1} parent=0 // pred_check
    _
  $region15: #{deconvnet_forward.1} parent=0 // pred_check_branch
    %24 = sbr.rel (0) target = $region17
  $region16: #{deconvnet_forward.1} parent=0 // pred_region
    _
  $region17: #{deconvnet_forward.1} parent=0 // pred_fallthru
    _
  // Predicated region
  $region18: #{deconvnet_forward.1} parent=0 // pred_check
    _
  $region19: #{deconvnet_forward.1} parent=0 // pred_check_branch
    %26 = sbr.rel (0) target = $region21
  $region20: #{deconvnet_forward.1} parent=0 // pred_region
    _
  $region21: #{deconvnet_forward.1} parent=0 // pred_fallthru
    _
  // Predicated region
  $region22: #{deconvnet_forward.1} parent=0 // pred_check
    _
  $region23: #{deconvnet_forward.1} parent=0 // pred_check_branch
    %28 = sbr.rel (0) target = $region25
  $region24: #{deconvnet_forward.1} parent=0 // pred_region
    _
  $region25: #{deconvnet_forward.1} parent=0 // pred_fallthru
    _
  // Predicated region
  $region26: #{deconvnet_forward.1} parent=0 // pred_check
    _
  $region27: #{deconvnet_forward.1} parent=0 // pred_check_branch
    %30 = sbr.rel (0) target = $region29
  $region28: #{deconvnet_forward.1} parent=0 // pred_region
    _
  $region29: #{deconvnet_forward.1} parent=0 // pred_fallthru
    _
  // Predicated region
  $region30: #{deconvnet_forward.1} parent=0 // pred_check
    _
  $region31: #{deconvnet_forward.1} parent=0 // pred_check_branch
    %32 = sbr.rel (0) target = $region33
  $region32: #{deconvnet_forward.1} parent=0 // pred_region
    _
  $region33: #{deconvnet_forward.1} parent=0 // pred_fallthru
    _
  // Predicated region
  $region34: #{deconvnet_forward.1} parent=0 // pred_check
    _
  $region35: #{deconvnet_forward.1} parent=0 // pred_check_branch
    %34 = sbr.rel (0) target = $region37
  $region36: #{deconvnet_forward.1} parent=0 // pred_region
    _
  $region37: #{deconvnet_forward.1} parent=0 // pred_fallthru
    _
  // Predicated region
  $region38: #{deconvnet_forward.1} parent=0 // pred_check
    _
  $region39: #{deconvnet_forward.1} parent=0 // pred_check_branch
    %36 = sbr.rel (0) target = $region41
  $region40: #{deconvnet_forward.1} parent=0 // pred_region
    _
  $region41: #{deconvnet_forward.1} parent=0 // pred_fallthru
    _
  // Predicated region
  $region42: #{deconvnet_forward.1} parent=0 // pred_check
    _
  $region43: #{deconvnet_forward.1} parent=0 // pred_check_branch
    %38 = sbr.rel (0) target = $region45
  $region44: #{deconvnet_forward.1} parent=0 // pred_region
    _
  $region45: #{deconvnet_forward.1} parent=0 // pred_fallthru
    _
  // Predicated region
  $region46: #{deconvnet_forward.1} parent=0 // pred_check
    _
  $region47: #{deconvnet_forward.1} parent=0 // pred_check_branch
    %40 = sbr.rel (0) target = $region49
  $region48: #{deconvnet_forward.1} parent=0 // pred_region
    _
  $region49: #{deconvnet_forward.1} parent=0 // pred_fallthru
    _
  %v41 = vld [vmem:[%s9] sm:$0xff]
  %v42 = vld [vmem:[%s9 + $0x8] sm:$0xff]
  %v43 = vld [vmem:[%s9 + $0x10] sm:$0xff]
  %v44 = vld [vmem:[%s9 + $0x18] sm:$0xff]
  %v45 = vld [vmem:[%s10] sm:$0xff]
  %v46 = vld [vmem:[%s10 + $0x8] sm:$0xff]
  %v47 = vld [vmem:[%s10 + $0x10] sm:$0xff]
  %v48 = vld [vmem:[%s10 + $0x18] sm:$0xff]
  %v49 = vld [vmem:[%s11] sm:$0xff]
  %v50 = vld [vmem:[%s11 + $0x8] sm:$0xff]
  %v51 = vld [vmem:[%s11 + $0x10] sm:$0xff]
  %v52 = vld [vmem:[%s11 + $0x18] sm:$0xff]
  %v53 = vld [vmem:[%s0] sm:$0xff]
  %v54 = vld [vmem:[%s0 + $0x8] sm:$0xff]
  %v55 = vld [vmem:[%s0 + $0x10] sm:$0xff]
  %v56 = vld [vmem:[%s0 + $0x18] sm:$0xff]
  %v57 = vld [vmem:[%s1] sm:$0xff]
  %v58 = vld [vmem:[%s1 + $0x8] sm:$0xff]
  %v59 = vld [vmem:[%s1 + $0x10] sm:$0xff]
  %v60 = vld [vmem:[%s1 + $0x18] sm:$0xff]
  %v61 = vld [vmem:[%s1 + $0x20] sm:$0xff]
  %v62 = vld [vmem:[%s1 + $0x28] sm:$0xff]
  %v63 = vld [vmem:[%s1 + $0x30] sm:$0xff]
  %v64 = vld [vmem:[%s1 + $0x38] sm:$0xff]
  %v65 = vld [vmem:[%s1 + $0x40] sm:$0xff]
  %v66 = vld [vmem:[%s1 + $0x48] sm:$0xff]
  %v67 = vld [vmem:[%s1 + $0x50] sm:$0xff]
  %v68 = vld [vmem:[%s1 + $0x58] sm:$0xff]
  %v69 = vld [vmem:[%s1 + $0x60] sm:$0xff]
  %v70 = vld [vmem:[%s1 + $0x68] sm:$0xff]
  %v71 = vld [vmem:[%s2] sm:$0xff]
  %v72 = vld [vmem:[%s2 + $0x8] sm:$0xff]
  %v73 = vld [vmem:[%s2 + $0x10] sm:$0xff]
  %v74 = vld [vmem:[%s2 + $0x18] sm:$0xff]
  %vm75 = vcmask 916480
  %v77 = vsel %vm75, %v53, 0
  %v80 = vsel %vm75, %v54, 0
  %v83 = vsel %vm75, %v55, 0
  %v86 = vsel %vm75, %v56, 0
  %88 = vmatprep.subr.mxu0 0.0
  %89 = vmatpush1.msra.mxu0 0.0
  %90 = vmatprep.subr.mxu0 0.0
  %91 = vmatpush1.msra.mxu0 0.0
  %92 = vmatprep.subr.mxu0 0.0
  %93 = vmatpush1.msra.mxu0 %v70
  %94 = vmatprep.subr.mxu0 0.0
  %95 = vmatpush1.msra.mxu0 %v69
  %96 = vmatprep.subr.mxu0 0.0
  %97 = vmatpush1.msra.mxu0 %v68
  %98 = vmatprep.subr.mxu0 0.0
  %99 = vmatpush1.msra.mxu0 %v67
  %100 = vmatprep.subr.mxu0 0.0
  %101 = vmatpush1.msra.mxu0 %v66
  %102 = vmatprep.subr.mxu0 0.0
  %103 = vmatpush1.msra.mxu0 %v65
  %104 = vmatprep.subr.mxu0 0.0
  %105 = vmatpush1.msra.mxu0 %v64
  %106 = vmatprep.subr.mxu0 0.0
  %107 = vmatpush1.msra.mxu0 %v63
  %108 = vmatprep.subr.mxu0 0.0
  %109 = vmatpush1.msra.mxu0 %v62
  %110 = vmatprep.subr.mxu0 0.0
  %111 = vmatpush1.msra.mxu0 %v61
  %112 = vmatprep.subr.mxu0 0.0
  %113 = vmatpush1.msra.mxu0 %v60
  %114 = vmatprep.subr.mxu0 0.0
  %115 = vmatpush1.msra.mxu0 %v59
  %116 = vmatprep.subr.mxu0 0.0
  %117 = vmatpush1.msra.mxu0 %v58
  %118 = vmatprep.subr.mxu0 0.0
  %119 = vmatpush1.msra.mxu0 %v57
  %120 = vmatprep.subr.mxu0 0.0
  %121 = vmatpush2.msra.mxu0 0.0
  %122 = vmatprep.subr.mxu0 0.0
  %123 = vmatpush2.msra.mxu0 0.0
  %124 = vmatprep.subr.mxu0 0.0
  %125 = vmatpush2.msra.mxu0 0.0
  %126 = vmatprep.subr.mxu0 0.0
  %127 = vmatpush2.msra.mxu0 0.0
  %128 = vmatprep.subr.mxu0 0.0
  %129 = vmatpush2.msra.mxu0 0.0
  %130 = vmatprep.subr.mxu0 0.0
  %131 = vmatpush2.msra.mxu0 0.0
  %132 = vmatprep.subr.mxu0 0.0
  %133 = vmatpush2.msra.mxu0 0.0
  %134 = vmatprep.subr.mxu0 0.0
  %135 = vmatpush2.msra.mxu0 0.0
  %136 = vmatprep.subr.mxu0 0.0
  %137 = vmatpush2.msra.mxu0 0.0
  %138 = vmatprep.subr.mxu0 0.0
  %139 = vmatpush2.msra.mxu0 0.0
  %140 = vmatprep.subr.mxu0 0.0
  %141 = vmatpush2.msra.mxu0 0.0
  %142 = vmatprep.subr.mxu0 0.0
  %143 = vmatpush2.msra.mxu0 0.0
  %144 = vmatprep.subr.mxu0 0.0
  %145 = vmatpush2.msra.mxu0 0.0
  %146 = vmatprep.subr.mxu0 0.0
  %147 = vmatpush2.msra.mxu0 0.0
  %148 = vmatprep.subr.mxu0 0.0
  %149 = vmatpush2.msra.mxu0 0.0
  %150 = vmatprep.subr.mxu0 0.0
  %151 = vmatpush2.msra.mxu0 0.0
  %152 = vmatprep.mubr.f32.mxu0 0.0
  %153 = vmatmul.mubr.f32.gmra.mxu0 %v77
  %v154 = vpop.f32.mrf.mxu0
  %v155 = vadd.f32 %v71, %v154
  %v156 = vpop.f32.mrf.mxu0
  %157 = vmatprep.mubr.f32.mxu0 0.0
  %158 = vmatmul.mubr.f32.gmra.mxu0 %v80
  %v159 = vpop.f32.mrf.mxu0
  %v160 = vadd.f32 %v72, %v159
  %v161 = vpop.f32.mrf.mxu0
  %162 = vmatprep.mubr.f32.mxu0 0.0
  %163 = vmatmul.mubr.f32.gmra.mxu0 %v83
  %v164 = vpop.f32.mrf.mxu0
  %v165 = vadd.f32 %v73, %v164
  %v166 = vpop.f32.mrf.mxu0
  %167 = vmatprep.mubr.f32.mxu0 0.0
  %168 = vmatmul.mubr.f32.gmra.mxu0 %v86
  %v169 = vpop.f32.mrf.mxu0
  %v170 = vadd.f32 %v74, %v169
  %v171 = vpop.f32.mrf.mxu0
  %172 = vdwg.mxu0
  %v173 = vmax.f32 %v155, 0.0
  %v174 = vmax.f32 %v160, 0.0
  %v175 = vmax.f32 %v165, 0.0
  %v176 = vmax.f32 %v170, 0.0
  %vm181 = vcmask 1046528
  %v182 = vrot.slane %v173, 1
  %v183 = vrot.slane %v174, 1
  %v184 = vsel %vm181, %v182, %v183
  %v185 = vrot.slane %v175, 1
  %v186 = vsel %vm181, %v183, %v185
  %v187 = vrot.slane %v176, 1
  %v188 = vsel %vm181, %v185, %v187
  %v193 = vsel %vm181, %v187, 0.0
  %195 = vset.pattern.permute.xlu0 0
  %196 = vperm.xlu0 %195, %v41
  %v197 = vpop.permute.xlu0 %196
  %200 = vset.pattern.permute.xlu0 0
  %201 = vperm.xlu0 %200, %v42
  %v202 = vpop.permute.xlu0 %201
  %205 = vset.pattern.permute.xlu0 0
  %206 = vperm.xlu0 %205, %v43
  %v207 = vpop.permute.xlu0 %206
  %210 = vset.pattern.permute.xlu0 0
  %211 = vperm.xlu0 %210, %v44
  %v212 = vpop.permute.xlu0 %211
  %v214 = vmul.f32 %v184, %v197
  %v215 = vmul.f32 %v186, %v202
  %v216 = vmul.f32 %v188, %v207
  %v217 = vmul.f32 %v193, %v212
  %vm218 = vcmask 1043456
  %v219 = vrot.slane %v173, 4
  %v220 = vrot.slane %v174, 4
  %v221 = vsel %vm218, %v219, %v220
  %v222 = vrot.slane %v175, 4
  %v223 = vsel %vm218, %v220, %v222
  %v224 = vrot.slane %v176, 4
  %v225 = vsel %vm218, %v222, %v224
  %v230 = vsel %vm218, %v224, 0.0
  %232 = vset.pattern.permute.xlu0 0
  %233 = vperm.xlu0 %232, %v45
  %v234 = vpop.permute.xlu0 %233
  %237 = vset.pattern.permute.xlu0 0
  %238 = vperm.xlu0 %237, %v46
  %v239 = vpop.permute.xlu0 %238
  %242 = vset.pattern.permute.xlu0 0
  %243 = vperm.xlu0 %242, %v47
  %v244 = vpop.permute.xlu0 %243
  %247 = vset.pattern.permute.xlu0 0
  %248 = vperm.xlu0 %247, %v48
  %v249 = vpop.permute.xlu0 %248
  %v251 = vmul.f32 %v221, %v234
  %v252 = vmul.f32 %v223, %v239
  %v253 = vmul.f32 %v225, %v244
  %v254 = vmul.f32 %v230, %v249
  %vm255 = vcmask 1042432
  %v256 = vrot.slane %v173, 5
  %v257 = vrot.slane %v174, 5
  %v258 = vsel %vm255, %v256, %v257
  %v259 = vrot.slane %v175, 5
  %v260 = vsel %vm255, %v257, %v259
  %v261 = vrot.slane %v176, 5
  %v262 = vsel %vm255, %v259, %v261
  %v267 = vsel %vm255, %v261, 0.0
  %269 = vset.pattern.permute.xlu0 0
  %270 = vperm.xlu0 %269, %v49
  %v271 = vpop.permute.xlu0 %270
  %274 = vset.pattern.permute.xlu0 0
  %275 = vperm.xlu0 %274, %v50
  %v276 = vpop.permute.xlu0 %275
  %279 = vset.pattern.permute.xlu0 0
  %280 = vperm.xlu0 %279, %v51
  %v281 = vpop.permute.xlu0 %280
  %284 = vset.pattern.permute.xlu0 0
  %285 = vperm.xlu0 %284, %v52
  %v286 = vpop.permute.xlu0 %285
  %v288 = vmul.f32 %v258, %v271
  %v289 = vmul.f32 %v260, %v276
  %v290 = vmul.f32 %v262, %v281
  %v291 = vmul.f32 %v267, %v286
  %296 = vrot.lane.b32.xlu0 %v214, 16
  %v297 = vpop.permute.xlu0 %296
  %298 = vrot.lane.b32.xlu0 %v215, 16
  %v299 = vpop.permute.xlu0 %298
  %300 = vrot.lane.b32.xlu0 %v216, 16
  %v301 = vpop.permute.xlu0 %300
  %302 = vrot.lane.b32.xlu0 %v217, 16
  %v303 = vpop.permute.xlu0 %302
  %312 = vrot.lane.b32.xlu0 %v251, 32
  %v313 = vpop.permute.xlu0 %312
  %314 = vrot.lane.b32.xlu0 %v252, 32
  %v315 = vpop.permute.xlu0 %314
  %316 = vrot.lane.b32.xlu0 %v253, 32
  %v317 = vpop.permute.xlu0 %316
  %318 = vrot.lane.b32.xlu0 %v254, 32
  %v319 = vpop.permute.xlu0 %318
  %328 = vrot.lane.b32.xlu0 %v288, 48
  %v329 = vpop.permute.xlu0 %328
  %330 = vrot.lane.b32.xlu0 %v289, 48
  %v331 = vpop.permute.xlu0 %330
  %332 = vrot.lane.b32.xlu0 %v290, 48
  %v333 = vpop.permute.xlu0 %332
  %334 = vrot.lane.b32.xlu0 %v291, 48
  %v335 = vpop.permute.xlu0 %334
  %vm340 = vcmask 130048
  %v341 = vsel %vm340, %v173, %v297
  %v342 = vsel %vm340, %v174, %v299
  %v343 = vsel %vm340, %v175, %v301
  %v344 = vsel %vm340, %v176, %v303
  %vm345 = vcmask 261120
  %v346 = vsel %vm345, %v341, %v313
  %v347 = vsel %vm345, %v342, %v315
  %v348 = vsel %vm345, %v343, %v317
  %v349 = vsel %vm345, %v344, %v319
  %vm350 = vcmask 392192
  %v351 = vsel %vm350, %v346, %v329
  %v352 = vsel %vm350, %v347, %v331
  %v353 = vsel %vm350, %v348, %v333
  %v354 = vsel %vm350, %v349, %v335
  %v355 = vld [vmem:[%s3] sm:$0xff]
  %v356 = vld [vmem:[%s3 + $0x8] sm:$0xff]
  %v357 = vld [vmem:[%s3 + $0x10] sm:$0xff]
  %v358 = vld [vmem:[%s3 + $0x18] sm:$0xff]
  %v359 = vld [vmem:[%s3 + $0x20] sm:$0xff]
  %v360 = vld [vmem:[%s3 + $0x28] sm:$0xff]
  %v361 = vld [vmem:[%s3 + $0x30] sm:$0xff]
  %v362 = vld [vmem:[%s3 + $0x38] sm:$0xff]
  %v363 = vld [vmem:[%s4] sm:$0x1]
  %v365 = vlaneseq
  %v366 = vshrl.u32 %v365, 7
  %v367 = vsub.s32 0, %v366
  %v368 = vrot.slane %v363, %v367
  %vm370 = vcmask 523264
  %v372 = vsel %vm370, %v351, 0
  %v375 = vsel %vm370, %v352, 0
  %v378 = vsel %vm370, %v353, 0
  %v381 = vsel %vm370, %v354, 0
  %383 = vmatprep.subr.mxu0 0.0
  %384 = vmatpush1.msra.mxu0 0.0
  %385 = vmatprep.subr.mxu0 0.0
  %386 = vmatpush1.msra.mxu0 0.0
  %387 = vmatprep.subr.mxu0 0.0
  %388 = vmatpush1.msra.mxu0 0.0
  %389 = vmatprep.subr.mxu0 0.0
  %390 = vmatpush1.msra.mxu0 0.0
  %391 = vmatprep.subr.mxu0 0.0
  %392 = vmatpush1.msra.mxu0 0.0
  %393 = vmatprep.subr.mxu0 0.0
  %394 = vmatpush1.msra.mxu0 0.0
  %395 = vmatprep.subr.mxu0 0.0
  %396 = vmatpush1.msra.mxu0 0.0
  %397 = vmatprep.subr.mxu0 0.0
  %398 = vmatpush1.msra.mxu0 0.0
  %399 = vmatprep.subr.mxu0 0.0
  %400 = vmatpush1.msra.mxu0 %v362
  %401 = vmatprep.subr.mxu0 0.0
  %402 = vmatpush1.msra.mxu0 %v361
  %403 = vmatprep.subr.mxu0 0.0
  %404 = vmatpush1.msra.mxu0 %v360
  %405 = vmatprep.subr.mxu0 0.0
  %406 = vmatpush1.msra.mxu0 %v359
  %407 = vmatprep.subr.mxu0 0.0
  %408 = vmatpush1.msra.mxu0 %v358
  %409 = vmatprep.subr.mxu0 0.0
  %410 = vmatpush1.msra.mxu0 %v357
  %411 = vmatprep.subr.mxu0 0.0
  %412 = vmatpush1.msra.mxu0 %v356
  %413 = vmatprep.subr.mxu0 0.0
  %414 = vmatpush1.msra.mxu0 %v355
  %415 = vmatprep.subr.mxu0 0.0
  %416 = vmatpush2.msra.mxu0 0.0
  %417 = vmatprep.subr.mxu0 0.0
  %418 = vmatpush2.msra.mxu0 0.0
  %419 = vmatprep.subr.mxu0 0.0
  %420 = vmatpush2.msra.mxu0 0.0
  %421 = vmatprep.subr.mxu0 0.0
  %422 = vmatpush2.msra.mxu0 0.0
  %423 = vmatprep.subr.mxu0 0.0
  %424 = vmatpush2.msra.mxu0 0.0
  %425 = vmatprep.subr.mxu0 0.0
  %426 = vmatpush2.msra.mxu0 0.0
  %427 = vmatprep.subr.mxu0 0.0
  %428 = vmatpush2.msra.mxu0 0.0
  %429 = vmatprep.subr.mxu0 0.0
  %430 = vmatpush2.msra.mxu0 0.0
  %431 = vmatprep.subr.mxu0 0.0
  %432 = vmatpush2.msra.mxu0 0.0
  %433 = vmatprep.subr.mxu0 0.0
  %434 = vmatpush2.msra.mxu0 0.0
  %435 = vmatprep.subr.mxu0 0.0
  %436 = vmatpush2.msra.mxu0 0.0
  %437 = vmatprep.subr.mxu0 0.0
  %438 = vmatpush2.msra.mxu0 0.0
  %439 = vmatprep.subr.mxu0 0.0
  %440 = vmatpush2.msra.mxu0 0.0
  %441 = vmatprep.subr.mxu0 0.0
  %442 = vmatpush2.msra.mxu0 0.0
  %443 = vmatprep.subr.mxu0 0.0
  %444 = vmatpush2.msra.mxu0 0.0
  %445 = vmatprep.subr.mxu0 0.0
  %446 = vmatpush2.msra.mxu0 0.0
  %447 = vmatprep.mubr.f32.mxu0 0.0
  %448 = vmatmul.mubr.f32.gmra.mxu0 %v372
  %v449 = vpop.f32.mrf.mxu0
  %v450 = vadd.f32 %v368, %v449
  %v451 = vpop.f32.mrf.mxu0
  %452 = vmatprep.mubr.f32.mxu0 0.0
  %453 = vmatmul.mubr.f32.gmra.mxu0 %v375
  %v454 = vpop.f32.mrf.mxu0
  %v455 = vadd.f32 %v368, %v454
  %v456 = vpop.f32.mrf.mxu0
  %457 = vmatprep.mubr.f32.mxu0 0.0
  %458 = vmatmul.mubr.f32.gmra.mxu0 %v378
  %v459 = vpop.f32.mrf.mxu0
  %v460 = vadd.f32 %v368, %v459
  %v461 = vpop.f32.mrf.mxu0
  %462 = vmatprep.mubr.f32.mxu0 0.0
  %463 = vmatmul.mubr.f32.gmra.mxu0 %v381
  %v464 = vpop.f32.mrf.mxu0
  %v465 = vadd.f32 %v368, %v464
  %v466 = vpop.f32.mrf.mxu0
  %467 = vdwg.mxu0
  %v468 = vmax.f32 %v450, 0.0
  %v469 = vmax.f32 %v455, 0.0
  %v470 = vmax.f32 %v460, 0.0
  %v471 = vmax.f32 %v465, 0.0
  %v476 = vrot.slane %v468, 1
  %v477 = vrot.slane %v469, 1
  %v478 = vsel %vm181, %v476, %v477
  %v479 = vrot.slane %v470, 1
  %v480 = vsel %vm181, %v477, %v479
  %v481 = vrot.slane %v471, 1
  %v482 = vsel %vm181, %v479, %v481
  %v487 = vsel %vm181, %v481, 0.0
  %v488 = vmul.f32 %v478, %v197
  %v489 = vmul.f32 %v480, %v202
  %v490 = vmul.f32 %v482, %v207
  %v491 = vmul.f32 %v487, %v212
  %v492 = vrot.slane %v468, 4
  %v493 = vrot.slane %v469, 4
  %v494 = vsel %vm218, %v492, %v493
  %v495 = vrot.slane %v470, 4
  %v496 = vsel %vm218, %v493, %v495
  %v497 = vrot.slane %v471, 4
  %v498 = vsel %vm218, %v495, %v497
  %v503 = vsel %vm218, %v497, 0.0
  %v504 = vmul.f32 %v494, %v234
  %v505 = vmul.f32 %v496, %v239
  %v506 = vmul.f32 %v498, %v244
  %v507 = vmul.f32 %v503, %v249
  %v508 = vrot.slane %v468, 5
  %v509 = vrot.slane %v469, 5
  %v510 = vsel %vm255, %v508, %v509
  %v511 = vrot.slane %v470, 5
  %v512 = vsel %vm255, %v509, %v511
  %v513 = vrot.slane %v471, 5
  %v514 = vsel %vm255, %v511, %v513
  %v519 = vsel %vm255, %v513, 0.0
  %v520 = vmul.f32 %v510, %v271
  %v521 = vmul.f32 %v512, %v276
  %v522 = vmul.f32 %v514, %v281
  %v523 = vmul.f32 %v519, %v286
  %v524 = vld [vmem:[%s5] sm:$0xff]
  %v525 = vld [vmem:[%s5 + $0x8] sm:$0xff]
  %v526 = vld [vmem:[%s5 + $0x10] sm:$0xff]
  %v527 = vld [vmem:[%s5 + $0x18] sm:$0xff]
  %v528 = vld [vmem:[%s5 + $0x20] sm:$0xff]
  %v529 = vld [vmem:[%s5 + $0x28] sm:$0xff]
  %v530 = vld [vmem:[%s5 + $0x30] sm:$0xff]
  %v531 = vld [vmem:[%s5 + $0x38] sm:$0xff]
  %v532 = vld [vmem:[%s5 + $0x40] sm:$0xff]
  %v533 = vld [vmem:[%s5 + $0x48] sm:$0xff]
  %v534 = vld [vmem:[%s5 + $0x50] sm:$0xff]
  %v535 = vld [vmem:[%s5 + $0x58] sm:$0xff]
  %v536 = vld [vmem:[%s5 + $0x60] sm:$0xff]
  %v537 = vld [vmem:[%s5 + $0x68] sm:$0xff]
  %v538 = vld [vmem:[%s5 + $0x70] sm:$0xff]
  %v539 = vld [vmem:[%s5 + $0x78] sm:$0xff]
  %v540 = vld [vmem:[%s5 + $0x80] sm:$0xff]
  %v541 = vld [vmem:[%s5 + $0x88] sm:$0xff]
  %v542 = vld [vmem:[%s5 + $0x90] sm:$0xff]
  %v543 = vld [vmem:[%s5 + $0x98] sm:$0xff]
  %v544 = vld [vmem:[%s5 + $0xa0] sm:$0xff]
  %v545 = vld [vmem:[%s5 + $0xa8] sm:$0xff]
  %v546 = vld [vmem:[%s5 + $0xb0] sm:$0xff]
  %v547 = vld [vmem:[%s5 + $0xb8] sm:$0xff]
  %v548 = vld [vmem:[%s5 + $0xc0] sm:$0xff]
  %v549 = vld [vmem:[%s5 + $0xc8] sm:$0xff]
  %v550 = vld [vmem:[%s5 + $0xd0] sm:$0xff]
  %v551 = vld [vmem:[%s5 + $0xd8] sm:$0xff]
  %v552 = vld [vmem:[%s5 + $0xe0] sm:$0xff]
  %v553 = vld [vmem:[%s5 + $0xe8] sm:$0xff]
  %v554 = vld [vmem:[%s5 + $0xf0] sm:$0xff]
  %v555 = vld [vmem:[%s5 + $0xf8] sm:$0xff]
  %v556 = vld [vmem:[%s5 + $0x100] sm:$0xff]
  %v557 = vld [vmem:[%s5 + $0x108] sm:$0xff]
  %v558 = vld [vmem:[%s5 + $0x110] sm:$0xff]
  %v559 = vld [vmem:[%s5 + $0x118] sm:$0xff]
  %v560 = vld [vmem:[%s5 + $0x120] sm:$0xff]
  %v561 = vld [vmem:[%s5 + $0x128] sm:$0xff]
  %v562 = vld [vmem:[%s5 + $0x130] sm:$0xff]
  %v563 = vld [vmem:[%s5 + $0x138] sm:$0xff]
  %v564 = vld [vmem:[%s5 + $0x140] sm:$0xff]
  %v565 = vld [vmem:[%s5 + $0x148] sm:$0xff]
  %v566 = vld [vmem:[%s5 + $0x150] sm:$0xff]
  %v567 = vld [vmem:[%s5 + $0x158] sm:$0xff]
  %v568 = vld [vmem:[%s5 + $0x160] sm:$0xff]
  %v569 = vld [vmem:[%s5 + $0x168] sm:$0xff]
  %v570 = vld [vmem:[%s5 + $0x170] sm:$0xff]
  %v571 = vld [vmem:[%s5 + $0x178] sm:$0xff]
  %v572 = vld [vmem:[%s5 + $0x180] sm:$0xff]
  %v573 = vld [vmem:[%s5 + $0x188] sm:$0xff]
  %v574 = vld [vmem:[%s5 + $0x190] sm:$0xff]
  %v575 = vld [vmem:[%s5 + $0x198] sm:$0xff]
  %v576 = vld [vmem:[%s5 + $0x1a0] sm:$0xff]
  %v577 = vld [vmem:[%s5 + $0x1a8] sm:$0xff]
  %v578 = vld [vmem:[%s5 + $0x1b0] sm:$0xff]
  %v579 = vld [vmem:[%s5 + $0x1b8] sm:$0xff]
  %v580 = vld [vmem:[%s5 + $0x1c0] sm:$0xff]
  %v581 = vld [vmem:[%s5 + $0x1c8] sm:$0xff]
  %v582 = vld [vmem:[%s5 + $0x1d0] sm:$0xff]
  %v583 = vld [vmem:[%s5 + $0x1d8] sm:$0xff]
  %v584 = vld [vmem:[%s5 + $0x1e0] sm:$0xff]
  %v585 = vld [vmem:[%s5 + $0x1e8] sm:$0xff]
  %v586 = vld [vmem:[%s5 + $0x1f0] sm:$0xff]
  %v587 = vld [vmem:[%s5 + $0x1f8] sm:$0xff]
  %v588 = vld [vmem:[%s5 + $0x200] sm:$0xff]
  %v589 = vld [vmem:[%s5 + $0x208] sm:$0xff]
  %v590 = vld [vmem:[%s5 + $0x210] sm:$0xff]
  %v591 = vld [vmem:[%s5 + $0x218] sm:$0xff]
  %v592 = vld [vmem:[%s5 + $0x220] sm:$0xff]
  %v593 = vld [vmem:[%s5 + $0x228] sm:$0xff]
  %v594 = vld [vmem:[%s5 + $0x230] sm:$0xff]
  %v595 = vld [vmem:[%s5 + $0x238] sm:$0xff]
  %v596 = vld [vmem:[%s5 + $0x240] sm:$0xff]
  %v597 = vld [vmem:[%s5 + $0x248] sm:$0xff]
  %v598 = vld [vmem:[%s5 + $0x250] sm:$0xff]
  %v599 = vld [vmem:[%s5 + $0x258] sm:$0xff]
  %v600 = vld [vmem:[%s5 + $0x260] sm:$0xff]
  %v601 = vld [vmem:[%s5 + $0x268] sm:$0xff]
  %v602 = vld [vmem:[%s5 + $0x270] sm:$0xff]
  %v603 = vld [vmem:[%s5 + $0x278] sm:$0xff]
  %v604 = vld [vmem:[%s5 + $0x280] sm:$0xff]
  %v605 = vld [vmem:[%s5 + $0x288] sm:$0xff]
  %v606 = vld [vmem:[%s5 + $0x290] sm:$0xff]
  %v607 = vld [vmem:[%s5 + $0x298] sm:$0xff]
  %v608 = vld [vmem:[%s5 + $0x2a0] sm:$0xff]
  %v609 = vld [vmem:[%s5 + $0x2a8] sm:$0xff]
  %v610 = vld [vmem:[%s5 + $0x2b0] sm:$0xff]
  %v611 = vld [vmem:[%s5 + $0x2b8] sm:$0xff]
  %v612 = vld [vmem:[%s5 + $0x2c0] sm:$0xff]
  %v613 = vld [vmem:[%s5 + $0x2c8] sm:$0xff]
  %v614 = vld [vmem:[%s5 + $0x2d0] sm:$0xff]
  %v615 = vld [vmem:[%s5 + $0x2d8] sm:$0xff]
  %v616 = vld [vmem:[%s5 + $0x2e0] sm:$0xff]
  %v617 = vld [vmem:[%s5 + $0x2e8] sm:$0xff]
  %v618 = vld [vmem:[%s5 + $0x2f0] sm:$0xff]
  %v619 = vld [vmem:[%s5 + $0x2f8] sm:$0xff]
  %v620 = vld [vmem:[%s5 + $0x300] sm:$0xff]
  %v621 = vld [vmem:[%s5 + $0x308] sm:$0xff]
  %v622 = vld [vmem:[%s5 + $0x310] sm:$0xff]
  %v623 = vld [vmem:[%s5 + $0x318] sm:$0xff]
  %v624 = vld [vmem:[%s5 + $0x320] sm:$0xff]
  %v625 = vld [vmem:[%s5 + $0x328] sm:$0xff]
  %v626 = vld [vmem:[%s5 + $0x330] sm:$0xff]
  %v627 = vld [vmem:[%s5 + $0x338] sm:$0xff]
  %v628 = vld [vmem:[%s5 + $0x340] sm:$0xff]
  %v629 = vld [vmem:[%s5 + $0x348] sm:$0xff]
  %v630 = vld [vmem:[%s5 + $0x350] sm:$0xff]
  %v631 = vld [vmem:[%s5 + $0x358] sm:$0xff]
  %v632 = vld [vmem:[%s5 + $0x360] sm:$0xff]
  %v633 = vld [vmem:[%s5 + $0x368] sm:$0xff]
  %v634 = vld [vmem:[%s5 + $0x370] sm:$0xff]
  %v635 = vld [vmem:[%s5 + $0x378] sm:$0xff]
  %v636 = vld [vmem:[%s5 + $0x380] sm:$0xff]
  %v637 = vld [vmem:[%s5 + $0x388] sm:$0xff]
  %v638 = vld [vmem:[%s5 + $0x390] sm:$0xff]
  %v639 = vld [vmem:[%s5 + $0x398] sm:$0xff]
  %v640 = vld [vmem:[%s5 + $0x3a0] sm:$0xff]
  %v641 = vld [vmem:[%s5 + $0x3a8] sm:$0xff]
  %v642 = vld [vmem:[%s5 + $0x3b0] sm:$0xff]
  %v643 = vld [vmem:[%s5 + $0x3b8] sm:$0xff]
  %v644 = vld [vmem:[%s5 + $0x3c0] sm:$0xff]
  %v645 = vld [vmem:[%s5 + $0x3c8] sm:$0xff]
  %v646 = vld [vmem:[%s5 + $0x3d0] sm:$0xff]
  %v647 = vld [vmem:[%s5 + $0x3d8] sm:$0xff]
  %v648 = vld [vmem:[%s5 + $0x3e0] sm:$0xff]
  %v649 = vld [vmem:[%s5 + $0x3e8] sm:$0xff]
  %v650 = vld [vmem:[%s5 + $0x3f0] sm:$0xff]
  %v651 = vld [vmem:[%s5 + $0x3f8] sm:$0xff]
  %v652 = vld [vmem:[%s5 + $0x400] sm:$0xff]
  %v653 = vld [vmem:[%s5 + $0x408] sm:$0xff]
  %v654 = vld [vmem:[%s5 + $0x410] sm:$0xff]
  %v655 = vld [vmem:[%s5 + $0x418] sm:$0xff]
  %v656 = vld [vmem:[%s5 + $0x420] sm:$0xff]
  %v657 = vld [vmem:[%s5 + $0x428] sm:$0xff]
  %v658 = vld [vmem:[%s5 + $0x430] sm:$0xff]
  %v659 = vld [vmem:[%s5 + $0x438] sm:$0xff]
  %v660 = vld [vmem:[%s5 + $0x440] sm:$0xff]
  %v661 = vld [vmem:[%s5 + $0x448] sm:$0xff]
  %v662 = vld [vmem:[%s5 + $0x450] sm:$0xff]
  %v663 = vld [vmem:[%s5 + $0x458] sm:$0xff]
  %v664 = vld [vmem:[%s5 + $0x460] sm:$0xff]
  %v665 = vld [vmem:[%s5 + $0x468] sm:$0xff]
  %v666 = vld [vmem:[%s5 + $0x470] sm:$0xff]
  %v667 = vld [vmem:[%s5 + $0x478] sm:$0xff]
  %v668 = vld [vmem:[%s5 + $0x480] sm:$0xff]
  %v669 = vld [vmem:[%s5 + $0x488] sm:$0xff]
  %v670 = vld [vmem:[%s5 + $0x490] sm:$0xff]
  %v671 = vld [vmem:[%s5 + $0x498] sm:$0xff]
  %v672 = vld [vmem:[%s5 + $0x4a0] sm:$0xff]
  %v673 = vld [vmem:[%s5 + $0x4a8] sm:$0xff]
  %v674 = vld [vmem:[%s5 + $0x4b0] sm:$0xff]
  %v675 = vld [vmem:[%s5 + $0x4b8] sm:$0xff]
  %v676 = vld [vmem:[%s5 + $0x4c0] sm:$0xff]
  %v677 = vld [vmem:[%s5 + $0x4c8] sm:$0xff]
  %v678 = vld [vmem:[%s5 + $0x4d0] sm:$0xff]
  %v679 = vld [vmem:[%s5 + $0x4d8] sm:$0xff]
  %v680 = vld [vmem:[%s5 + $0x4e0] sm:$0xff]
  %v681 = vld [vmem:[%s5 + $0x4e8] sm:$0xff]
  %v682 = vld [vmem:[%s5 + $0x4f0] sm:$0xff]
  %v683 = vld [vmem:[%s5 + $0x4f8] sm:$0xff]
  %v684 = vld [vmem:[%s5 + $0x500] sm:$0xff]
  %v685 = vld [vmem:[%s5 + $0x508] sm:$0xff]
  %v686 = vld [vmem:[%s5 + $0x510] sm:$0xff]
  %v687 = vld [vmem:[%s5 + $0x518] sm:$0xff]
  %v688 = vld [vmem:[%s5 + $0x520] sm:$0xff]
  %v689 = vld [vmem:[%s5 + $0x528] sm:$0xff]
  %v690 = vld [vmem:[%s5 + $0x530] sm:$0xff]
  %v691 = vld [vmem:[%s5 + $0x538] sm:$0xff]
  %v692 = vld [vmem:[%s5 + $0x540] sm:$0xff]
  %v693 = vld [vmem:[%s5 + $0x548] sm:$0xff]
  %v694 = vld [vmem:[%s5 + $0x550] sm:$0xff]
  %v695 = vld [vmem:[%s5 + $0x558] sm:$0xff]
  %v696 = vld [vmem:[%s5 + $0x560] sm:$0xff]
  %v697 = vld [vmem:[%s5 + $0x568] sm:$0xff]
  %v698 = vld [vmem:[%s5 + $0x570] sm:$0xff]
  %v699 = vld [vmem:[%s5 + $0x578] sm:$0xff]
  %v700 = vld [vmem:[%s5 + $0x580] sm:$0xff]
  %v701 = vld [vmem:[%s5 + $0x588] sm:$0xff]
  %v702 = vld [vmem:[%s5 + $0x590] sm:$0xff]
  %v703 = vld [vmem:[%s5 + $0x598] sm:$0xff]
  %v704 = vld [vmem:[%s5 + $0x5a0] sm:$0xff]
  %v705 = vld [vmem:[%s5 + $0x5a8] sm:$0xff]
  %v706 = vld [vmem:[%s5 + $0x5b0] sm:$0xff]
  %v707 = vld [vmem:[%s5 + $0x5b8] sm:$0xff]
  %v708 = vld [vmem:[%s5 + $0x5c0] sm:$0xff]
  %v709 = vld [vmem:[%s5 + $0x5c8] sm:$0xff]
  %v710 = vld [vmem:[%s5 + $0x5d0] sm:$0xff]
  %v711 = vld [vmem:[%s5 + $0x5d8] sm:$0xff]
  %v712 = vld [vmem:[%s5 + $0x5e0] sm:$0xff]
  %v713 = vld [vmem:[%s5 + $0x5e8] sm:$0xff]
  %v714 = vld [vmem:[%s5 + $0x5f0] sm:$0xff]
  %v715 = vld [vmem:[%s5 + $0x5f8] sm:$0xff]
  %v716 = vld [vmem:[%s5 + $0x600] sm:$0xff]
  %v717 = vld [vmem:[%s5 + $0x608] sm:$0xff]
  %v718 = vld [vmem:[%s5 + $0x610] sm:$0xff]
  %v719 = vld [vmem:[%s5 + $0x618] sm:$0xff]
  %v720 = vld [vmem:[%s5 + $0x620] sm:$0xff]
  %v721 = vld [vmem:[%s5 + $0x628] sm:$0xff]
  %v722 = vld [vmem:[%s5 + $0x630] sm:$0xff]
  %v723 = vld [vmem:[%s5 + $0x638] sm:$0xff]
  %v724 = vld [vmem:[%s5 + $0x640] sm:$0xff]
  %v725 = vld [vmem:[%s5 + $0x648] sm:$0xff]
  %v726 = vld [vmem:[%s5 + $0x650] sm:$0xff]
  %v727 = vld [vmem:[%s5 + $0x658] sm:$0xff]
  %v728 = vld [vmem:[%s5 + $0x660] sm:$0xff]
  %v729 = vld [vmem:[%s5 + $0x668] sm:$0xff]
  %v730 = vld [vmem:[%s5 + $0x670] sm:$0xff]
  %v731 = vld [vmem:[%s5 + $0x678] sm:$0xff]
  %v732 = vld [vmem:[%s5 + $0x680] sm:$0xff]
  %v733 = vld [vmem:[%s5 + $0x688] sm:$0xff]
  %v734 = vld [vmem:[%s5 + $0x690] sm:$0xff]
  %v735 = vld [vmem:[%s5 + $0x698] sm:$0xff]
  %v736 = vld [vmem:[%s5 + $0x6a0] sm:$0xff]
  %v737 = vld [vmem:[%s5 + $0x6a8] sm:$0xff]
  %v738 = vld [vmem:[%s5 + $0x6b0] sm:$0xff]
  %v739 = vld [vmem:[%s5 + $0x6b8] sm:$0xff]
  %v740 = vld [vmem:[%s5 + $0x6c0] sm:$0xff]
  %v741 = vld [vmem:[%s5 + $0x6c8] sm:$0xff]
  %v742 = vld [vmem:[%s5 + $0x6d0] sm:$0xff]
  %v743 = vld [vmem:[%s5 + $0x6d8] sm:$0xff]
  %v744 = vld [vmem:[%s5 + $0x6e0] sm:$0xff]
  %v745 = vld [vmem:[%s5 + $0x6e8] sm:$0xff]
  %v746 = vld [vmem:[%s5 + $0x6f0] sm:$0xff]
  %v747 = vld [vmem:[%s5 + $0x6f8] sm:$0xff]
  %v748 = vld [vmem:[%s5 + $0x700] sm:$0xff]
  %v749 = vld [vmem:[%s5 + $0x708] sm:$0xff]
  %v750 = vld [vmem:[%s5 + $0x710] sm:$0xff]
  %v751 = vld [vmem:[%s5 + $0x718] sm:$0xff]
  %v752 = vld [vmem:[%s5 + $0x720] sm:$0xff]
  %v753 = vld [vmem:[%s5 + $0x728] sm:$0xff]
  %v754 = vld [vmem:[%s5 + $0x730] sm:$0xff]
  %v755 = vld [vmem:[%s5 + $0x738] sm:$0xff]
  %v756 = vld [vmem:[%s5 + $0x740] sm:$0xff]
  %v757 = vld [vmem:[%s5 + $0x748] sm:$0xff]
  %v758 = vld [vmem:[%s5 + $0x750] sm:$0xff]
  %v759 = vld [vmem:[%s5 + $0x758] sm:$0xff]
  %v760 = vld [vmem:[%s5 + $0x760] sm:$0xff]
  %v761 = vld [vmem:[%s5 + $0x768] sm:$0xff]
  %v762 = vld [vmem:[%s5 + $0x770] sm:$0xff]
  %v763 = vld [vmem:[%s5 + $0x778] sm:$0xff]
  %v764 = vld [vmem:[%s5 + $0x780] sm:$0xff]
  %v765 = vld [vmem:[%s5 + $0x788] sm:$0xff]
  %v766 = vld [vmem:[%s5 + $0x790] sm:$0xff]
  %v767 = vld [vmem:[%s5 + $0x798] sm:$0xff]
  %v768 = vld [vmem:[%s5 + $0x7a0] sm:$0xff]
  %v769 = vld [vmem:[%s5 + $0x7a8] sm:$0xff]
  %v770 = vld [vmem:[%s5 + $0x7b0] sm:$0xff]
  %v771 = vld [vmem:[%s5 + $0x7b8] sm:$0xff]
  %v772 = vld [vmem:[%s5 + $0x7c0] sm:$0xff]
  %v773 = vld [vmem:[%s5 + $0x7c8] sm:$0xff]
  %v774 = vld [vmem:[%s5 + $0x7d0] sm:$0xff]
  %v775 = vld [vmem:[%s5 + $0x7d8] sm:$0xff]
  %v776 = vld [vmem:[%s5 + $0x7e0] sm:$0xff]
  %v777 = vld [vmem:[%s5 + $0x7e8] sm:$0xff]
  %v778 = vld [vmem:[%s5 + $0x7f0] sm:$0xff]
  %v779 = vld [vmem:[%s5 + $0x7f8] sm:$0xff]
  %v780 = vld [vmem:[%s5 + $0x800] sm:$0xff]
  %v781 = vld [vmem:[%s5 + $0x808] sm:$0xff]
  %v782 = vld [vmem:[%s5 + $0x810] sm:$0xff]
  %v783 = vld [vmem:[%s5 + $0x818] sm:$0xff]
  %v784 = vld [vmem:[%s5 + $0x820] sm:$0xff]
  %v785 = vld [vmem:[%s5 + $0x828] sm:$0xff]
  %v786 = vld [vmem:[%s5 + $0x830] sm:$0xff]
  %v787 = vld [vmem:[%s5 + $0x838] sm:$0xff]
  %v788 = vld [vmem:[%s5 + $0x840] sm:$0xff]
  %v789 = vld [vmem:[%s5 + $0x848] sm:$0xff]
  %v790 = vld [vmem:[%s5 + $0x850] sm:$0xff]
  %v791 = vld [vmem:[%s5 + $0x858] sm:$0xff]
  %v792 = vld [vmem:[%s5 + $0x860] sm:$0xff]
  %v793 = vld [vmem:[%s5 + $0x868] sm:$0xff]
  %v794 = vld [vmem:[%s5 + $0x870] sm:$0xff]
  %v795 = vld [vmem:[%s5 + $0x878] sm:$0xff]
  %v796 = vld [vmem:[%s5 + $0x880] sm:$0xff]
  %v797 = vld [vmem:[%s5 + $0x888] sm:$0xff]
  %v798 = vld [vmem:[%s5 + $0x890] sm:$0xff]
  %v799 = vld [vmem:[%s5 + $0x898] sm:$0xff]
  %v800 = vld [vmem:[%s5 + $0x8a0] sm:$0xff]
  %v801 = vld [vmem:[%s5 + $0x8a8] sm:$0xff]
  %v802 = vld [vmem:[%s5 + $0x8b0] sm:$0xff]
  %v803 = vld [vmem:[%s5 + $0x8b8] sm:$0xff]
  %v804 = vld [vmem:[%s5 + $0x8c0] sm:$0xff]
  %v805 = vld [vmem:[%s5 + $0x8c8] sm:$0xff]
  %v806 = vld [vmem:[%s5 + $0x8d0] sm:$0xff]
  %v807 = vld [vmem:[%s5 + $0x8d8] sm:$0xff]
  %v808 = vld [vmem:[%s5 + $0x8e0] sm:$0xff]
  %v809 = vld [vmem:[%s5 + $0x8e8] sm:$0xff]
  %v810 = vld [vmem:[%s5 + $0x8f0] sm:$0xff]
  %v811 = vld [vmem:[%s5 + $0x8f8] sm:$0xff]
  %v812 = vld [vmem:[%s5 + $0x900] sm:$0xff]
  %v813 = vld [vmem:[%s5 + $0x908] sm:$0xff]
  %v814 = vld [vmem:[%s5 + $0x910] sm:$0xff]
  %v815 = vld [vmem:[%s5 + $0x918] sm:$0xff]
  %v816 = vld [vmem:[%s5 + $0x920] sm:$0xff]
  %v817 = vld [vmem:[%s5 + $0x928] sm:$0xff]
  %v818 = vld [vmem:[%s5 + $0x930] sm:$0xff]
  %v819 = vld [vmem:[%s5 + $0x938] sm:$0xff]
  %v820 = vld [vmem:[%s5 + $0x940] sm:$0xff]
  %v821 = vld [vmem:[%s5 + $0x948] sm:$0xff]
  %v822 = vld [vmem:[%s5 + $0x950] sm:$0xff]
  %v823 = vld [vmem:[%s5 + $0x958] sm:$0xff]
  %v824 = vld [vmem:[%s5 + $0x960] sm:$0xff]
  %v825 = vld [vmem:[%s5 + $0x968] sm:$0xff]
  %v826 = vld [vmem:[%s5 + $0x970] sm:$0xff]
  %v827 = vld [vmem:[%s5 + $0x978] sm:$0xff]
  %v828 = vld [vmem:[%s5 + $0x980] sm:$0xff]
  %v829 = vld [vmem:[%s5 + $0x988] sm:$0xff]
  %v830 = vld [vmem:[%s5 + $0x990] sm:$0xff]
  %v831 = vld [vmem:[%s5 + $0x998] sm:$0xff]
  %v832 = vld [vmem:[%s5 + $0x9a0] sm:$0xff]
  %v833 = vld [vmem:[%s5 + $0x9a8] sm:$0xff]
  %v834 = vld [vmem:[%s5 + $0x9b0] sm:$0xff]
  %v835 = vld [vmem:[%s5 + $0x9b8] sm:$0xff]
  %v836 = vld [vmem:[%s5 + $0x9c0] sm:$0xff]
  %v837 = vld [vmem:[%s5 + $0x9c8] sm:$0xff]
  %v838 = vld [vmem:[%s5 + $0x9d0] sm:$0xff]
  %v839 = vld [vmem:[%s5 + $0x9d8] sm:$0xff]
  %v840 = vld [vmem:[%s5 + $0x9e0] sm:$0xff]
  %v841 = vld [vmem:[%s5 + $0x9e8] sm:$0xff]
  %v842 = vld [vmem:[%s5 + $0x9f0] sm:$0xff]
  %v843 = vld [vmem:[%s5 + $0x9f8] sm:$0xff]
  %v844 = vld [vmem:[%s5 + $0xa00] sm:$0xff]
  %v845 = vld [vmem:[%s5 + $0xa08] sm:$0xff]
  %v846 = vld [vmem:[%s5 + $0xa10] sm:$0xff]
  %v847 = vld [vmem:[%s5 + $0xa18] sm:$0xff]
  %v848 = vld [vmem:[%s5 + $0xa20] sm:$0xff]
  %v849 = vld [vmem:[%s5 + $0xa28] sm:$0xff]
  %v850 = vld [vmem:[%s5 + $0xa30] sm:$0xff]
  %v851 = vld [vmem:[%s5 + $0xa38] sm:$0xff]
  %v852 = vld [vmem:[%s5 + $0xa40] sm:$0xff]
  %v853 = vld [vmem:[%s5 + $0xa48] sm:$0xff]
  %v854 = vld [vmem:[%s5 + $0xa50] sm:$0xff]
  %v855 = vld [vmem:[%s5 + $0xa58] sm:$0xff]
  %v856 = vld [vmem:[%s5 + $0xa60] sm:$0xff]
  %v857 = vld [vmem:[%s5 + $0xa68] sm:$0xff]
  %v858 = vld [vmem:[%s5 + $0xa70] sm:$0xff]
  %v859 = vld [vmem:[%s5 + $0xa78] sm:$0xff]
  %v860 = vld [vmem:[%s5 + $0xa80] sm:$0xff]
  %v861 = vld [vmem:[%s5 + $0xa88] sm:$0xff]
  %v862 = vld [vmem:[%s5 + $0xa90] sm:$0xff]
  %v863 = vld [vmem:[%s5 + $0xa98] sm:$0xff]
  %v864 = vld [vmem:[%s5 + $0xaa0] sm:$0xff]
  %v865 = vld [vmem:[%s5 + $0xaa8] sm:$0xff]
  %v866 = vld [vmem:[%s5 + $0xab0] sm:$0xff]
  %v867 = vld [vmem:[%s5 + $0xab8] sm:$0xff]
  %v868 = vld [vmem:[%s5 + $0xac0] sm:$0xff]
  %v869 = vld [vmem:[%s5 + $0xac8] sm:$0xff]
  %v870 = vld [vmem:[%s5 + $0xad0] sm:$0xff]
  %v871 = vld [vmem:[%s5 + $0xad8] sm:$0xff]
  %v872 = vld [vmem:[%s5 + $0xae0] sm:$0xff]
  %v873 = vld [vmem:[%s5 + $0xae8] sm:$0xff]
  %v874 = vld [vmem:[%s5 + $0xaf0] sm:$0xff]
  %v875 = vld [vmem:[%s5 + $0xaf8] sm:$0xff]
  %v876 = vld [vmem:[%s5 + $0xb00] sm:$0xff]
  %v877 = vld [vmem:[%s5 + $0xb08] sm:$0xff]
  %v878 = vld [vmem:[%s5 + $0xb10] sm:$0xff]
  %v879 = vld [vmem:[%s5 + $0xb18] sm:$0xff]
  %v880 = vld [vmem:[%s5 + $0xb20] sm:$0xff]
  %v881 = vld [vmem:[%s5 + $0xb28] sm:$0xff]
  %v882 = vld [vmem:[%s5 + $0xb30] sm:$0xff]
  %v883 = vld [vmem:[%s5 + $0xb38] sm:$0xff]
  %v884 = vld [vmem:[%s5 + $0xb40] sm:$0xff]
  %v885 = vld [vmem:[%s5 + $0xb48] sm:$0xff]
  %v886 = vld [vmem:[%s5 + $0xb50] sm:$0xff]
  %v887 = vld [vmem:[%s5 + $0xb58] sm:$0xff]
  %v888 = vld [vmem:[%s5 + $0xb60] sm:$0xff]
  %v889 = vld [vmem:[%s5 + $0xb68] sm:$0xff]
  %v890 = vld [vmem:[%s5 + $0xb70] sm:$0xff]
  %v891 = vld [vmem:[%s5 + $0xb78] sm:$0xff]
  %v892 = vld [vmem:[%s5 + $0xb80] sm:$0xff]
  %v893 = vld [vmem:[%s5 + $0xb88] sm:$0xff]
  %v894 = vld [vmem:[%s5 + $0xb90] sm:$0xff]
  %v895 = vld [vmem:[%s5 + $0xb98] sm:$0xff]
  %v896 = vld [vmem:[%s5 + $0xba0] sm:$0xff]
  %v897 = vld [vmem:[%s5 + $0xba8] sm:$0xff]
  %v898 = vld [vmem:[%s5 + $0xbb0] sm:$0xff]
  %v899 = vld [vmem:[%s5 + $0xbb8] sm:$0xff]
  %v900 = vld [vmem:[%s5 + $0xbc0] sm:$0xff]
  %v901 = vld [vmem:[%s5 + $0xbc8] sm:$0xff]
  %v902 = vld [vmem:[%s5 + $0xbd0] sm:$0xff]
  %v903 = vld [vmem:[%s5 + $0xbd8] sm:$0xff]
  %v904 = vld [vmem:[%s5 + $0xbe0] sm:$0xff]
  %v905 = vld [vmem:[%s5 + $0xbe8] sm:$0xff]
  %v906 = vld [vmem:[%s5 + $0xbf0] sm:$0xff]
  %v907 = vld [vmem:[%s5 + $0xbf8] sm:$0xff]
  %v908 = vld [vmem:[%s5 + $0xc00] sm:$0xff]
  %v909 = vld [vmem:[%s5 + $0xc08] sm:$0xff]
  %v910 = vld [vmem:[%s5 + $0xc10] sm:$0xff]
  %v911 = vld [vmem:[%s5 + $0xc18] sm:$0xff]
  %v912 = vld [vmem:[%s5 + $0xc20] sm:$0xff]
  %v913 = vld [vmem:[%s5 + $0xc28] sm:$0xff]
  %v914 = vld [vmem:[%s5 + $0xc30] sm:$0xff]
  %v915 = vld [vmem:[%s5 + $0xc38] sm:$0xff]
  %v916 = vld [vmem:[%s5 + $0xc40] sm:$0xff]
  %v917 = vld [vmem:[%s5 + $0xc48] sm:$0xff]
  %v918 = vld [vmem:[%s5 + $0xc50] sm:$0xff]
  %v919 = vld [vmem:[%s5 + $0xc58] sm:$0xff]
  %v920 = vld [vmem:[%s5 + $0xc60] sm:$0xff]
  %v921 = vld [vmem:[%s5 + $0xc68] sm:$0xff]
  %v922 = vld [vmem:[%s5 + $0xc70] sm:$0xff]
  %v923 = vld [vmem:[%s5 + $0xc78] sm:$0xff]
  %v924 = vld [vmem:[%s5 + $0xc80] sm:$0xff]
  %v925 = vld [vmem:[%s5 + $0xc88] sm:$0xff]
  %v926 = vld [vmem:[%s5 + $0xc90] sm:$0xff]
  %v927 = vld [vmem:[%s5 + $0xc98] sm:$0xff]
  %v928 = vld [vmem:[%s5 + $0xca0] sm:$0xff]
  %v929 = vld [vmem:[%s5 + $0xca8] sm:$0xff]
  %v930 = vld [vmem:[%s5 + $0xcb0] sm:$0xff]
  %v931 = vld [vmem:[%s5 + $0xcb8] sm:$0xff]
  %v932 = vld [vmem:[%s5 + $0xcc0] sm:$0xff]
  %v933 = vld [vmem:[%s5 + $0xcc8] sm:$0xff]
  %v934 = vld [vmem:[%s5 + $0xcd0] sm:$0xff]
  %v935 = vld [vmem:[%s5 + $0xcd8] sm:$0xff]
  %v936 = vld [vmem:[%s5 + $0xce0] sm:$0xff]
  %v937 = vld [vmem:[%s5 + $0xce8] sm:$0xff]
  %v938 = vld [vmem:[%s5 + $0xcf0] sm:$0xff]
  %v939 = vld [vmem:[%s5 + $0xcf8] sm:$0xff]
  %v940 = vld [vmem:[%s5 + $0xd00] sm:$0xff]
  %v941 = vld [vmem:[%s5 + $0xd08] sm:$0xff]
  %v942 = vld [vmem:[%s5 + $0xd10] sm:$0xff]
  %v943 = vld [vmem:[%s5 + $0xd18] sm:$0xff]
  %v944 = vld [vmem:[%s5 + $0xd20] sm:$0xff]
  %v945 = vld [vmem:[%s5 + $0xd28] sm:$0xff]
  %v946 = vld [vmem:[%s5 + $0xd30] sm:$0xff]
  %v947 = vld [vmem:[%s5 + $0xd38] sm:$0xff]
  %v948 = vld [vmem:[%s5 + $0xd40] sm:$0xff]
  %v949 = vld [vmem:[%s5 + $0xd48] sm:$0xff]
  %v950 = vld [vmem:[%s5 + $0xd50] sm:$0xff]
  %v951 = vld [vmem:[%s5 + $0xd58] sm:$0xff]
  %v952 = vld [vmem:[%s5 + $0xd60] sm:$0xff]
  %v953 = vld [vmem:[%s5 + $0xd68] sm:$0xff]
  %v954 = vld [vmem:[%s5 + $0xd70] sm:$0xff]
  %v955 = vld [vmem:[%s5 + $0xd78] sm:$0xff]
  %v956 = vld [vmem:[%s5 + $0xd80] sm:$0xff]
  %v957 = vld [vmem:[%s5 + $0xd88] sm:$0xff]
  %v958 = vld [vmem:[%s5 + $0xd90] sm:$0xff]
  %v959 = vld [vmem:[%s5 + $0xd98] sm:$0xff]
  %v960 = vld [vmem:[%s5 + $0xda0] sm:$0xff]
  %v961 = vld [vmem:[%s5 + $0xda8] sm:$0xff]
  %v962 = vld [vmem:[%s5 + $0xdb0] sm:$0xff]
  %v963 = vld [vmem:[%s5 + $0xdb8] sm:$0xff]
  %v964 = vld [vmem:[%s5 + $0xdc0] sm:$0xff]
  %v965 = vld [vmem:[%s5 + $0xdc8] sm:$0xff]
  %v966 = vld [vmem:[%s5 + $0xdd0] sm:$0xff]
  %v967 = vld [vmem:[%s5 + $0xdd8] sm:$0xff]
  %v968 = vld [vmem:[%s5 + $0xde0] sm:$0xff]
  %v969 = vld [vmem:[%s5 + $0xde8] sm:$0xff]
  %v970 = vld [vmem:[%s5 + $0xdf0] sm:$0xff]
  %v971 = vld [vmem:[%s5 + $0xdf8] sm:$0xff]
  %v972 = vld [vmem:[%s5 + $0xe00] sm:$0xff]
  %v973 = vld [vmem:[%s5 + $0xe08] sm:$0xff]
  %v974 = vld [vmem:[%s5 + $0xe10] sm:$0xff]
  %v975 = vld [vmem:[%s5 + $0xe18] sm:$0xff]
  %v976 = vld [vmem:[%s5 + $0xe20] sm:$0xff]
  %v977 = vld [vmem:[%s5 + $0xe28] sm:$0xff]
  %v978 = vld [vmem:[%s5 + $0xe30] sm:$0xff]
  %v979 = vld [vmem:[%s5 + $0xe38] sm:$0xff]
  %v980 = vld [vmem:[%s5 + $0xe40] sm:$0xff]
  %v981 = vld [vmem:[%s5 + $0xe48] sm:$0xff]
  %v982 = vld [vmem:[%s5 + $0xe50] sm:$0xff]
  %v983 = vld [vmem:[%s5 + $0xe58] sm:$0xff]
  %v984 = vld [vmem:[%s5 + $0xe60] sm:$0xff]
  %v985 = vld [vmem:[%s5 + $0xe68] sm:$0xff]
  %v986 = vld [vmem:[%s5 + $0xe70] sm:$0xff]
  %v987 = vld [vmem:[%s5 + $0xe78] sm:$0xff]
  %v988 = vld [vmem:[%s5 + $0xe80] sm:$0xff]
  %v989 = vld [vmem:[%s5 + $0xe88] sm:$0xff]
  %v990 = vld [vmem:[%s5 + $0xe90] sm:$0xff]
  %v991 = vld [vmem:[%s5 + $0xe98] sm:$0xff]
  %v992 = vld [vmem:[%s5 + $0xea0] sm:$0xff]
  %v993 = vld [vmem:[%s5 + $0xea8] sm:$0xff]
  %v994 = vld [vmem:[%s5 + $0xeb0] sm:$0xff]
  %v995 = vld [vmem:[%s5 + $0xeb8] sm:$0xff]
  %v996 = vld [vmem:[%s5 + $0xec0] sm:$0xff]
  %v997 = vld [vmem:[%s5 + $0xec8] sm:$0xff]
  %v998 = vld [vmem:[%s5 + $0xed0] sm:$0xff]
  %v999 = vld [vmem:[%s5 + $0xed8] sm:$0xff]
  %v1000 = vld [vmem:[%s5 + $0xee0] sm:$0xff]
  %v1001 = vld [vmem:[%s5 + $0xee8] sm:$0xff]
  %v1002 = vld [vmem:[%s5 + $0xef0] sm:$0xff]
  %v1003 = vld [vmem:[%s5 + $0xef8] sm:$0xff]
  %v1004 = vld [vmem:[%s5 + $0xf00] sm:$0xff]
  %v1005 = vld [vmem:[%s5 + $0xf08] sm:$0xff]
  %v1006 = vld [vmem:[%s5 + $0xf10] sm:$0xff]
  %v1007 = vld [vmem:[%s5 + $0xf18] sm:$0xff]
  %v1008 = vld [vmem:[%s5 + $0xf20] sm:$0xff]
  %v1009 = vld [vmem:[%s5 + $0xf28] sm:$0xff]
  %v1010 = vld [vmem:[%s5 + $0xf30] sm:$0xff]
  %v1011 = vld [vmem:[%s5 + $0xf38] sm:$0xff]
  %v1012 = vld [vmem:[%s5 + $0xf40] sm:$0xff]
  %v1013 = vld [vmem:[%s5 + $0xf48] sm:$0xff]
  %v1014 = vld [vmem:[%s5 + $0xf50] sm:$0xff]
  %v1015 = vld [vmem:[%s5 + $0xf58] sm:$0xff]
  %v1016 = vld [vmem:[%s5 + $0xf60] sm:$0xff]
  %v1017 = vld [vmem:[%s5 + $0xf68] sm:$0xff]
  %v1018 = vld [vmem:[%s5 + $0xf70] sm:$0xff]
  %v1019 = vld [vmem:[%s5 + $0xf78] sm:$0xff]
  %v1020 = vld [vmem:[%s5 + $0xf80] sm:$0xff]
  %v1021 = vld [vmem:[%s5 + $0xf88] sm:$0xff]
  %v1022 = vld [vmem:[%s5 + $0xf90] sm:$0xff]
  %v1023 = vld [vmem:[%s5 + $0xf98] sm:$0xff]
  %v1024 = vld [vmem:[%s5 + $0xfa0] sm:$0xff]
  %v1025 = vld [vmem:[%s5 + $0xfa8] sm:$0xff]
  %v1026 = vld [vmem:[%s5 + $0xfb0] sm:$0xff]
  %v1027 = vld [vmem:[%s5 + $0xfb8] sm:$0xff]
  %v1028 = vld [vmem:[%s5 + $0xfc0] sm:$0xff]
  %v1029 = vld [vmem:[%s5 + $0xfc8] sm:$0xff]
  %v1030 = vld [vmem:[%s5 + $0xfd0] sm:$0xff]
  %v1031 = vld [vmem:[%s5 + $0xfd8] sm:$0xff]
  %v1032 = vld [vmem:[%s5 + $0xfe0] sm:$0xff]
  %v1033 = vld [vmem:[%s5 + $0xfe8] sm:$0xff]
  %v1034 = vld [vmem:[%s5 + $0xff0] sm:$0xff]
  %v1035 = vld [vmem:[%s5 + $0xff8] sm:$0xff]
  %v1036 = vld [vmem:[%s6] sm:$0xff]
  %v1038 = vlaneseq
  %v1039 = vshrl.u32 %v1038, 7
  %v1040 = vsub.s32 0, %v1039
  %v1041 = vrot.slane %v1036, %v1040
  %v1042 = vlaneseq
  %v1043 = vshrl.u32 %v1042, 7
  %v1044 = vsub.s32 1, %v1043
  %v1045 = vrot.slane %v1036, %v1044
  %v1046 = vlaneseq
  %v1047 = vshrl.u32 %v1046, 7
  %v1048 = vsub.s32 2, %v1047
  %v1049 = vrot.slane %v1036, %v1048
  %v1050 = vlaneseq
  %v1051 = vshrl.u32 %v1050, 7
  %v1052 = vsub.s32 3, %v1051
  %v1053 = vrot.slane %v1036, %v1052
  %v1054 = vlaneseq
  %v1055 = vshrl.u32 %v1054, 7
  %v1056 = vsub.s32 4, %v1055
  %v1057 = vrot.slane %v1036, %v1056
  %v1058 = vlaneseq
  %v1059 = vshrl.u32 %v1058, 7
  %v1060 = vsub.s32 5, %v1059
  %v1061 = vrot.slane %v1036, %v1060
  %v1062 = vlaneseq
  %v1063 = vshrl.u32 %v1062, 7
  %v1064 = vsub.s32 6, %v1063
  %v1065 = vrot.slane %v1036, %v1064
  %v1066 = vlaneseq
  %v1067 = vshrl.u32 %v1066, 7
  %v1068 = vsub.s32 7, %v1067
  %v1069 = vrot.slane %v1036, %v1068
  %1078 = vmatprep.subr.mxu0 %v645
  %1079 = vmatpush1.msra.mxu0 %v644
  %1080 = vmatprep.subr.mxu0 %v637
  %1081 = vmatpush1.msra.mxu0 %v636
  %1082 = vmatprep.subr.mxu0 %v629
  %1083 = vmatpush1.msra.mxu0 %v628
  %1084 = vmatprep.subr.mxu0 %v621
  %1085 = vmatpush1.msra.mxu0 %v620
  %1086 = vmatprep.subr.mxu0 %v613
  %1087 = vmatpush1.msra.mxu0 %v612
  %1088 = vmatprep.subr.mxu0 %v605
  %1089 = vmatpush1.msra.mxu0 %v604
  %1090 = vmatprep.subr.mxu0 %v597
  %1091 = vmatpush1.msra.mxu0 %v596
  %1092 = vmatprep.subr.mxu0 %v589
  %1093 = vmatpush1.msra.mxu0 %v588
  %1094 = vmatprep.subr.mxu0 %v581
  %1095 = vmatpush1.msra.mxu0 %v580
  %1096 = vmatprep.subr.mxu0 %v573
  %1097 = vmatpush1.msra.mxu0 %v572
  %1098 = vmatprep.subr.mxu0 %v565
  %1099 = vmatpush1.msra.mxu0 %v564
  %1100 = vmatprep.subr.mxu0 %v557
  %1101 = vmatpush1.msra.mxu0 %v556
  %1102 = vmatprep.subr.mxu0 %v549
  %1103 = vmatpush1.msra.mxu0 %v548
  %1104 = vmatprep.subr.mxu0 %v541
  %1105 = vmatpush1.msra.mxu0 %v540
  %1106 = vmatprep.subr.mxu0 %v533
  %1107 = vmatpush1.msra.mxu0 %v532
  %1108 = vmatprep.subr.mxu0 %v525
  %1109 = vmatpush1.msra.mxu0 %v524
  %1110 = vmatprep.subr.mxu0 %v773
  %1111 = vmatpush2.msra.mxu0 %v772
  %1112 = vmatprep.subr.mxu0 %v765
  %1113 = vmatpush2.msra.mxu0 %v764
  %1114 = vmatprep.subr.mxu0 %v757
  %1115 = vmatpush2.msra.mxu0 %v756
  %1116 = vmatprep.subr.mxu0 %v749
  %1117 = vmatpush2.msra.mxu0 %v748
  %1118 = vmatprep.subr.mxu0 %v741
  %1119 = vmatpush2.msra.mxu0 %v740
  %1120 = vmatprep.subr.mxu0 %v733
  %1121 = vmatpush2.msra.mxu0 %v732
  %1122 = vmatprep.subr.mxu0 %v725
  %1123 = vmatpush2.msra.mxu0 %v724
  %1124 = vmatprep.subr.mxu0 %v717
  %1125 = vmatpush2.msra.mxu0 %v716
  %1126 = vmatprep.subr.mxu0 %v709
  %1127 = vmatpush2.msra.mxu0 %v708
  %1128 = vmatprep.subr.mxu0 %v701
  %1129 = vmatpush2.msra.mxu0 %v700
  %1130 = vmatprep.subr.mxu0 %v693
  %1131 = vmatpush2.msra.mxu0 %v692
  %1132 = vmatprep.subr.mxu0 %v685
  %1133 = vmatpush2.msra.mxu0 %v684
  %1134 = vmatprep.subr.mxu0 %v677
  %1135 = vmatpush2.msra.mxu0 %v676
  %1136 = vmatprep.subr.mxu0 %v669
  %1137 = vmatpush2.msra.mxu0 %v668
  %1138 = vmatprep.subr.mxu0 %v661
  %1139 = vmatpush2.msra.mxu0 %v660
  %1140 = vmatprep.subr.mxu0 %v653
  %1141 = vmatpush2.msra.mxu0 %v652
  %1142 = vmatprep.mubr.f32.mxu0 %v488
  %1143 = vmatmul.mubr.f32.gmra.mxu0 %v468
  %v1144 = vpop.f32.mrf.mxu0
  %v1145 = vadd.f32 %v1041, %v1144
  %v1146 = vpop.f32.mrf.mxu0
  %v1147 = vadd.f32 %v1045, %v1146
  %1148 = vmatprep.mubr.f32.mxu0 %v489
  %1149 = vmatmul.mubr.f32.gmra.mxu0 %v469
  %v1150 = vpop.f32.mrf.mxu0
  %v1151 = vadd.f32 %v1041, %v1150
  %v1152 = vpop.f32.mrf.mxu0
  %v1153 = vadd.f32 %v1045, %v1152
  %1154 = vmatprep.mubr.f32.mxu0 %v490
  %1155 = vmatmul.mubr.f32.gmra.mxu0 %v470
  %v1156 = vpop.f32.mrf.mxu0
  %v1157 = vadd.f32 %v1041, %v1156
  %v1158 = vpop.f32.mrf.mxu0
  %v1159 = vadd.f32 %v1045, %v1158
  %1160 = vmatprep.mubr.f32.mxu0 %v491
  %1161 = vmatmul.mubr.f32.gmra.mxu0 %v471
  %v1162 = vpop.f32.mrf.mxu0
  %v1163 = vadd.f32 %v1041, %v1162
  %v1164 = vpop.f32.mrf.mxu0
  %v1165 = vadd.f32 %v1045, %v1164
  %1166 = vdwg.mxu0
  %1167 = vmatprep.subr.mxu0 %v901
  %1168 = vmatpush1.msra.mxu0 %v900
  %1169 = vmatprep.subr.mxu0 %v893
  %1170 = vmatpush1.msra.mxu0 %v892
  %1171 = vmatprep.subr.mxu0 %v885
  %1172 = vmatpush1.msra.mxu0 %v884
  %1173 = vmatprep.subr.mxu0 %v877
  %1174 = vmatpush1.msra.mxu0 %v876
  %1175 = vmatprep.subr.mxu0 %v869
  %1176 = vmatpush1.msra.mxu0 %v868
  %1177 = vmatprep.subr.mxu0 %v861
  %1178 = vmatpush1.msra.mxu0 %v860
  %1179 = vmatprep.subr.mxu0 %v853
  %1180 = vmatpush1.msra.mxu0 %v852
  %1181 = vmatprep.subr.mxu0 %v845
  %1182 = vmatpush1.msra.mxu0 %v844
  %1183 = vmatprep.subr.mxu0 %v837
  %1184 = vmatpush1.msra.mxu0 %v836
  %1185 = vmatprep.subr.mxu0 %v829
  %1186 = vmatpush1.msra.mxu0 %v828
  %1187 = vmatprep.subr.mxu0 %v821
  %1188 = vmatpush1.msra.mxu0 %v820
  %1189 = vmatprep.subr.mxu0 %v813
  %1190 = vmatpush1.msra.mxu0 %v812
  %1191 = vmatprep.subr.mxu0 %v805
  %1192 = vmatpush1.msra.mxu0 %v804
  %1193 = vmatprep.subr.mxu0 %v797
  %1194 = vmatpush1.msra.mxu0 %v796
  %1195 = vmatprep.subr.mxu0 %v789
  %1196 = vmatpush1.msra.mxu0 %v788
  %1197 = vmatprep.subr.mxu0 %v781
  %1198 = vmatpush1.msra.mxu0 %v780
  %1199 = vmatprep.subr.mxu0 %v1029
  %1200 = vmatpush2.msra.mxu0 %v1028
  %1201 = vmatprep.subr.mxu0 %v1021
  %1202 = vmatpush2.msra.mxu0 %v1020
  %1203 = vmatprep.subr.mxu0 %v1013
  %1204 = vmatpush2.msra.mxu0 %v1012
  %1205 = vmatprep.subr.mxu0 %v1005
  %1206 = vmatpush2.msra.mxu0 %v1004
  %1207 = vmatprep.subr.mxu0 %v997
  %1208 = vmatpush2.msra.mxu0 %v996
  %1209 = vmatprep.subr.mxu0 %v989
  %1210 = vmatpush2.msra.mxu0 %v988
  %1211 = vmatprep.subr.mxu0 %v981
  %1212 = vmatpush2.msra.mxu0 %v980
  %1213 = vmatprep.subr.mxu0 %v973
  %1214 = vmatpush2.msra.mxu0 %v972
  %1215 = vmatprep.subr.mxu0 %v965
  %1216 = vmatpush2.msra.mxu0 %v964
  %1217 = vmatprep.subr.mxu0 %v957
  %1218 = vmatpush2.msra.mxu0 %v956
  %1219 = vmatprep.subr.mxu0 %v949
  %1220 = vmatpush2.msra.mxu0 %v948
  %1221 = vmatprep.subr.mxu0 %v941
  %1222 = vmatpush2.msra.mxu0 %v940
  %1223 = vmatprep.subr.mxu0 %v933
  %1224 = vmatpush2.msra.mxu0 %v932
  %1225 = vmatprep.subr.mxu0 %v925
  %1226 = vmatpush2.msra.mxu0 %v924
  %1227 = vmatprep.subr.mxu0 %v917
  %1228 = vmatpush2.msra.mxu0 %v916
  %1229 = vmatprep.subr.mxu0 %v909
  %1230 = vmatpush2.msra.mxu0 %v908
  %1231 = vmatprep.mubr.f32.mxu0 %v520
  %1232 = vmatmul.mubr.f32.gmra.mxu0 %v504
  %v1233 = vpop.f32.mrf.mxu0
  %v1234 = vadd.f32 %v1145, %v1233
  %v1235 = vpop.f32.mrf.mxu0
  %v1236 = vadd.f32 %v1147, %v1235
  %1237 = vmatprep.mubr.f32.mxu0 %v521
  %1238 = vmatmul.mubr.f32.gmra.mxu0 %v505
  %v1239 = vpop.f32.mrf.mxu0
  %v1240 = vadd.f32 %v1151, %v1239
  %v1241 = vpop.f32.mrf.mxu0
  %v1242 = vadd.f32 %v1153, %v1241
  %1243 = vmatprep.mubr.f32.mxu0 %v522
  %1244 = vmatmul.mubr.f32.gmra.mxu0 %v506
  %v1245 = vpop.f32.mrf.mxu0
  %v1246 = vadd.f32 %v1157, %v1245
  %v1247 = vpop.f32.mrf.mxu0
  %v1248 = vadd.f32 %v1159, %v1247
  %1249 = vmatprep.mubr.f32.mxu0 %v523
  %1250 = vmatmul.mubr.f32.gmra.mxu0 %v507
  %v1251 = vpop.f32.mrf.mxu0
  %v1252 = vadd.f32 %v1163, %v1251
  %v1253 = vpop.f32.mrf.mxu0
  %v1254 = vadd.f32 %v1165, %v1253
  %1255 = vdwg.mxu0
  %1256 = vmatprep.subr.mxu0 %v647
  %1257 = vmatpush1.msra.mxu0 %v646
  %1258 = vmatprep.subr.mxu0 %v639
  %1259 = vmatpush1.msra.mxu0 %v638
  %1260 = vmatprep.subr.mxu0 %v631
  %1261 = vmatpush1.msra.mxu0 %v630
  %1262 = vmatprep.subr.mxu0 %v623
  %1263 = vmatpush1.msra.mxu0 %v622
  %1264 = vmatprep.subr.mxu0 %v615
  %1265 = vmatpush1.msra.mxu0 %v614
  %1266 = vmatprep.subr.mxu0 %v607
  %1267 = vmatpush1.msra.mxu0 %v606
  %1268 = vmatprep.subr.mxu0 %v599
  %1269 = vmatpush1.msra.mxu0 %v598
  %1270 = vmatprep.subr.mxu0 %v591
  %1271 = vmatpush1.msra.mxu0 %v590
  %1272 = vmatprep.subr.mxu0 %v583
  %1273 = vmatpush1.msra.mxu0 %v582
  %1274 = vmatprep.subr.mxu0 %v575
  %1275 = vmatpush1.msra.mxu0 %v574
  %1276 = vmatprep.subr.mxu0 %v567
  %1277 = vmatpush1.msra.mxu0 %v566
  %1278 = vmatprep.subr.mxu0 %v559
  %1279 = vmatpush1.msra.mxu0 %v558
  %1280 = vmatprep.subr.mxu0 %v551
  %1281 = vmatpush1.msra.mxu0 %v550
  %1282 = vmatprep.subr.mxu0 %v543
  %1283 = vmatpush1.msra.mxu0 %v542
  %1284 = vmatprep.subr.mxu0 %v535
  %1285 = vmatpush1.msra.mxu0 %v534
  %1286 = vmatprep.subr.mxu0 %v527
  %1287 = vmatpush1.msra.mxu0 %v526
  %1288 = vmatprep.subr.mxu0 %v775
  %1289 = vmatpush2.msra.mxu0 %v774
  %1290 = vmatprep.subr.mxu0 %v767
  %1291 = vmatpush2.msra.mxu0 %v766
  %1292 = vmatprep.subr.mxu0 %v759
  %1293 = vmatpush2.msra.mxu0 %v758
  %1294 = vmatprep.subr.mxu0 %v751
  %1295 = vmatpush2.msra.mxu0 %v750
  %1296 = vmatprep.subr.mxu0 %v743
  %1297 = vmatpush2.msra.mxu0 %v742
  %1298 = vmatprep.subr.mxu0 %v735
  %1299 = vmatpush2.msra.mxu0 %v734
  %1300 = vmatprep.subr.mxu0 %v727
  %1301 = vmatpush2.msra.mxu0 %v726
  %1302 = vmatprep.subr.mxu0 %v719
  %1303 = vmatpush2.msra.mxu0 %v718
  %1304 = vmatprep.subr.mxu0 %v711
  %1305 = vmatpush2.msra.mxu0 %v710
  %1306 = vmatprep.subr.mxu0 %v703
  %1307 = vmatpush2.msra.mxu0 %v702
  %1308 = vmatprep.subr.mxu0 %v695
  %1309 = vmatpush2.msra.mxu0 %v694
  %1310 = vmatprep.subr.mxu0 %v687
  %1311 = vmatpush2.msra.mxu0 %v686
  %1312 = vmatprep.subr.mxu0 %v679
  %1313 = vmatpush2.msra.mxu0 %v678
  %1314 = vmatprep.subr.mxu0 %v671
  %1315 = vmatpush2.msra.mxu0 %v670
  %1316 = vmatprep.subr.mxu0 %v663
  %1317 = vmatpush2.msra.mxu0 %v662
  %1318 = vmatprep.subr.mxu0 %v655
  %1319 = vmatpush2.msra.mxu0 %v654
  %1320 = vmatprep.mubr.f32.mxu0 %v488
  %1321 = vmatmul.mubr.f32.gmra.mxu0 %v468
  %v1322 = vpop.f32.mrf.mxu0
  %v1323 = vadd.f32 %v1049, %v1322
  %v1324 = vpop.f32.mrf.mxu0
  %v1325 = vadd.f32 %v1053, %v1324
  %1326 = vmatprep.mubr.f32.mxu0 %v489
  %1327 = vmatmul.mubr.f32.gmra.mxu0 %v469
  %v1328 = vpop.f32.mrf.mxu0
  %v1329 = vadd.f32 %v1049, %v1328
  %v1330 = vpop.f32.mrf.mxu0
  %v1331 = vadd.f32 %v1053, %v1330
  %1332 = vmatprep.mubr.f32.mxu0 %v490
  %1333 = vmatmul.mubr.f32.gmra.mxu0 %v470
  %v1334 = vpop.f32.mrf.mxu0
  %v1335 = vadd.f32 %v1049, %v1334
  %v1336 = vpop.f32.mrf.mxu0
  %v1337 = vadd.f32 %v1053, %v1336
  %1338 = vmatprep.mubr.f32.mxu0 %v491
  %1339 = vmatmul.mubr.f32.gmra.mxu0 %v471
  %v1340 = vpop.f32.mrf.mxu0
  %v1341 = vadd.f32 %v1049, %v1340
  %v1342 = vpop.f32.mrf.mxu0
  %v1343 = vadd.f32 %v1053, %v1342
  %1344 = vdwg.mxu0
  %1345 = vmatprep.subr.mxu0 %v903
  %1346 = vmatpush1.msra.mxu0 %v902
  %1347 = vmatprep.subr.mxu0 %v895
  %1348 = vmatpush1.msra.mxu0 %v894
  %1349 = vmatprep.subr.mxu0 %v887
  %1350 = vmatpush1.msra.mxu0 %v886
  %1351 = vmatprep.subr.mxu0 %v879
  %1352 = vmatpush1.msra.mxu0 %v878
  %1353 = vmatprep.subr.mxu0 %v871
  %1354 = vmatpush1.msra.mxu0 %v870
  %1355 = vmatprep.subr.mxu0 %v863
  %1356 = vmatpush1.msra.mxu0 %v862
  %1357 = vmatprep.subr.mxu0 %v855
  %1358 = vmatpush1.msra.mxu0 %v854
  %1359 = vmatprep.subr.mxu0 %v847
  %1360 = vmatpush1.msra.mxu0 %v846
  %1361 = vmatprep.subr.mxu0 %v839
  %1362 = vmatpush1.msra.mxu0 %v838
  %1363 = vmatprep.subr.mxu0 %v831
  %1364 = vmatpush1.msra.mxu0 %v830
  %1365 = vmatprep.subr.mxu0 %v823
  %1366 = vmatpush1.msra.mxu0 %v822
  %1367 = vmatprep.subr.mxu0 %v815
  %1368 = vmatpush1.msra.mxu0 %v814
  %1369 = vmatprep.subr.mxu0 %v807
  %1370 = vmatpush1.msra.mxu0 %v806
  %1371 = vmatprep.subr.mxu0 %v799
  %1372 = vmatpush1.msra.mxu0 %v798
  %1373 = vmatprep.subr.mxu0 %v791
  %1374 = vmatpush1.msra.mxu0 %v790
  %1375 = vmatprep.subr.mxu0 %v783
  %1376 = vmatpush1.msra.mxu0 %v782
  %1377 = vmatprep.subr.mxu0 %v1031
  %1378 = vmatpush2.msra.mxu0 %v1030
  %1379 = vmatprep.subr.mxu0 %v1023
  %1380 = vmatpush2.msra.mxu0 %v1022
  %1381 = vmatprep.subr.mxu0 %v1015
  %1382 = vmatpush2.msra.mxu0 %v1014
  %1383 = vmatprep.subr.mxu0 %v1007
  %1384 = vmatpush2.msra.mxu0 %v1006
  %1385 = vmatprep.subr.mxu0 %v999
  %1386 = vmatpush2.msra.mxu0 %v998
  %1387 = vmatprep.subr.mxu0 %v991
  %1388 = vmatpush2.msra.mxu0 %v990
  %1389 = vmatprep.subr.mxu0 %v983
  %1390 = vmatpush2.msra.mxu0 %v982
  %1391 = vmatprep.subr.mxu0 %v975
  %1392 = vmatpush2.msra.mxu0 %v974
  %1393 = vmatprep.subr.mxu0 %v967
  %1394 = vmatpush2.msra.mxu0 %v966
  %1395 = vmatprep.subr.mxu0 %v959
  %1396 = vmatpush2.msra.mxu0 %v958
  %1397 = vmatprep.subr.mxu0 %v951
  %1398 = vmatpush2.msra.mxu0 %v950
  %1399 = vmatprep.subr.mxu0 %v943
  %1400 = vmatpush2.msra.mxu0 %v942
  %1401 = vmatprep.subr.mxu0 %v935
  %1402 = vmatpush2.msra.mxu0 %v934
  %1403 = vmatprep.subr.mxu0 %v927
  %1404 = vmatpush2.msra.mxu0 %v926
  %1405 = vmatprep.subr.mxu0 %v919
  %1406 = vmatpush2.msra.mxu0 %v918
  %1407 = vmatprep.subr.mxu0 %v911
  %1408 = vmatpush2.msra.mxu0 %v910
  %1409 = vmatprep.mubr.f32.mxu0 %v520
  %1410 = vmatmul.mubr.f32.gmra.mxu0 %v504
  %v1411 = vpop.f32.mrf.mxu0
  %v1412 = vadd.f32 %v1323, %v1411
  %v1413 = vpop.f32.mrf.mxu0
  %v1414 = vadd.f32 %v1325, %v1413
  %1415 = vmatprep.mubr.f32.mxu0 %v521
  %1416 = vmatmul.mubr.f32.gmra.mxu0 %v505
  %v1417 = vpop.f32.mrf.mxu0
  %v1418 = vadd.f32 %v1329, %v1417
  %v1419 = vpop.f32.mrf.mxu0
  %v1420 = vadd.f32 %v1331, %v1419
  %1421 = vmatprep.mubr.f32.mxu0 %v522
  %1422 = vmatmul.mubr.f32.gmra.mxu0 %v506
  %v1423 = vpop.f32.mrf.mxu0
  %v1424 = vadd.f32 %v1335, %v1423
  %v1425 = vpop.f32.mrf.mxu0
  %v1426 = vadd.f32 %v1337, %v1425
  %1427 = vmatprep.mubr.f32.mxu0 %v523
  %1428 = vmatmul.mubr.f32.gmra.mxu0 %v507
  %v1429 = vpop.f32.mrf.mxu0
  %v1430 = vadd.f32 %v1341, %v1429
  %v1431 = vpop.f32.mrf.mxu0
  %v1432 = vadd.f32 %v1343, %v1431
  %1433 = vdwg.mxu0
  %1434 = vmatprep.subr.mxu0 %v649
  %1435 = vmatpush1.msra.mxu0 %v648
  %1436 = vmatprep.subr.mxu0 %v641
  %1437 = vmatpush1.msra.mxu0 %v640
  %1438 = vmatprep.subr.mxu0 %v633
  %1439 = vmatpush1.msra.mxu0 %v632
  %1440 = vmatprep.subr.mxu0 %v625
  %1441 = vmatpush1.msra.mxu0 %v624
  %1442 = vmatprep.subr.mxu0 %v617
  %1443 = vmatpush1.msra.mxu0 %v616
  %1444 = vmatprep.subr.mxu0 %v609
  %1445 = vmatpush1.msra.mxu0 %v608
  %1446 = vmatprep.subr.mxu0 %v601
  %1447 = vmatpush1.msra.mxu0 %v600
  %1448 = vmatprep.subr.mxu0 %v593
  %1449 = vmatpush1.msra.mxu0 %v592
  %1450 = vmatprep.subr.mxu0 %v585
  %1451 = vmatpush1.msra.mxu0 %v584
  %1452 = vmatprep.subr.mxu0 %v577
  %1453 = vmatpush1.msra.mxu0 %v576
  %1454 = vmatprep.subr.mxu0 %v569
  %1455 = vmatpush1.msra.mxu0 %v568
  %1456 = vmatprep.subr.mxu0 %v561
  %1457 = vmatpush1.msra.mxu0 %v560
  %1458 = vmatprep.subr.mxu0 %v553
  %1459 = vmatpush1.msra.mxu0 %v552
  %1460 = vmatprep.subr.mxu0 %v545
  %1461 = vmatpush1.msra.mxu0 %v544
  %1462 = vmatprep.subr.mxu0 %v537
  %1463 = vmatpush1.msra.mxu0 %v536
  %1464 = vmatprep.subr.mxu0 %v529
  %1465 = vmatpush1.msra.mxu0 %v528
  %1466 = vmatprep.subr.mxu0 %v777
  %1467 = vmatpush2.msra.mxu0 %v776
  %1468 = vmatprep.subr.mxu0 %v769
  %1469 = vmatpush2.msra.mxu0 %v768
  %1470 = vmatprep.subr.mxu0 %v761
  %1471 = vmatpush2.msra.mxu0 %v760
  %1472 = vmatprep.subr.mxu0 %v753
  %1473 = vmatpush2.msra.mxu0 %v752
  %1474 = vmatprep.subr.mxu0 %v745
  %1475 = vmatpush2.msra.mxu0 %v744
  %1476 = vmatprep.subr.mxu0 %v737
  %1477 = vmatpush2.msra.mxu0 %v736
  %1478 = vmatprep.subr.mxu0 %v729
  %1479 = vmatpush2.msra.mxu0 %v728
  %1480 = vmatprep.subr.mxu0 %v721
  %1481 = vmatpush2.msra.mxu0 %v720
  %1482 = vmatprep.subr.mxu0 %v713
  %1483 = vmatpush2.msra.mxu0 %v712
  %1484 = vmatprep.subr.mxu0 %v705
  %1485 = vmatpush2.msra.mxu0 %v704
  %1486 = vmatprep.subr.mxu0 %v697
  %1487 = vmatpush2.msra.mxu0 %v696
  %1488 = vmatprep.subr.mxu0 %v689
  %1489 = vmatpush2.msra.mxu0 %v688
  %1490 = vmatprep.subr.mxu0 %v681
  %1491 = vmatpush2.msra.mxu0 %v680
  %1492 = vmatprep.subr.mxu0 %v673
  %1493 = vmatpush2.msra.mxu0 %v672
  %1494 = vmatprep.subr.mxu0 %v665
  %1495 = vmatpush2.msra.mxu0 %v664
  %1496 = vmatprep.subr.mxu0 %v657
  %1497 = vmatpush2.msra.mxu0 %v656
  %1498 = vmatprep.mubr.f32.mxu0 %v488
  %1499 = vmatmul.mubr.f32.gmra.mxu0 %v468
  %v1500 = vpop.f32.mrf.mxu0
  %v1501 = vadd.f32 %v1057, %v1500
  %v1502 = vpop.f32.mrf.mxu0
  %v1503 = vadd.f32 %v1061, %v1502
  %1504 = vmatprep.mubr.f32.mxu0 %v489
  %1505 = vmatmul.mubr.f32.gmra.mxu0 %v469
  %v1506 = vpop.f32.mrf.mxu0
  %v1507 = vadd.f32 %v1057, %v1506
  %v1508 = vpop.f32.mrf.mxu0
  %v1509 = vadd.f32 %v1061, %v1508
  %1510 = vmatprep.mubr.f32.mxu0 %v490
  %1511 = vmatmul.mubr.f32.gmra.mxu0 %v470
  %v1512 = vpop.f32.mrf.mxu0
  %v1513 = vadd.f32 %v1057, %v1512
  %v1514 = vpop.f32.mrf.mxu0
  %v1515 = vadd.f32 %v1061, %v1514
  %1516 = vmatprep.mubr.f32.mxu0 %v491
  %1517 = vmatmul.mubr.f32.gmra.mxu0 %v471
  %v1518 = vpop.f32.mrf.mxu0
  %v1519 = vadd.f32 %v1057, %v1518
  %v1520 = vpop.f32.mrf.mxu0
  %v1521 = vadd.f32 %v1061, %v1520
  %1522 = vdwg.mxu0
  %1523 = vmatprep.subr.mxu0 %v905
  %1524 = vmatpush1.msra.mxu0 %v904
  %1525 = vmatprep.subr.mxu0 %v897
  %1526 = vmatpush1.msra.mxu0 %v896
  %1527 = vmatprep.subr.mxu0 %v889
  %1528 = vmatpush1.msra.mxu0 %v888
  %1529 = vmatprep.subr.mxu0 %v881
  %1530 = vmatpush1.msra.mxu0 %v880
  %1531 = vmatprep.subr.mxu0 %v873
  %1532 = vmatpush1.msra.mxu0 %v872
  %1533 = vmatprep.subr.mxu0 %v865
  %1534 = vmatpush1.msra.mxu0 %v864
  %1535 = vmatprep.subr.mxu0 %v857
  %1536 = vmatpush1.msra.mxu0 %v856
  %1537 = vmatprep.subr.mxu0 %v849
  %1538 = vmatpush1.msra.mxu0 %v848
  %1539 = vmatprep.subr.mxu0 %v841
  %1540 = vmatpush1.msra.mxu0 %v840
  %1541 = vmatprep.subr.mxu0 %v833
  %1542 = vmatpush1.msra.mxu0 %v832
  %1543 = vmatprep.subr.mxu0 %v825
  %1544 = vmatpush1.msra.mxu0 %v824
  %1545 = vmatprep.subr.mxu0 %v817
  %1546 = vmatpush1.msra.mxu0 %v816
  %1547 = vmatprep.subr.mxu0 %v809
  %1548 = vmatpush1.msra.mxu0 %v808
  %1549 = vmatprep.subr.mxu0 %v801
  %1550 = vmatpush1.msra.mxu0 %v800
  %1551 = vmatprep.subr.mxu0 %v793
  %1552 = vmatpush1.msra.mxu0 %v792
  %1553 = vmatprep.subr.mxu0 %v785
  %1554 = vmatpush1.msra.mxu0 %v784
  %1555 = vmatprep.subr.mxu0 %v1033
  %1556 = vmatpush2.msra.mxu0 %v1032
  %1557 = vmatprep.subr.mxu0 %v1025
  %1558 = vmatpush2.msra.mxu0 %v1024
  %1559 = vmatprep.subr.mxu0 %v1017
  %1560 = vmatpush2.msra.mxu0 %v1016
  %1561 = vmatprep.subr.mxu0 %v1009
  %1562 = vmatpush2.msra.mxu0 %v1008
  %1563 = vmatprep.subr.mxu0 %v1001
  %1564 = vmatpush2.msra.mxu0 %v1000
  %1565 = vmatprep.subr.mxu0 %v993
  %1566 = vmatpush2.msra.mxu0 %v992
  %1567 = vmatprep.subr.mxu0 %v985
  %1568 = vmatpush2.msra.mxu0 %v984
  %1569 = vmatprep.subr.mxu0 %v977
  %1570 = vmatpush2.msra.mxu0 %v976
  %1571 = vmatprep.subr.mxu0 %v969
  %1572 = vmatpush2.msra.mxu0 %v968
  %1573 = vmatprep.subr.mxu0 %v961
  %1574 = vmatpush2.msra.mxu0 %v960
  %1575 = vmatprep.subr.mxu0 %v953
  %1576 = vmatpush2.msra.mxu0 %v952
  %1577 = vmatprep.subr.mxu0 %v945
  %1578 = vmatpush2.msra.mxu0 %v944
  %1579 = vmatprep.subr.mxu0 %v937
  %1580 = vmatpush2.msra.mxu0 %v936
  %1581 = vmatprep.subr.mxu0 %v929
  %1582 = vmatpush2.msra.mxu0 %v928
  %1583 = vmatprep.subr.mxu0 %v921
  %1584 = vmatpush2.msra.mxu0 %v920
  %1585 = vmatprep.subr.mxu0 %v913
  %1586 = vmatpush2.msra.mxu0 %v912
  %1587 = vmatprep.mubr.f32.mxu0 %v520
  %1588 = vmatmul.mubr.f32.gmra.mxu0 %v504
  %v1589 = vpop.f32.mrf.mxu0
  %v1590 = vadd.f32 %v1501, %v1589
  %v1591 = vpop.f32.mrf.mxu0
  %v1592 = vadd.f32 %v1503, %v1591
  %1593 = vmatprep.mubr.f32.mxu0 %v521
  %1594 = vmatmul.mubr.f32.gmra.mxu0 %v505
  %v1595 = vpop.f32.mrf.mxu0
  %v1596 = vadd.f32 %v1507, %v1595
  %v1597 = vpop.f32.mrf.mxu0
  %v1598 = vadd.f32 %v1509, %v1597
  %1599 = vmatprep.mubr.f32.mxu0 %v522
  %1600 = vmatmul.mubr.f32.gmra.mxu0 %v506
  %v1601 = vpop.f32.mrf.mxu0
  %v1602 = vadd.f32 %v1513, %v1601
  %v1603 = vpop.f32.mrf.mxu0
  %v1604 = vadd.f32 %v1515, %v1603
  %1605 = vmatprep.mubr.f32.mxu0 %v523
  %1606 = vmatmul.mubr.f32.gmra.mxu0 %v507
  %v1607 = vpop.f32.mrf.mxu0
  %v1608 = vadd.f32 %v1519, %v1607
  %v1609 = vpop.f32.mrf.mxu0
  %v1610 = vadd.f32 %v1521, %v1609
  %1611 = vdwg.mxu0
  %1612 = vmatprep.subr.mxu0 %v651
  %1613 = vmatpush1.msra.mxu0 %v650
  %1614 = vmatprep.subr.mxu0 %v643
  %1615 = vmatpush1.msra.mxu0 %v642
  %1616 = vmatprep.subr.mxu0 %v635
  %1617 = vmatpush1.msra.mxu0 %v634
  %1618 = vmatprep.subr.mxu0 %v627
  %1619 = vmatpush1.msra.mxu0 %v626
  %1620 = vmatprep.subr.mxu0 %v619
  %1621 = vmatpush1.msra.mxu0 %v618
  %1622 = vmatprep.subr.mxu0 %v611
  %1623 = vmatpush1.msra.mxu0 %v610
  %1624 = vmatprep.subr.mxu0 %v603
  %1625 = vmatpush1.msra.mxu0 %v602
  %1626 = vmatprep.subr.mxu0 %v595
  %1627 = vmatpush1.msra.mxu0 %v594
  %1628 = vmatprep.subr.mxu0 %v587
  %1629 = vmatpush1.msra.mxu0 %v586
  %1630 = vmatprep.subr.mxu0 %v579
  %1631 = vmatpush1.msra.mxu0 %v578
  %1632 = vmatprep.subr.mxu0 %v571
  %1633 = vmatpush1.msra.mxu0 %v570
  %1634 = vmatprep.subr.mxu0 %v563
  %1635 = vmatpush1.msra.mxu0 %v562
  %1636 = vmatprep.subr.mxu0 %v555
  %1637 = vmatpush1.msra.mxu0 %v554
  %1638 = vmatprep.subr.mxu0 %v547
  %1639 = vmatpush1.msra.mxu0 %v546
  %1640 = vmatprep.subr.mxu0 %v539
  %1641 = vmatpush1.msra.mxu0 %v538
  %1642 = vmatprep.subr.mxu0 %v531
  %1643 = vmatpush1.msra.mxu0 %v530
  %1644 = vmatprep.subr.mxu0 %v779
  %1645 = vmatpush2.msra.mxu0 %v778
  %1646 = vmatprep.subr.mxu0 %v771
  %1647 = vmatpush2.msra.mxu0 %v770
  %1648 = vmatprep.subr.mxu0 %v763
  %1649 = vmatpush2.msra.mxu0 %v762
  %1650 = vmatprep.subr.mxu0 %v755
  %1651 = vmatpush2.msra.mxu0 %v754
  %1652 = vmatprep.subr.mxu0 %v747
  %1653 = vmatpush2.msra.mxu0 %v746
  %1654 = vmatprep.subr.mxu0 %v739
  %1655 = vmatpush2.msra.mxu0 %v738
  %1656 = vmatprep.subr.mxu0 %v731
  %1657 = vmatpush2.msra.mxu0 %v730
  %1658 = vmatprep.subr.mxu0 %v723
  %1659 = vmatpush2.msra.mxu0 %v722
  %1660 = vmatprep.subr.mxu0 %v715
  %1661 = vmatpush2.msra.mxu0 %v714
  %1662 = vmatprep.subr.mxu0 %v707
  %1663 = vmatpush2.msra.mxu0 %v706
  %1664 = vmatprep.subr.mxu0 %v699
  %1665 = vmatpush2.msra.mxu0 %v698
  %1666 = vmatprep.subr.mxu0 %v691
  %1667 = vmatpush2.msra.mxu0 %v690
  %1668 = vmatprep.subr.mxu0 %v683
  %1669 = vmatpush2.msra.mxu0 %v682
  %1670 = vmatprep.subr.mxu0 %v675
  %1671 = vmatpush2.msra.mxu0 %v674
  %1672 = vmatprep.subr.mxu0 %v667
  %1673 = vmatpush2.msra.mxu0 %v666
  %1674 = vmatprep.subr.mxu0 %v659
  %1675 = vmatpush2.msra.mxu0 %v658
  %1676 = vmatprep.mubr.f32.mxu0 %v488
  %1677 = vmatmul.mubr.f32.gmra.mxu0 %v468
  %v1678 = vpop.f32.mrf.mxu0
  %v1679 = vadd.f32 %v1065, %v1678
  %v1680 = vpop.f32.mrf.mxu0
  %v1681 = vadd.f32 %v1069, %v1680
  %1682 = vmatprep.mubr.f32.mxu0 %v489
  %1683 = vmatmul.mubr.f32.gmra.mxu0 %v469
  %v1684 = vpop.f32.mrf.mxu0
  %v1685 = vadd.f32 %v1065, %v1684
  %v1686 = vpop.f32.mrf.mxu0
  %v1687 = vadd.f32 %v1069, %v1686
  %1688 = vmatprep.mubr.f32.mxu0 %v490
  %1689 = vmatmul.mubr.f32.gmra.mxu0 %v470
  %v1690 = vpop.f32.mrf.mxu0
  %v1691 = vadd.f32 %v1065, %v1690
  %v1692 = vpop.f32.mrf.mxu0
  %v1693 = vadd.f32 %v1069, %v1692
  %1694 = vmatprep.mubr.f32.mxu0 %v491
  %1695 = vmatmul.mubr.f32.gmra.mxu0 %v471
  %v1696 = vpop.f32.mrf.mxu0
  %v1697 = vadd.f32 %v1065, %v1696
  %v1698 = vpop.f32.mrf.mxu0
  %v1699 = vadd.f32 %v1069, %v1698
  %1700 = vdwg.mxu0
  %1701 = vmatprep.subr.mxu0 %v907
  %1702 = vmatpush1.msra.mxu0 %v906
  %1703 = vmatprep.subr.mxu0 %v899
  %1704 = vmatpush1.msra.mxu0 %v898
  %1705 = vmatprep.subr.mxu0 %v891
  %1706 = vmatpush1.msra.mxu0 %v890
  %1707 = vmatprep.subr.mxu0 %v883
  %1708 = vmatpush1.msra.mxu0 %v882
  %1709 = vmatprep.subr.mxu0 %v875
  %1710 = vmatpush1.msra.mxu0 %v874
  %1711 = vmatprep.subr.mxu0 %v867
  %1712 = vmatpush1.msra.mxu0 %v866
  %1713 = vmatprep.subr.mxu0 %v859
  %1714 = vmatpush1.msra.mxu0 %v858
  %1715 = vmatprep.subr.mxu0 %v851
  %1716 = vmatpush1.msra.mxu0 %v850
  %1717 = vmatprep.subr.mxu0 %v843
  %1718 = vmatpush1.msra.mxu0 %v842
  %1719 = vmatprep.subr.mxu0 %v835
  %1720 = vmatpush1.msra.mxu0 %v834
  %1721 = vmatprep.subr.mxu0 %v827
  %1722 = vmatpush1.msra.mxu0 %v826
  %1723 = vmatprep.subr.mxu0 %v819
  %1724 = vmatpush1.msra.mxu0 %v818
  %1725 = vmatprep.subr.mxu0 %v811
  %1726 = vmatpush1.msra.mxu0 %v810
  %1727 = vmatprep.subr.mxu0 %v803
  %1728 = vmatpush1.msra.mxu0 %v802
  %1729 = vmatprep.subr.mxu0 %v795
  %1730 = vmatpush1.msra.mxu0 %v794
  %1731 = vmatprep.subr.mxu0 %v787
  %1732 = vmatpush1.msra.mxu0 %v786
  %1733 = vmatprep.subr.mxu0 %v1035
  %1734 = vmatpush2.msra.mxu0 %v1034
  %1735 = vmatprep.subr.mxu0 %v1027
  %1736 = vmatpush2.msra.mxu0 %v1026
  %1737 = vmatprep.subr.mxu0 %v1019
  %1738 = vmatpush2.msra.mxu0 %v1018
  %1739 = vmatprep.subr.mxu0 %v1011
  %1740 = vmatpush2.msra.mxu0 %v1010
  %1741 = vmatprep.subr.mxu0 %v1003
  %1742 = vmatpush2.msra.mxu0 %v1002
  %1743 = vmatprep.subr.mxu0 %v995
  %1744 = vmatpush2.msra.mxu0 %v994
  %1745 = vmatprep.subr.mxu0 %v987
  %1746 = vmatpush2.msra.mxu0 %v986
  %1747 = vmatprep.subr.mxu0 %v979
  %1748 = vmatpush2.msra.mxu0 %v978
  %1749 = vmatprep.subr.mxu0 %v971
  %1750 = vmatpush2.msra.mxu0 %v970
  %1751 = vmatprep.subr.mxu0 %v963
  %1752 = vmatpush2.msra.mxu0 %v962
  %1753 = vmatprep.subr.mxu0 %v955
  %1754 = vmatpush2.msra.mxu0 %v954
  %1755 = vmatprep.subr.mxu0 %v947
  %1756 = vmatpush2.msra.mxu0 %v946
  %1757 = vmatprep.subr.mxu0 %v939
  %1758 = vmatpush2.msra.mxu0 %v938
  %1759 = vmatprep.subr.mxu0 %v931
  %1760 = vmatpush2.msra.mxu0 %v930
  %1761 = vmatprep.subr.mxu0 %v923
  %1762 = vmatpush2.msra.mxu0 %v922
  %1763 = vmatprep.subr.mxu0 %v915
  %1764 = vmatpush2.msra.mxu0 %v914
  %1765 = vmatprep.mubr.f32.mxu0 %v520
  %1766 = vmatmul.mubr.f32.gmra.mxu0 %v504
  %v1767 = vpop.f32.mrf.mxu0
  %v1768 = vadd.f32 %v1679, %v1767
  %v1769 = vpop.f32.mrf.mxu0
  %v1770 = vadd.f32 %v1681, %v1769
  %1771 = vmatprep.mubr.f32.mxu0 %v521
  %1772 = vmatmul.mubr.f32.gmra.mxu0 %v505
  %v1773 = vpop.f32.mrf.mxu0
  %v1774 = vadd.f32 %v1685, %v1773
  %v1775 = vpop.f32.mrf.mxu0
  %v1776 = vadd.f32 %v1687, %v1775
  %1777 = vmatprep.mubr.f32.mxu0 %v522
  %1778 = vmatmul.mubr.f32.gmra.mxu0 %v506
  %v1779 = vpop.f32.mrf.mxu0
  %v1780 = vadd.f32 %v1691, %v1779
  %v1781 = vpop.f32.mrf.mxu0
  %v1782 = vadd.f32 %v1693, %v1781
  %1783 = vmatprep.mubr.f32.mxu0 %v523
  %1784 = vmatmul.mubr.f32.gmra.mxu0 %v507
  %v1785 = vpop.f32.mrf.mxu0
  %v1786 = vadd.f32 %v1697, %v1785
  %v1787 = vpop.f32.mrf.mxu0
  %v1788 = vadd.f32 %v1699, %v1787
  %1789 = vdwg.mxu0
  %v1790 = vmax.f32 %v1234, 0.0
  %v1791 = vmax.f32 %v1236, 0.0
  %v1792 = vmax.f32 %v1412, 0.0
  %v1793 = vmax.f32 %v1414, 0.0
  %v1794 = vmax.f32 %v1590, 0.0
  %v1795 = vmax.f32 %v1592, 0.0
  %v1796 = vmax.f32 %v1768, 0.0
  %v1797 = vmax.f32 %v1770, 0.0
  %v1798 = vmax.f32 %v1240, 0.0
  %v1799 = vmax.f32 %v1242, 0.0
  %v1800 = vmax.f32 %v1418, 0.0
  %v1801 = vmax.f32 %v1420, 0.0
  %v1802 = vmax.f32 %v1596, 0.0
  %v1803 = vmax.f32 %v1598, 0.0
  %v1804 = vmax.f32 %v1774, 0.0
  %v1805 = vmax.f32 %v1776, 0.0
  %v1806 = vmax.f32 %v1246, 0.0
  %v1807 = vmax.f32 %v1248, 0.0
  %v1808 = vmax.f32 %v1424, 0.0
  %v1809 = vmax.f32 %v1426, 0.0
  %v1810 = vmax.f32 %v1602, 0.0
  %v1811 = vmax.f32 %v1604, 0.0
  %v1812 = vmax.f32 %v1780, 0.0
  %v1813 = vmax.f32 %v1782, 0.0
  %v1814 = vmax.f32 %v1252, 0.0
  %v1815 = vmax.f32 %v1254, 0.0
  %v1816 = vmax.f32 %v1430, 0.0
  %v1817 = vmax.f32 %v1432, 0.0
  %v1818 = vmax.f32 %v1608, 0.0
  %v1819 = vmax.f32 %v1610, 0.0
  %v1820 = vmax.f32 %v1786, 0.0
  %v1821 = vmax.f32 %v1788, 0.0
  %v1854 = vrot.slane %v1790, 1
  %v1855 = vrot.slane %v1798, 1
  %v1856 = vsel %vm181, %v1854, %v1855
  %v1857 = vrot.slane %v1791, 1
  %v1858 = vrot.slane %v1799, 1
  %v1859 = vsel %vm181, %v1857, %v1858
  %v1860 = vrot.slane %v1792, 1
  %v1861 = vrot.slane %v1800, 1
  %v1862 = vsel %vm181, %v1860, %v1861
  %v1863 = vrot.slane %v1793, 1
  %v1864 = vrot.slane %v1801, 1
  %v1865 = vsel %vm181, %v1863, %v1864
  %v1866 = vrot.slane %v1794, 1
  %v1867 = vrot.slane %v1802, 1
  %v1868 = vsel %vm181, %v1866, %v1867
  %v1869 = vrot.slane %v1795, 1
  %v1870 = vrot.slane %v1803, 1
  %v1871 = vsel %vm181, %v1869, %v1870
  %v1872 = vrot.slane %v1796, 1
  %v1873 = vrot.slane %v1804, 1
  %v1874 = vsel %vm181, %v1872, %v1873
  %v1875 = vrot.slane %v1797, 1
  %v1876 = vrot.slane %v1805, 1
  %v1877 = vsel %vm181, %v1875, %v1876
  %v1878 = vrot.slane %v1806, 1
  %v1879 = vsel %vm181, %v1855, %v1878
  %v1880 = vrot.slane %v1807, 1
  %v1881 = vsel %vm181, %v1858, %v1880
  %v1882 = vrot.slane %v1808, 1
  %v1883 = vsel %vm181, %v1861, %v1882
  %v1884 = vrot.slane %v1809, 1
  %v1885 = vsel %vm181, %v1864, %v1884
  %v1886 = vrot.slane %v1810, 1
  %v1887 = vsel %vm181, %v1867, %v1886
  %v1888 = vrot.slane %v1811, 1
  %v1889 = vsel %vm181, %v1870, %v1888
  %v1890 = vrot.slane %v1812, 1
  %v1891 = vsel %vm181, %v1873, %v1890
  %v1892 = vrot.slane %v1813, 1
  %v1893 = vsel %vm181, %v1876, %v1892
  %v1894 = vrot.slane %v1814, 1
  %v1895 = vsel %vm181, %v1878, %v1894
  %v1896 = vrot.slane %v1815, 1
  %v1897 = vsel %vm181, %v1880, %v1896
  %v1898 = vrot.slane %v1816, 1
  %v1899 = vsel %vm181, %v1882, %v1898
  %v1900 = vrot.slane %v1817, 1
  %v1901 = vsel %vm181, %v1884, %v1900
  %v1902 = vrot.slane %v1818, 1
  %v1903 = vsel %vm181, %v1886, %v1902
  %v1904 = vrot.slane %v1819, 1
  %v1905 = vsel %vm181, %v1888, %v1904
  %v1906 = vrot.slane %v1820, 1
  %v1907 = vsel %vm181, %v1890, %v1906
  %v1908 = vrot.slane %v1821, 1
  %v1909 = vsel %vm181, %v1892, %v1908
  %v1942 = vsel %vm181, %v1894, 0.0
  %v1943 = vsel %vm181, %v1896, 0.0
  %v1944 = vsel %vm181, %v1898, 0.0
  %v1945 = vsel %vm181, %v1900, 0.0
  %v1946 = vsel %vm181, %v1902, 0.0
  %v1947 = vsel %vm181, %v1904, 0.0
  %v1948 = vsel %vm181, %v1906, 0.0
  %v1949 = vsel %vm181, %v1908, 0.0
  %v1950 = vmul.f32 %v1856, %v197
  %v1951 = vmul.f32 %v1859, %v197
  %v1952 = vmul.f32 %v1862, %v197
  %v1953 = vmul.f32 %v1865, %v197
  %v1954 = vmul.f32 %v1868, %v197
  %v1955 = vmul.f32 %v1871, %v197
  %v1956 = vmul.f32 %v1874, %v197
  %v1957 = vmul.f32 %v1877, %v197
  %v1958 = vmul.f32 %v1879, %v202
  %v1959 = vmul.f32 %v1881, %v202
  %v1960 = vmul.f32 %v1883, %v202
  %v1961 = vmul.f32 %v1885, %v202
  %v1962 = vmul.f32 %v1887, %v202
  %v1963 = vmul.f32 %v1889, %v202
  %v1964 = vmul.f32 %v1891, %v202
  %v1965 = vmul.f32 %v1893, %v202
  %v1966 = vmul.f32 %v1895, %v207
  %v1967 = vmul.f32 %v1897, %v207
  %v1968 = vmul.f32 %v1899, %v207
  %v1969 = vmul.f32 %v1901, %v207
  %v1970 = vmul.f32 %v1903, %v207
  %v1971 = vmul.f32 %v1905, %v207
  %v1972 = vmul.f32 %v1907, %v207
  %v1973 = vmul.f32 %v1909, %v207
  %v1974 = vmul.f32 %v1942, %v212
  %v1975 = vmul.f32 %v1943, %v212
  %v1976 = vmul.f32 %v1944, %v212
  %v1977 = vmul.f32 %v1945, %v212
  %v1978 = vmul.f32 %v1946, %v212
  %v1979 = vmul.f32 %v1947, %v212
  %v1980 = vmul.f32 %v1948, %v212
  %v1981 = vmul.f32 %v1949, %v212
  %v1982 = vrot.slane %v1790, 4
  %v1983 = vrot.slane %v1798, 4
  %v1984 = vsel %vm218, %v1982, %v1983
  %v1985 = vrot.slane %v1791, 4
  %v1986 = vrot.slane %v1799, 4
  %v1987 = vsel %vm218, %v1985, %v1986
  %v1988 = vrot.slane %v1792, 4
  %v1989 = vrot.slane %v1800, 4
  %v1990 = vsel %vm218, %v1988, %v1989
  %v1991 = vrot.slane %v1793, 4
  %v1992 = vrot.slane %v1801, 4
  %v1993 = vsel %vm218, %v1991, %v1992
  %v1994 = vrot.slane %v1794, 4
  %v1995 = vrot.slane %v1802, 4
  %v1996 = vsel %vm218, %v1994, %v1995
  %v1997 = vrot.slane %v1795, 4
  %v1998 = vrot.slane %v1803, 4
  %v1999 = vsel %vm218, %v1997, %v1998
  %v2000 = vrot.slane %v1796, 4
  %v2001 = vrot.slane %v1804, 4
  %v2002 = vsel %vm218, %v2000, %v2001
  %v2003 = vrot.slane %v1797, 4
  %v2004 = vrot.slane %v1805, 4
  %v2005 = vsel %vm218, %v2003, %v2004
  %v2006 = vrot.slane %v1806, 4
  %v2007 = vsel %vm218, %v1983, %v2006
  %v2008 = vrot.slane %v1807, 4
  %v2009 = vsel %vm218, %v1986, %v2008
  %v2010 = vrot.slane %v1808, 4
  %v2011 = vsel %vm218, %v1989, %v2010
  %v2012 = vrot.slane %v1809, 4
  %v2013 = vsel %vm218, %v1992, %v2012
  %v2014 = vrot.slane %v1810, 4
  %v2015 = vsel %vm218, %v1995, %v2014
  %v2016 = vrot.slane %v1811, 4
  %v2017 = vsel %vm218, %v1998, %v2016
  %v2018 = vrot.slane %v1812, 4
  %v2019 = vsel %vm218, %v2001, %v2018
  %v2020 = vrot.slane %v1813, 4
  %v2021 = vsel %vm218, %v2004, %v2020
  %v2022 = vrot.slane %v1814, 4
  %v2023 = vsel %vm218, %v2006, %v2022
  %v2024 = vrot.slane %v1815, 4
  %v2025 = vsel %vm218, %v2008, %v2024
  %v2026 = vrot.slane %v1816, 4
  %v2027 = vsel %vm218, %v2010, %v2026
  %v2028 = vrot.slane %v1817, 4
  %v2029 = vsel %vm218, %v2012, %v2028
  %v2030 = vrot.slane %v1818, 4
  %v2031 = vsel %vm218, %v2014, %v2030
  %v2032 = vrot.slane %v1819, 4
  %v2033 = vsel %vm218, %v2016, %v2032
  %v2034 = vrot.slane %v1820, 4
  %v2035 = vsel %vm218, %v2018, %v2034
  %v2036 = vrot.slane %v1821, 4
  %v2037 = vsel %vm218, %v2020, %v2036
  %v2070 = vsel %vm218, %v2022, 0.0
  %v2071 = vsel %vm218, %v2024, 0.0
  %v2072 = vsel %vm218, %v2026, 0.0
  %v2073 = vsel %vm218, %v2028, 0.0
  %v2074 = vsel %vm218, %v2030, 0.0
  %v2075 = vsel %vm218, %v2032, 0.0
  %v2076 = vsel %vm218, %v2034, 0.0
  %v2077 = vsel %vm218, %v2036, 0.0
  %v2078 = vmul.f32 %v1984, %v234
  %v2079 = vmul.f32 %v1987, %v234
  %v2080 = vmul.f32 %v1990, %v234
  %v2081 = vmul.f32 %v1993, %v234
  %v2082 = vmul.f32 %v1996, %v234
  %v2083 = vmul.f32 %v1999, %v234
  %v2084 = vmul.f32 %v2002, %v234
  %v2085 = vmul.f32 %v2005, %v234
  %v2086 = vmul.f32 %v2007, %v239
  %v2087 = vmul.f32 %v2009, %v239
  %v2088 = vmul.f32 %v2011, %v239
  %v2089 = vmul.f32 %v2013, %v239
  %v2090 = vmul.f32 %v2015, %v239
  %v2091 = vmul.f32 %v2017, %v239
  %v2092 = vmul.f32 %v2019, %v239
  %v2093 = vmul.f32 %v2021, %v239
  %v2094 = vmul.f32 %v2023, %v244
  %v2095 = vmul.f32 %v2025, %v244
  %v2096 = vmul.f32 %v2027, %v244
  %v2097 = vmul.f32 %v2029, %v244
  %v2098 = vmul.f32 %v2031, %v244
  %v2099 = vmul.f32 %v2033, %v244
  %v2100 = vmul.f32 %v2035, %v244
  %v2101 = vmul.f32 %v2037, %v244
  %v2102 = vmul.f32 %v2070, %v249
  %v2103 = vmul.f32 %v2071, %v249
  %v2104 = vmul.f32 %v2072, %v249
  %v2105 = vmul.f32 %v2073, %v249
  %v2106 = vmul.f32 %v2074, %v249
  %v2107 = vmul.f32 %v2075, %v249
  %v2108 = vmul.f32 %v2076, %v249
  %v2109 = vmul.f32 %v2077, %v249
  %v2110 = vrot.slane %v1790, 5
  %v2111 = vrot.slane %v1798, 5
  %v2112 = vsel %vm255, %v2110, %v2111
  %v2113 = vrot.slane %v1791, 5
  %v2114 = vrot.slane %v1799, 5
  %v2115 = vsel %vm255, %v2113, %v2114
  %v2116 = vrot.slane %v1792, 5
  %v2117 = vrot.slane %v1800, 5
  %v2118 = vsel %vm255, %v2116, %v2117
  %v2119 = vrot.slane %v1793, 5
  %v2120 = vrot.slane %v1801, 5
  %v2121 = vsel %vm255, %v2119, %v2120
  %v2122 = vrot.slane %v1794, 5
  %v2123 = vrot.slane %v1802, 5
  %v2124 = vsel %vm255, %v2122, %v2123
  %v2125 = vrot.slane %v1795, 5
  %v2126 = vrot.slane %v1803, 5
  %v2127 = vsel %vm255, %v2125, %v2126
  %v2128 = vrot.slane %v1796, 5
  %v2129 = vrot.slane %v1804, 5
  %v2130 = vsel %vm255, %v2128, %v2129
  %v2131 = vrot.slane %v1797, 5
  %v2132 = vrot.slane %v1805, 5
  %v2133 = vsel %vm255, %v2131, %v2132
  %v2134 = vrot.slane %v1806, 5
  %v2135 = vsel %vm255, %v2111, %v2134
  %v2136 = vrot.slane %v1807, 5
  %v2137 = vsel %vm255, %v2114, %v2136
  %v2138 = vrot.slane %v1808, 5
  %v2139 = vsel %vm255, %v2117, %v2138
  %v2140 = vrot.slane %v1809, 5
  %v2141 = vsel %vm255, %v2120, %v2140
  %v2142 = vrot.slane %v1810, 5
  %v2143 = vsel %vm255, %v2123, %v2142
  %v2144 = vrot.slane %v1811, 5
  %v2145 = vsel %vm255, %v2126, %v2144
  %v2146 = vrot.slane %v1812, 5
  %v2147 = vsel %vm255, %v2129, %v2146
  %v2148 = vrot.slane %v1813, 5
  %v2149 = vsel %vm255, %v2132, %v2148
  %v2150 = vrot.slane %v1814, 5
  %v2151 = vsel %vm255, %v2134, %v2150
  %v2152 = vrot.slane %v1815, 5
  %v2153 = vsel %vm255, %v2136, %v2152
  %v2154 = vrot.slane %v1816, 5
  %v2155 = vsel %vm255, %v2138, %v2154
  %v2156 = vrot.slane %v1817, 5
  %v2157 = vsel %vm255, %v2140, %v2156
  %v2158 = vrot.slane %v1818, 5
  %v2159 = vsel %vm255, %v2142, %v2158
  %v2160 = vrot.slane %v1819, 5
  %v2161 = vsel %vm255, %v2144, %v2160
  %v2162 = vrot.slane %v1820, 5
  %v2163 = vsel %vm255, %v2146, %v2162
  %v2164 = vrot.slane %v1821, 5
  %v2165 = vsel %vm255, %v2148, %v2164
  %v2198 = vsel %vm255, %v2150, 0.0
  %v2199 = vsel %vm255, %v2152, 0.0
  %v2200 = vsel %vm255, %v2154, 0.0
  %v2201 = vsel %vm255, %v2156, 0.0
  %v2202 = vsel %vm255, %v2158, 0.0
  %v2203 = vsel %vm255, %v2160, 0.0
  %v2204 = vsel %vm255, %v2162, 0.0
  %v2205 = vsel %vm255, %v2164, 0.0
  %v2206 = vmul.f32 %v2112, %v271
  %v2207 = vmul.f32 %v2115, %v271
  %v2208 = vmul.f32 %v2118, %v271
  %v2209 = vmul.f32 %v2121, %v271
  %v2210 = vmul.f32 %v2124, %v271
  %v2211 = vmul.f32 %v2127, %v271
  %v2212 = vmul.f32 %v2130, %v271
  %v2213 = vmul.f32 %v2133, %v271
  %v2214 = vmul.f32 %v2135, %v276
  %v2215 = vmul.f32 %v2137, %v276
  %v2216 = vmul.f32 %v2139, %v276
  %v2217 = vmul.f32 %v2141, %v276
  %v2218 = vmul.f32 %v2143, %v276
  %v2219 = vmul.f32 %v2145, %v276
  %v2220 = vmul.f32 %v2147, %v276
  %v2221 = vmul.f32 %v2149, %v276
  %v2222 = vmul.f32 %v2151, %v281
  %v2223 = vmul.f32 %v2153, %v281
  %v2224 = vmul.f32 %v2155, %v281
  %v2225 = vmul.f32 %v2157, %v281
  %v2226 = vmul.f32 %v2159, %v281
  %v2227 = vmul.f32 %v2161, %v281
  %v2228 = vmul.f32 %v2163, %v281
  %v2229 = vmul.f32 %v2165, %v281
  %v2230 = vmul.f32 %v2198, %v286
  %v2231 = vmul.f32 %v2199, %v286
  %v2232 = vmul.f32 %v2200, %v286
  %v2233 = vmul.f32 %v2201, %v286
  %v2234 = vmul.f32 %v2202, %v286
  %v2235 = vmul.f32 %v2203, %v286
  %v2236 = vmul.f32 %v2204, %v286
  %v2237 = vmul.f32 %v2205, %v286
  %v2238 = vld [vmem:[%s7] sm:$0xff]
  %v2239 = vld [vmem:[%s7 + $0x8] sm:$0xff]
  %v2240 = vld [vmem:[%s7 + $0x10] sm:$0xff]
  %v2241 = vld [vmem:[%s7 + $0x18] sm:$0xff]
  %v2242 = vld [vmem:[%s7 + $0x20] sm:$0xff]
  %v2243 = vld [vmem:[%s7 + $0x28] sm:$0xff]
  %v2244 = vld [vmem:[%s7 + $0x30] sm:$0xff]
  %v2245 = vld [vmem:[%s7 + $0x38] sm:$0xff]
  %v2246 = vld [vmem:[%s7 + $0x40] sm:$0xff]
  %v2247 = vld [vmem:[%s7 + $0x48] sm:$0xff]
  %v2248 = vld [vmem:[%s7 + $0x50] sm:$0xff]
  %v2249 = vld [vmem:[%s7 + $0x58] sm:$0xff]
  %v2250 = vld [vmem:[%s7 + $0x60] sm:$0xff]
  %v2251 = vld [vmem:[%s7 + $0x68] sm:$0xff]
  %v2252 = vld [vmem:[%s7 + $0x70] sm:$0xff]
  %v2253 = vld [vmem:[%s7 + $0x78] sm:$0xff]
  %v2254 = vld [vmem:[%s7 + $0x80] sm:$0xff]
  %v2255 = vld [vmem:[%s7 + $0x88] sm:$0xff]
  %v2256 = vld [vmem:[%s7 + $0x90] sm:$0xff]
  %v2257 = vld [vmem:[%s7 + $0x98] sm:$0xff]
  %v2258 = vld [vmem:[%s7 + $0xa0] sm:$0xff]
  %v2259 = vld [vmem:[%s7 + $0xa8] sm:$0xff]
  %v2260 = vld [vmem:[%s7 + $0xb0] sm:$0xff]
  %v2261 = vld [vmem:[%s7 + $0xb8] sm:$0xff]
  %v2262 = vld [vmem:[%s7 + $0xc0] sm:$0xff]
  %v2263 = vld [vmem:[%s7 + $0xc8] sm:$0xff]
  %v2264 = vld [vmem:[%s7 + $0xd0] sm:$0xff]
  %v2265 = vld [vmem:[%s7 + $0xd8] sm:$0xff]
  %v2266 = vld [vmem:[%s7 + $0xe0] sm:$0xff]
  %v2267 = vld [vmem:[%s7 + $0xe8] sm:$0xff]
  %v2268 = vld [vmem:[%s7 + $0xf0] sm:$0xff]
  %v2269 = vld [vmem:[%s7 + $0xf8] sm:$0xff]
  %v2270 = vld [vmem:[%s7 + $0x100] sm:$0xff]
  %v2271 = vld [vmem:[%s7 + $0x108] sm:$0xff]
  %v2272 = vld [vmem:[%s7 + $0x110] sm:$0xff]
  %v2273 = vld [vmem:[%s7 + $0x118] sm:$0xff]
  %v2274 = vld [vmem:[%s7 + $0x120] sm:$0xff]
  %v2275 = vld [vmem:[%s7 + $0x128] sm:$0xff]
  %v2276 = vld [vmem:[%s7 + $0x130] sm:$0xff]
  %v2277 = vld [vmem:[%s7 + $0x138] sm:$0xff]
  %v2278 = vld [vmem:[%s7 + $0x140] sm:$0xff]
  %v2279 = vld [vmem:[%s7 + $0x148] sm:$0xff]
  %v2280 = vld [vmem:[%s7 + $0x150] sm:$0xff]
  %v2281 = vld [vmem:[%s7 + $0x158] sm:$0xff]
  %v2282 = vld [vmem:[%s7 + $0x160] sm:$0xff]
  %v2283 = vld [vmem:[%s7 + $0x168] sm:$0xff]
  %v2284 = vld [vmem:[%s7 + $0x170] sm:$0xff]
  %v2285 = vld [vmem:[%s7 + $0x178] sm:$0xff]
  %v2286 = vld [vmem:[%s7 + $0x180] sm:$0xff]
  %v2287 = vld [vmem:[%s7 + $0x188] sm:$0xff]
  %v2288 = vld [vmem:[%s7 + $0x190] sm:$0xff]
  %v2289 = vld [vmem:[%s7 + $0x198] sm:$0xff]
  %v2290 = vld [vmem:[%s7 + $0x1a0] sm:$0xff]
  %v2291 = vld [vmem:[%s7 + $0x1a8] sm:$0xff]
  %v2292 = vld [vmem:[%s7 + $0x1b0] sm:$0xff]
  %v2293 = vld [vmem:[%s7 + $0x1b8] sm:$0xff]
  %v2294 = vld [vmem:[%s7 + $0x1c0] sm:$0xff]
  %v2295 = vld [vmem:[%s7 + $0x1c8] sm:$0xff]
  %v2296 = vld [vmem:[%s7 + $0x1d0] sm:$0xff]
  %v2297 = vld [vmem:[%s7 + $0x1d8] sm:$0xff]
  %v2298 = vld [vmem:[%s7 + $0x1e0] sm:$0xff]
  %v2299 = vld [vmem:[%s7 + $0x1e8] sm:$0xff]
  %v2300 = vld [vmem:[%s7 + $0x1f0] sm:$0xff]
  %v2301 = vld [vmem:[%s7 + $0x1f8] sm:$0xff]
  %v2302 = vld [vmem:[%s7 + $0x200] sm:$0xff]
  %v2303 = vld [vmem:[%s7 + $0x208] sm:$0xff]
  %v2304 = vld [vmem:[%s7 + $0x210] sm:$0xff]
  %v2305 = vld [vmem:[%s7 + $0x218] sm:$0xff]
  %v2306 = vld [vmem:[%s7 + $0x220] sm:$0xff]
  %v2307 = vld [vmem:[%s7 + $0x228] sm:$0xff]
  %v2308 = vld [vmem:[%s7 + $0x230] sm:$0xff]
  %v2309 = vld [vmem:[%s7 + $0x238] sm:$0xff]
  %v2310 = vld [vmem:[%s7 + $0x240] sm:$0xff]
  %v2311 = vld [vmem:[%s7 + $0x248] sm:$0xff]
  %v2312 = vld [vmem:[%s7 + $0x250] sm:$0xff]
  %v2313 = vld [vmem:[%s7 + $0x258] sm:$0xff]
  %v2314 = vld [vmem:[%s7 + $0x260] sm:$0xff]
  %v2315 = vld [vmem:[%s7 + $0x268] sm:$0xff]
  %v2316 = vld [vmem:[%s7 + $0x270] sm:$0xff]
  %v2317 = vld [vmem:[%s7 + $0x278] sm:$0xff]
  %v2318 = vld [vmem:[%s7 + $0x280] sm:$0xff]
  %v2319 = vld [vmem:[%s7 + $0x288] sm:$0xff]
  %v2320 = vld [vmem:[%s7 + $0x290] sm:$0xff]
  %v2321 = vld [vmem:[%s7 + $0x298] sm:$0xff]
  %v2322 = vld [vmem:[%s7 + $0x2a0] sm:$0xff]
  %v2323 = vld [vmem:[%s7 + $0x2a8] sm:$0xff]
  %v2324 = vld [vmem:[%s7 + $0x2b0] sm:$0xff]
  %v2325 = vld [vmem:[%s7 + $0x2b8] sm:$0xff]
  %v2326 = vld [vmem:[%s7 + $0x2c0] sm:$0xff]
  %v2327 = vld [vmem:[%s7 + $0x2c8] sm:$0xff]
  %v2328 = vld [vmem:[%s7 + $0x2d0] sm:$0xff]
  %v2329 = vld [vmem:[%s7 + $0x2d8] sm:$0xff]
  %v2330 = vld [vmem:[%s7 + $0x2e0] sm:$0xff]
  %v2331 = vld [vmem:[%s7 + $0x2e8] sm:$0xff]
  %v2332 = vld [vmem:[%s7 + $0x2f0] sm:$0xff]
  %v2333 = vld [vmem:[%s7 + $0x2f8] sm:$0xff]
  %v2334 = vld [vmem:[%s7 + $0x300] sm:$0xff]
  %v2335 = vld [vmem:[%s7 + $0x308] sm:$0xff]
  %v2336 = vld [vmem:[%s7 + $0x310] sm:$0xff]
  %v2337 = vld [vmem:[%s7 + $0x318] sm:$0xff]
  %v2338 = vld [vmem:[%s7 + $0x320] sm:$0xff]
  %v2339 = vld [vmem:[%s7 + $0x328] sm:$0xff]
  %v2340 = vld [vmem:[%s7 + $0x330] sm:$0xff]
  %v2341 = vld [vmem:[%s7 + $0x338] sm:$0xff]
  %v2342 = vld [vmem:[%s7 + $0x340] sm:$0xff]
  %v2343 = vld [vmem:[%s7 + $0x348] sm:$0xff]
  %v2344 = vld [vmem:[%s7 + $0x350] sm:$0xff]
  %v2345 = vld [vmem:[%s7 + $0x358] sm:$0xff]
  %v2346 = vld [vmem:[%s7 + $0x360] sm:$0xff]
  %v2347 = vld [vmem:[%s7 + $0x368] sm:$0xff]
  %v2348 = vld [vmem:[%s7 + $0x370] sm:$0xff]
  %v2349 = vld [vmem:[%s7 + $0x378] sm:$0xff]
  %v2350 = vld [vmem:[%s7 + $0x380] sm:$0xff]
  %v2351 = vld [vmem:[%s7 + $0x388] sm:$0xff]
  %v2352 = vld [vmem:[%s7 + $0x390] sm:$0xff]
  %v2353 = vld [vmem:[%s7 + $0x398] sm:$0xff]
  %v2354 = vld [vmem:[%s7 + $0x3a0] sm:$0xff]
  %v2355 = vld [vmem:[%s7 + $0x3a8] sm:$0xff]
  %v2356 = vld [vmem:[%s7 + $0x3b0] sm:$0xff]
  %v2357 = vld [vmem:[%s7 + $0x3b8] sm:$0xff]
  %v2358 = vld [vmem:[%s7 + $0x3c0] sm:$0xff]
  %v2359 = vld [vmem:[%s7 + $0x3c8] sm:$0xff]
  %v2360 = vld [vmem:[%s7 + $0x3d0] sm:$0xff]
  %v2361 = vld [vmem:[%s7 + $0x3d8] sm:$0xff]
  %v2362 = vld [vmem:[%s7 + $0x3e0] sm:$0xff]
  %v2363 = vld [vmem:[%s7 + $0x3e8] sm:$0xff]
  %v2364 = vld [vmem:[%s7 + $0x3f0] sm:$0xff]
  %v2365 = vld [vmem:[%s7 + $0x3f8] sm:$0xff]
  %v2366 = vld [vmem:[%s7 + $0x400] sm:$0xff]
  %v2367 = vld [vmem:[%s7 + $0x408] sm:$0xff]
  %v2368 = vld [vmem:[%s7 + $0x410] sm:$0xff]
  %v2369 = vld [vmem:[%s7 + $0x418] sm:$0xff]
  %v2370 = vld [vmem:[%s7 + $0x420] sm:$0xff]
  %v2371 = vld [vmem:[%s7 + $0x428] sm:$0xff]
  %v2372 = vld [vmem:[%s7 + $0x430] sm:$0xff]
  %v2373 = vld [vmem:[%s7 + $0x438] sm:$0xff]
  %v2374 = vld [vmem:[%s7 + $0x440] sm:$0xff]
  %v2375 = vld [vmem:[%s7 + $0x448] sm:$0xff]
  %v2376 = vld [vmem:[%s7 + $0x450] sm:$0xff]
  %v2377 = vld [vmem:[%s7 + $0x458] sm:$0xff]
  %v2378 = vld [vmem:[%s7 + $0x460] sm:$0xff]
  %v2379 = vld [vmem:[%s7 + $0x468] sm:$0xff]
  %v2380 = vld [vmem:[%s7 + $0x470] sm:$0xff]
  %v2381 = vld [vmem:[%s7 + $0x478] sm:$0xff]
  %v2382 = vld [vmem:[%s7 + $0x480] sm:$0xff]
  %v2383 = vld [vmem:[%s7 + $0x488] sm:$0xff]
  %v2384 = vld [vmem:[%s7 + $0x490] sm:$0xff]
  %v2385 = vld [vmem:[%s7 + $0x498] sm:$0xff]
  %v2386 = vld [vmem:[%s7 + $0x4a0] sm:$0xff]
  %v2387 = vld [vmem:[%s7 + $0x4a8] sm:$0xff]
  %v2388 = vld [vmem:[%s7 + $0x4b0] sm:$0xff]
  %v2389 = vld [vmem:[%s7 + $0x4b8] sm:$0xff]
  %v2390 = vld [vmem:[%s7 + $0x4c0] sm:$0xff]
  %v2391 = vld [vmem:[%s7 + $0x4c8] sm:$0xff]
  %v2392 = vld [vmem:[%s7 + $0x4d0] sm:$0xff]
  %v2393 = vld [vmem:[%s7 + $0x4d8] sm:$0xff]
  %v2394 = vld [vmem:[%s7 + $0x4e0] sm:$0xff]
  %v2395 = vld [vmem:[%s7 + $0x4e8] sm:$0xff]
  %v2396 = vld [vmem:[%s7 + $0x4f0] sm:$0xff]
  %v2397 = vld [vmem:[%s7 + $0x4f8] sm:$0xff]
  %v2398 = vld [vmem:[%s7 + $0x500] sm:$0xff]
  %v2399 = vld [vmem:[%s7 + $0x508] sm:$0xff]
  %v2400 = vld [vmem:[%s7 + $0x510] sm:$0xff]
  %v2401 = vld [vmem:[%s7 + $0x518] sm:$0xff]
  %v2402 = vld [vmem:[%s7 + $0x520] sm:$0xff]
  %v2403 = vld [vmem:[%s7 + $0x528] sm:$0xff]
  %v2404 = vld [vmem:[%s7 + $0x530] sm:$0xff]
  %v2405 = vld [vmem:[%s7 + $0x538] sm:$0xff]
  %v2406 = vld [vmem:[%s7 + $0x540] sm:$0xff]
  %v2407 = vld [vmem:[%s7 + $0x548] sm:$0xff]
  %v2408 = vld [vmem:[%s7 + $0x550] sm:$0xff]
  %v2409 = vld [vmem:[%s7 + $0x558] sm:$0xff]
  %v2410 = vld [vmem:[%s7 + $0x560] sm:$0xff]
  %v2411 = vld [vmem:[%s7 + $0x568] sm:$0xff]
  %v2412 = vld [vmem:[%s7 + $0x570] sm:$0xff]
  %v2413 = vld [vmem:[%s7 + $0x578] sm:$0xff]
  %v2414 = vld [vmem:[%s7 + $0x580] sm:$0xff]
  %v2415 = vld [vmem:[%s7 + $0x588] sm:$0xff]
  %v2416 = vld [vmem:[%s7 + $0x590] sm:$0xff]
  %v2417 = vld [vmem:[%s7 + $0x598] sm:$0xff]
  %v2418 = vld [vmem:[%s7 + $0x5a0] sm:$0xff]
  %v2419 = vld [vmem:[%s7 + $0x5a8] sm:$0xff]
  %v2420 = vld [vmem:[%s7 + $0x5b0] sm:$0xff]
  %v2421 = vld [vmem:[%s7 + $0x5b8] sm:$0xff]
  %v2422 = vld [vmem:[%s7 + $0x5c0] sm:$0xff]
  %v2423 = vld [vmem:[%s7 + $0x5c8] sm:$0xff]
  %v2424 = vld [vmem:[%s7 + $0x5d0] sm:$0xff]
  %v2425 = vld [vmem:[%s7 + $0x5d8] sm:$0xff]
  %v2426 = vld [vmem:[%s7 + $0x5e0] sm:$0xff]
  %v2427 = vld [vmem:[%s7 + $0x5e8] sm:$0xff]
  %v2428 = vld [vmem:[%s7 + $0x5f0] sm:$0xff]
  %v2429 = vld [vmem:[%s7 + $0x5f8] sm:$0xff]
  %v2430 = vld [vmem:[%s7 + $0x600] sm:$0xff]
  %v2431 = vld [vmem:[%s7 + $0x608] sm:$0xff]
  %v2432 = vld [vmem:[%s7 + $0x610] sm:$0xff]
  %v2433 = vld [vmem:[%s7 + $0x618] sm:$0xff]
  %v2434 = vld [vmem:[%s7 + $0x620] sm:$0xff]
  %v2435 = vld [vmem:[%s7 + $0x628] sm:$0xff]
  %v2436 = vld [vmem:[%s7 + $0x630] sm:$0xff]
  %v2437 = vld [vmem:[%s7 + $0x638] sm:$0xff]
  %v2438 = vld [vmem:[%s7 + $0x640] sm:$0xff]
  %v2439 = vld [vmem:[%s7 + $0x648] sm:$0xff]
  %v2440 = vld [vmem:[%s7 + $0x650] sm:$0xff]
  %v2441 = vld [vmem:[%s7 + $0x658] sm:$0xff]
  %v2442 = vld [vmem:[%s7 + $0x660] sm:$0xff]
  %v2443 = vld [vmem:[%s7 + $0x668] sm:$0xff]
  %v2444 = vld [vmem:[%s7 + $0x670] sm:$0xff]
  %v2445 = vld [vmem:[%s7 + $0x678] sm:$0xff]
  %v2446 = vld [vmem:[%s7 + $0x680] sm:$0xff]
  %v2447 = vld [vmem:[%s7 + $0x688] sm:$0xff]
  %v2448 = vld [vmem:[%s7 + $0x690] sm:$0xff]
  %v2449 = vld [vmem:[%s7 + $0x698] sm:$0xff]
  %v2450 = vld [vmem:[%s7 + $0x6a0] sm:$0xff]
  %v2451 = vld [vmem:[%s7 + $0x6a8] sm:$0xff]
  %v2452 = vld [vmem:[%s7 + $0x6b0] sm:$0xff]
  %v2453 = vld [vmem:[%s7 + $0x6b8] sm:$0xff]
  %v2454 = vld [vmem:[%s7 + $0x6c0] sm:$0xff]
  %v2455 = vld [vmem:[%s7 + $0x6c8] sm:$0xff]
  %v2456 = vld [vmem:[%s7 + $0x6d0] sm:$0xff]
  %v2457 = vld [vmem:[%s7 + $0x6d8] sm:$0xff]
  %v2458 = vld [vmem:[%s7 + $0x6e0] sm:$0xff]
  %v2459 = vld [vmem:[%s7 + $0x6e8] sm:$0xff]
  %v2460 = vld [vmem:[%s7 + $0x6f0] sm:$0xff]
  %v2461 = vld [vmem:[%s7 + $0x6f8] sm:$0xff]
  %v2462 = vld [vmem:[%s7 + $0x700] sm:$0xff]
  %v2463 = vld [vmem:[%s7 + $0x708] sm:$0xff]
  %v2464 = vld [vmem:[%s7 + $0x710] sm:$0xff]
  %v2465 = vld [vmem:[%s7 + $0x718] sm:$0xff]
  %v2466 = vld [vmem:[%s7 + $0x720] sm:$0xff]
  %v2467 = vld [vmem:[%s7 + $0x728] sm:$0xff]
  %v2468 = vld [vmem:[%s7 + $0x730] sm:$0xff]
  %v2469 = vld [vmem:[%s7 + $0x738] sm:$0xff]
  %v2470 = vld [vmem:[%s7 + $0x740] sm:$0xff]
  %v2471 = vld [vmem:[%s7 + $0x748] sm:$0xff]
  %v2472 = vld [vmem:[%s7 + $0x750] sm:$0xff]
  %v2473 = vld [vmem:[%s7 + $0x758] sm:$0xff]
  %v2474 = vld [vmem:[%s7 + $0x760] sm:$0xff]
  %v2475 = vld [vmem:[%s7 + $0x768] sm:$0xff]
  %v2476 = vld [vmem:[%s7 + $0x770] sm:$0xff]
  %v2477 = vld [vmem:[%s7 + $0x778] sm:$0xff]
  %v2478 = vld [vmem:[%s7 + $0x780] sm:$0xff]
  %v2479 = vld [vmem:[%s7 + $0x788] sm:$0xff]
  %v2480 = vld [vmem:[%s7 + $0x790] sm:$0xff]
  %v2481 = vld [vmem:[%s7 + $0x798] sm:$0xff]
  %v2482 = vld [vmem:[%s7 + $0x7a0] sm:$0xff]
  %v2483 = vld [vmem:[%s7 + $0x7a8] sm:$0xff]
  %v2484 = vld [vmem:[%s7 + $0x7b0] sm:$0xff]
  %v2485 = vld [vmem:[%s7 + $0x7b8] sm:$0xff]
  %v2486 = vld [vmem:[%s7 + $0x7c0] sm:$0xff]
  %v2487 = vld [vmem:[%s7 + $0x7c8] sm:$0xff]
  %v2488 = vld [vmem:[%s7 + $0x7d0] sm:$0xff]
  %v2489 = vld [vmem:[%s7 + $0x7d8] sm:$0xff]
  %v2490 = vld [vmem:[%s7 + $0x7e0] sm:$0xff]
  %v2491 = vld [vmem:[%s7 + $0x7e8] sm:$0xff]
  %v2492 = vld [vmem:[%s7 + $0x7f0] sm:$0xff]
  %v2493 = vld [vmem:[%s7 + $0x7f8] sm:$0xff]
  %v2494 = vld [vmem:[%s7 + $0x800] sm:$0xff]
  %v2495 = vld [vmem:[%s7 + $0x808] sm:$0xff]
  %v2496 = vld [vmem:[%s7 + $0x810] sm:$0xff]
  %v2497 = vld [vmem:[%s7 + $0x818] sm:$0xff]
  %v2498 = vld [vmem:[%s7 + $0x820] sm:$0xff]
  %v2499 = vld [vmem:[%s7 + $0x828] sm:$0xff]
  %v2500 = vld [vmem:[%s7 + $0x830] sm:$0xff]
  %v2501 = vld [vmem:[%s7 + $0x838] sm:$0xff]
  %v2502 = vld [vmem:[%s7 + $0x840] sm:$0xff]
  %v2503 = vld [vmem:[%s7 + $0x848] sm:$0xff]
  %v2504 = vld [vmem:[%s7 + $0x850] sm:$0xff]
  %v2505 = vld [vmem:[%s7 + $0x858] sm:$0xff]
  %v2506 = vld [vmem:[%s7 + $0x860] sm:$0xff]
  %v2507 = vld [vmem:[%s7 + $0x868] sm:$0xff]
  %v2508 = vld [vmem:[%s7 + $0x870] sm:$0xff]
  %v2509 = vld [vmem:[%s7 + $0x878] sm:$0xff]
  %v2510 = vld [vmem:[%s7 + $0x880] sm:$0xff]
  %v2511 = vld [vmem:[%s7 + $0x888] sm:$0xff]
  %v2512 = vld [vmem:[%s7 + $0x890] sm:$0xff]
  %v2513 = vld [vmem:[%s7 + $0x898] sm:$0xff]
  %v2514 = vld [vmem:[%s7 + $0x8a0] sm:$0xff]
  %v2515 = vld [vmem:[%s7 + $0x8a8] sm:$0xff]
  %v2516 = vld [vmem:[%s7 + $0x8b0] sm:$0xff]
  %v2517 = vld [vmem:[%s7 + $0x8b8] sm:$0xff]
  %v2518 = vld [vmem:[%s7 + $0x8c0] sm:$0xff]
  %v2519 = vld [vmem:[%s7 + $0x8c8] sm:$0xff]
  %v2520 = vld [vmem:[%s7 + $0x8d0] sm:$0xff]
  %v2521 = vld [vmem:[%s7 + $0x8d8] sm:$0xff]
  %v2522 = vld [vmem:[%s7 + $0x8e0] sm:$0xff]
  %v2523 = vld [vmem:[%s7 + $0x8e8] sm:$0xff]
  %v2524 = vld [vmem:[%s7 + $0x8f0] sm:$0xff]
  %v2525 = vld [vmem:[%s7 + $0x8f8] sm:$0xff]
  %v2526 = vld [vmem:[%s7 + $0x900] sm:$0xff]
  %v2527 = vld [vmem:[%s7 + $0x908] sm:$0xff]
  %v2528 = vld [vmem:[%s7 + $0x910] sm:$0xff]
  %v2529 = vld [vmem:[%s7 + $0x918] sm:$0xff]
  %v2530 = vld [vmem:[%s7 + $0x920] sm:$0xff]
  %v2531 = vld [vmem:[%s7 + $0x928] sm:$0xff]
  %v2532 = vld [vmem:[%s7 + $0x930] sm:$0xff]
  %v2533 = vld [vmem:[%s7 + $0x938] sm:$0xff]
  %v2534 = vld [vmem:[%s7 + $0x940] sm:$0xff]
  %v2535 = vld [vmem:[%s7 + $0x948] sm:$0xff]
  %v2536 = vld [vmem:[%s7 + $0x950] sm:$0xff]
  %v2537 = vld [vmem:[%s7 + $0x958] sm:$0xff]
  %v2538 = vld [vmem:[%s7 + $0x960] sm:$0xff]
  %v2539 = vld [vmem:[%s7 + $0x968] sm:$0xff]
  %v2540 = vld [vmem:[%s7 + $0x970] sm:$0xff]
  %v2541 = vld [vmem:[%s7 + $0x978] sm:$0xff]
  %v2542 = vld [vmem:[%s7 + $0x980] sm:$0xff]
  %v2543 = vld [vmem:[%s7 + $0x988] sm:$0xff]
  %v2544 = vld [vmem:[%s7 + $0x990] sm:$0xff]
  %v2545 = vld [vmem:[%s7 + $0x998] sm:$0xff]
  %v2546 = vld [vmem:[%s7 + $0x9a0] sm:$0xff]
  %v2547 = vld [vmem:[%s7 + $0x9a8] sm:$0xff]
  %v2548 = vld [vmem:[%s7 + $0x9b0] sm:$0xff]
  %v2549 = vld [vmem:[%s7 + $0x9b8] sm:$0xff]
  %v2550 = vld [vmem:[%s7 + $0x9c0] sm:$0xff]
  %v2551 = vld [vmem:[%s7 + $0x9c8] sm:$0xff]
  %v2552 = vld [vmem:[%s7 + $0x9d0] sm:$0xff]
  %v2553 = vld [vmem:[%s7 + $0x9d8] sm:$0xff]
  %v2554 = vld [vmem:[%s7 + $0x9e0] sm:$0xff]
  %v2555 = vld [vmem:[%s7 + $0x9e8] sm:$0xff]
  %v2556 = vld [vmem:[%s7 + $0x9f0] sm:$0xff]
  %v2557 = vld [vmem:[%s7 + $0x9f8] sm:$0xff]
  %v2558 = vld [vmem:[%s7 + $0xa00] sm:$0xff]
  %v2559 = vld [vmem:[%s7 + $0xa08] sm:$0xff]
  %v2560 = vld [vmem:[%s7 + $0xa10] sm:$0xff]
  %v2561 = vld [vmem:[%s7 + $0xa18] sm:$0xff]
  %v2562 = vld [vmem:[%s7 + $0xa20] sm:$0xff]
  %v2563 = vld [vmem:[%s7 + $0xa28] sm:$0xff]
  %v2564 = vld [vmem:[%s7 + $0xa30] sm:$0xff]
  %v2565 = vld [vmem:[%s7 + $0xa38] sm:$0xff]
  %v2566 = vld [vmem:[%s7 + $0xa40] sm:$0xff]
  %v2567 = vld [vmem:[%s7 + $0xa48] sm:$0xff]
  %v2568 = vld [vmem:[%s7 + $0xa50] sm:$0xff]
  %v2569 = vld [vmem:[%s7 + $0xa58] sm:$0xff]
  %v2570 = vld [vmem:[%s7 + $0xa60] sm:$0xff]
  %v2571 = vld [vmem:[%s7 + $0xa68] sm:$0xff]
  %v2572 = vld [vmem:[%s7 + $0xa70] sm:$0xff]
  %v2573 = vld [vmem:[%s7 + $0xa78] sm:$0xff]
  %v2574 = vld [vmem:[%s7 + $0xa80] sm:$0xff]
  %v2575 = vld [vmem:[%s7 + $0xa88] sm:$0xff]
  %v2576 = vld [vmem:[%s7 + $0xa90] sm:$0xff]
  %v2577 = vld [vmem:[%s7 + $0xa98] sm:$0xff]
  %v2578 = vld [vmem:[%s7 + $0xaa0] sm:$0xff]
  %v2579 = vld [vmem:[%s7 + $0xaa8] sm:$0xff]
  %v2580 = vld [vmem:[%s7 + $0xab0] sm:$0xff]
  %v2581 = vld [vmem:[%s7 + $0xab8] sm:$0xff]
  %v2582 = vld [vmem:[%s7 + $0xac0] sm:$0xff]
  %v2583 = vld [vmem:[%s7 + $0xac8] sm:$0xff]
  %v2584 = vld [vmem:[%s7 + $0xad0] sm:$0xff]
  %v2585 = vld [vmem:[%s7 + $0xad8] sm:$0xff]
  %v2586 = vld [vmem:[%s7 + $0xae0] sm:$0xff]
  %v2587 = vld [vmem:[%s7 + $0xae8] sm:$0xff]
  %v2588 = vld [vmem:[%s7 + $0xaf0] sm:$0xff]
  %v2589 = vld [vmem:[%s7 + $0xaf8] sm:$0xff]
  %v2590 = vld [vmem:[%s7 + $0xb00] sm:$0xff]
  %v2591 = vld [vmem:[%s7 + $0xb08] sm:$0xff]
  %v2592 = vld [vmem:[%s7 + $0xb10] sm:$0xff]
  %v2593 = vld [vmem:[%s7 + $0xb18] sm:$0xff]
  %v2594 = vld [vmem:[%s7 + $0xb20] sm:$0xff]
  %v2595 = vld [vmem:[%s7 + $0xb28] sm:$0xff]
  %v2596 = vld [vmem:[%s7 + $0xb30] sm:$0xff]
  %v2597 = vld [vmem:[%s7 + $0xb38] sm:$0xff]
  %v2598 = vld [vmem:[%s7 + $0xb40] sm:$0xff]
  %v2599 = vld [vmem:[%s7 + $0xb48] sm:$0xff]
  %v2600 = vld [vmem:[%s7 + $0xb50] sm:$0xff]
  %v2601 = vld [vmem:[%s7 + $0xb58] sm:$0xff]
  %v2602 = vld [vmem:[%s7 + $0xb60] sm:$0xff]
  %v2603 = vld [vmem:[%s7 + $0xb68] sm:$0xff]
  %v2604 = vld [vmem:[%s7 + $0xb70] sm:$0xff]
  %v2605 = vld [vmem:[%s7 + $0xb78] sm:$0xff]
  %v2606 = vld [vmem:[%s7 + $0xb80] sm:$0xff]
  %v2607 = vld [vmem:[%s7 + $0xb88] sm:$0xff]
  %v2608 = vld [vmem:[%s7 + $0xb90] sm:$0xff]
  %v2609 = vld [vmem:[%s7 + $0xb98] sm:$0xff]
  %v2610 = vld [vmem:[%s7 + $0xba0] sm:$0xff]
  %v2611 = vld [vmem:[%s7 + $0xba8] sm:$0xff]
  %v2612 = vld [vmem:[%s7 + $0xbb0] sm:$0xff]
  %v2613 = vld [vmem:[%s7 + $0xbb8] sm:$0xff]
  %v2614 = vld [vmem:[%s7 + $0xbc0] sm:$0xff]
  %v2615 = vld [vmem:[%s7 + $0xbc8] sm:$0xff]
  %v2616 = vld [vmem:[%s7 + $0xbd0] sm:$0xff]
  %v2617 = vld [vmem:[%s7 + $0xbd8] sm:$0xff]
  %v2618 = vld [vmem:[%s7 + $0xbe0] sm:$0xff]
  %v2619 = vld [vmem:[%s7 + $0xbe8] sm:$0xff]
  %v2620 = vld [vmem:[%s7 + $0xbf0] sm:$0xff]
  %v2621 = vld [vmem:[%s7 + $0xbf8] sm:$0xff]
  %v2622 = vld [vmem:[%s7 + $0xc00] sm:$0xff]
  %v2623 = vld [vmem:[%s7 + $0xc08] sm:$0xff]
  %v2624 = vld [vmem:[%s7 + $0xc10] sm:$0xff]
  %v2625 = vld [vmem:[%s7 + $0xc18] sm:$0xff]
  %v2626 = vld [vmem:[%s7 + $0xc20] sm:$0xff]
  %v2627 = vld [vmem:[%s7 + $0xc28] sm:$0xff]
  %v2628 = vld [vmem:[%s7 + $0xc30] sm:$0xff]
  %v2629 = vld [vmem:[%s7 + $0xc38] sm:$0xff]
  %v2630 = vld [vmem:[%s7 + $0xc40] sm:$0xff]
  %v2631 = vld [vmem:[%s7 + $0xc48] sm:$0xff]
  %v2632 = vld [vmem:[%s7 + $0xc50] sm:$0xff]
  %v2633 = vld [vmem:[%s7 + $0xc58] sm:$0xff]
  %v2634 = vld [vmem:[%s7 + $0xc60] sm:$0xff]
  %v2635 = vld [vmem:[%s7 + $0xc68] sm:$0xff]
  %v2636 = vld [vmem:[%s7 + $0xc70] sm:$0xff]
  %v2637 = vld [vmem:[%s7 + $0xc78] sm:$0xff]
  %v2638 = vld [vmem:[%s7 + $0xc80] sm:$0xff]
  %v2639 = vld [vmem:[%s7 + $0xc88] sm:$0xff]
  %v2640 = vld [vmem:[%s7 + $0xc90] sm:$0xff]
  %v2641 = vld [vmem:[%s7 + $0xc98] sm:$0xff]
  %v2642 = vld [vmem:[%s7 + $0xca0] sm:$0xff]
  %v2643 = vld [vmem:[%s7 + $0xca8] sm:$0xff]
  %v2644 = vld [vmem:[%s7 + $0xcb0] sm:$0xff]
  %v2645 = vld [vmem:[%s7 + $0xcb8] sm:$0xff]
  %v2646 = vld [vmem:[%s7 + $0xcc0] sm:$0xff]
  %v2647 = vld [vmem:[%s7 + $0xcc8] sm:$0xff]
  %v2648 = vld [vmem:[%s7 + $0xcd0] sm:$0xff]
  %v2649 = vld [vmem:[%s7 + $0xcd8] sm:$0xff]
  %v2650 = vld [vmem:[%s7 + $0xce0] sm:$0xff]
  %v2651 = vld [vmem:[%s7 + $0xce8] sm:$0xff]
  %v2652 = vld [vmem:[%s7 + $0xcf0] sm:$0xff]
  %v2653 = vld [vmem:[%s7 + $0xcf8] sm:$0xff]
  %v2654 = vld [vmem:[%s7 + $0xd00] sm:$0xff]
  %v2655 = vld [vmem:[%s7 + $0xd08] sm:$0xff]
  %v2656 = vld [vmem:[%s7 + $0xd10] sm:$0xff]
  %v2657 = vld [vmem:[%s7 + $0xd18] sm:$0xff]
  %v2658 = vld [vmem:[%s7 + $0xd20] sm:$0xff]
  %v2659 = vld [vmem:[%s7 + $0xd28] sm:$0xff]
  %v2660 = vld [vmem:[%s7 + $0xd30] sm:$0xff]
  %v2661 = vld [vmem:[%s7 + $0xd38] sm:$0xff]
  %v2662 = vld [vmem:[%s7 + $0xd40] sm:$0xff]
  %v2663 = vld [vmem:[%s7 + $0xd48] sm:$0xff]
  %v2664 = vld [vmem:[%s7 + $0xd50] sm:$0xff]
  %v2665 = vld [vmem:[%s7 + $0xd58] sm:$0xff]
  %v2666 = vld [vmem:[%s7 + $0xd60] sm:$0xff]
  %v2667 = vld [vmem:[%s7 + $0xd68] sm:$0xff]
  %v2668 = vld [vmem:[%s7 + $0xd70] sm:$0xff]
  %v2669 = vld [vmem:[%s7 + $0xd78] sm:$0xff]
  %v2670 = vld [vmem:[%s7 + $0xd80] sm:$0xff]
  %v2671 = vld [vmem:[%s7 + $0xd88] sm:$0xff]
  %v2672 = vld [vmem:[%s7 + $0xd90] sm:$0xff]
  %v2673 = vld [vmem:[%s7 + $0xd98] sm:$0xff]
  %v2674 = vld [vmem:[%s7 + $0xda0] sm:$0xff]
  %v2675 = vld [vmem:[%s7 + $0xda8] sm:$0xff]
  %v2676 = vld [vmem:[%s7 + $0xdb0] sm:$0xff]
  %v2677 = vld [vmem:[%s7 + $0xdb8] sm:$0xff]
  %v2678 = vld [vmem:[%s7 + $0xdc0] sm:$0xff]
  %v2679 = vld [vmem:[%s7 + $0xdc8] sm:$0xff]
  %v2680 = vld [vmem:[%s7 + $0xdd0] sm:$0xff]
  %v2681 = vld [vmem:[%s7 + $0xdd8] sm:$0xff]
  %v2682 = vld [vmem:[%s7 + $0xde0] sm:$0xff]
  %v2683 = vld [vmem:[%s7 + $0xde8] sm:$0xff]
  %v2684 = vld [vmem:[%s7 + $0xdf0] sm:$0xff]
  %v2685 = vld [vmem:[%s7 + $0xdf8] sm:$0xff]
  %v2686 = vld [vmem:[%s7 + $0xe00] sm:$0xff]
  %v2687 = vld [vmem:[%s7 + $0xe08] sm:$0xff]
  %v2688 = vld [vmem:[%s7 + $0xe10] sm:$0xff]
  %v2689 = vld [vmem:[%s7 + $0xe18] sm:$0xff]
  %v2690 = vld [vmem:[%s7 + $0xe20] sm:$0xff]
  %v2691 = vld [vmem:[%s7 + $0xe28] sm:$0xff]
  %v2692 = vld [vmem:[%s7 + $0xe30] sm:$0xff]
  %v2693 = vld [vmem:[%s7 + $0xe38] sm:$0xff]
  %v2694 = vld [vmem:[%s7 + $0xe40] sm:$0xff]
  %v2695 = vld [vmem:[%s7 + $0xe48] sm:$0xff]
  %v2696 = vld [vmem:[%s7 + $0xe50] sm:$0xff]
  %v2697 = vld [vmem:[%s7 + $0xe58] sm:$0xff]
  %v2698 = vld [vmem:[%s7 + $0xe60] sm:$0xff]
  %v2699 = vld [vmem:[%s7 + $0xe68] sm:$0xff]
  %v2700 = vld [vmem:[%s7 + $0xe70] sm:$0xff]
  %v2701 = vld [vmem:[%s7 + $0xe78] sm:$0xff]
  %v2702 = vld [vmem:[%s7 + $0xe80] sm:$0xff]
  %v2703 = vld [vmem:[%s7 + $0xe88] sm:$0xff]
  %v2704 = vld [vmem:[%s7 + $0xe90] sm:$0xff]
  %v2705 = vld [vmem:[%s7 + $0xe98] sm:$0xff]
  %v2706 = vld [vmem:[%s7 + $0xea0] sm:$0xff]
  %v2707 = vld [vmem:[%s7 + $0xea8] sm:$0xff]
  %v2708 = vld [vmem:[%s7 + $0xeb0] sm:$0xff]
  %v2709 = vld [vmem:[%s7 + $0xeb8] sm:$0xff]
  %v2710 = vld [vmem:[%s7 + $0xec0] sm:$0xff]
  %v2711 = vld [vmem:[%s7 + $0xec8] sm:$0xff]
  %v2712 = vld [vmem:[%s7 + $0xed0] sm:$0xff]
  %v2713 = vld [vmem:[%s7 + $0xed8] sm:$0xff]
  %v2714 = vld [vmem:[%s7 + $0xee0] sm:$0xff]
  %v2715 = vld [vmem:[%s7 + $0xee8] sm:$0xff]
  %v2716 = vld [vmem:[%s7 + $0xef0] sm:$0xff]
  %v2717 = vld [vmem:[%s7 + $0xef8] sm:$0xff]
  %v2718 = vld [vmem:[%s7 + $0xf00] sm:$0xff]
  %v2719 = vld [vmem:[%s7 + $0xf08] sm:$0xff]
  %v2720 = vld [vmem:[%s7 + $0xf10] sm:$0xff]
  %v2721 = vld [vmem:[%s7 + $0xf18] sm:$0xff]
  %v2722 = vld [vmem:[%s7 + $0xf20] sm:$0xff]
  %v2723 = vld [vmem:[%s7 + $0xf28] sm:$0xff]
  %v2724 = vld [vmem:[%s7 + $0xf30] sm:$0xff]
  %v2725 = vld [vmem:[%s7 + $0xf38] sm:$0xff]
  %v2726 = vld [vmem:[%s7 + $0xf40] sm:$0xff]
  %v2727 = vld [vmem:[%s7 + $0xf48] sm:$0xff]
  %v2728 = vld [vmem:[%s7 + $0xf50] sm:$0xff]
  %v2729 = vld [vmem:[%s7 + $0xf58] sm:$0xff]
  %v2730 = vld [vmem:[%s7 + $0xf60] sm:$0xff]
  %v2731 = vld [vmem:[%s7 + $0xf68] sm:$0xff]
  %v2732 = vld [vmem:[%s7 + $0xf70] sm:$0xff]
  %v2733 = vld [vmem:[%s7 + $0xf78] sm:$0xff]
  %v2734 = vld [vmem:[%s7 + $0xf80] sm:$0xff]
  %v2735 = vld [vmem:[%s7 + $0xf88] sm:$0xff]
  %v2736 = vld [vmem:[%s7 + $0xf90] sm:$0xff]
  %v2737 = vld [vmem:[%s7 + $0xf98] sm:$0xff]
  %v2738 = vld [vmem:[%s7 + $0xfa0] sm:$0xff]
  %v2739 = vld [vmem:[%s7 + $0xfa8] sm:$0xff]
  %v2740 = vld [vmem:[%s7 + $0xfb0] sm:$0xff]
  %v2741 = vld [vmem:[%s7 + $0xfb8] sm:$0xff]
  %v2742 = vld [vmem:[%s7 + $0xfc0] sm:$0xff]
  %v2743 = vld [vmem:[%s7 + $0xfc8] sm:$0xff]
  %v2744 = vld [vmem:[%s7 + $0xfd0] sm:$0xff]
  %v2745 = vld [vmem:[%s7 + $0xfd8] sm:$0xff]
  %v2746 = vld [vmem:[%s7 + $0xfe0] sm:$0xff]
  %v2747 = vld [vmem:[%s7 + $0xfe8] sm:$0xff]
  %v2748 = vld [vmem:[%s7 + $0xff0] sm:$0xff]
  %v2749 = vld [vmem:[%s7 + $0xff8] sm:$0xff]
  %v2750 = vld [vmem:[%s8] sm:$0x1]
  %v2752 = vlaneseq
  %v2753 = vshrl.u32 %v2752, 7
  %v2754 = vsub.s32 0, %v2753
  %v2755 = vrot.slane %v2750, %v2754
  %2757 = vmatprep.subr.mxu0 0.0
  %2758 = vmatpush1.msra.mxu0 %v2253
  %2759 = vmatprep.subr.mxu0 0.0
  %2760 = vmatpush1.msra.mxu0 %v2252
  %2761 = vmatprep.subr.mxu0 0.0
  %2762 = vmatpush1.msra.mxu0 %v2251
  %2763 = vmatprep.subr.mxu0 0.0
  %2764 = vmatpush1.msra.mxu0 %v2250
  %2765 = vmatprep.subr.mxu0 0.0
  %2766 = vmatpush1.msra.mxu0 %v2249
  %2767 = vmatprep.subr.mxu0 0.0
  %2768 = vmatpush1.msra.mxu0 %v2248
  %2769 = vmatprep.subr.mxu0 0.0
  %2770 = vmatpush1.msra.mxu0 %v2247
  %2771 = vmatprep.subr.mxu0 0.0
  %2772 = vmatpush1.msra.mxu0 %v2246
  %2773 = vmatprep.subr.mxu0 0.0
  %2774 = vmatpush1.msra.mxu0 %v2245
  %2775 = vmatprep.subr.mxu0 0.0
  %2776 = vmatpush1.msra.mxu0 %v2244
  %2777 = vmatprep.subr.mxu0 0.0
  %2778 = vmatpush1.msra.mxu0 %v2243
  %2779 = vmatprep.subr.mxu0 0.0
  %2780 = vmatpush1.msra.mxu0 %v2242
  %2781 = vmatprep.subr.mxu0 0.0
  %2782 = vmatpush1.msra.mxu0 %v2241
  %2783 = vmatprep.subr.mxu0 0.0
  %2784 = vmatpush1.msra.mxu0 %v2240
  %2785 = vmatprep.subr.mxu0 0.0
  %2786 = vmatpush1.msra.mxu0 %v2239
  %2787 = vmatprep.subr.mxu0 0.0
  %2788 = vmatpush1.msra.mxu0 %v2238
  %2789 = vmatprep.subr.mxu0 0.0
  %2790 = vmatpush2.msra.mxu0 %v2269
  %2791 = vmatprep.subr.mxu0 0.0
  %2792 = vmatpush2.msra.mxu0 %v2268
  %2793 = vmatprep.subr.mxu0 0.0
  %2794 = vmatpush2.msra.mxu0 %v2267
  %2795 = vmatprep.subr.mxu0 0.0
  %2796 = vmatpush2.msra.mxu0 %v2266
  %2797 = vmatprep.subr.mxu0 0.0
  %2798 = vmatpush2.msra.mxu0 %v2265
  %2799 = vmatprep.subr.mxu0 0.0
  %2800 = vmatpush2.msra.mxu0 %v2264
  %2801 = vmatprep.subr.mxu0 0.0
  %2802 = vmatpush2.msra.mxu0 %v2263
  %2803 = vmatprep.subr.mxu0 0.0
  %2804 = vmatpush2.msra.mxu0 %v2262
  %2805 = vmatprep.subr.mxu0 0.0
  %2806 = vmatpush2.msra.mxu0 %v2261
  %2807 = vmatprep.subr.mxu0 0.0
  %2808 = vmatpush2.msra.mxu0 %v2260
  %2809 = vmatprep.subr.mxu0 0.0
  %2810 = vmatpush2.msra.mxu0 %v2259
  %2811 = vmatprep.subr.mxu0 0.0
  %2812 = vmatpush2.msra.mxu0 %v2258
  %2813 = vmatprep.subr.mxu0 0.0
  %2814 = vmatpush2.msra.mxu0 %v2257
  %2815 = vmatprep.subr.mxu0 0.0
  %2816 = vmatpush2.msra.mxu0 %v2256
  %2817 = vmatprep.subr.mxu0 0.0
  %2818 = vmatpush2.msra.mxu0 %v2255
  %2819 = vmatprep.subr.mxu0 0.0
  %2820 = vmatpush2.msra.mxu0 %v2254
  %2821 = vmatprep.mubr.f32.mxu0 %v1791
  %2822 = vmatmul.mubr.f32.gmra.mxu0 %v1790
  %v2823 = vpop.f32.mrf.mxu0
  %v2824 = vadd.f32 %v2755, %v2823
  %v2825 = vpop.f32.mrf.mxu0
  %2826 = vmatprep.mubr.f32.mxu0 %v1799
  %2827 = vmatmul.mubr.f32.gmra.mxu0 %v1798
  %v2828 = vpop.f32.mrf.mxu0
  %v2829 = vadd.f32 %v2755, %v2828
  %v2830 = vpop.f32.mrf.mxu0
  %2831 = vmatprep.mubr.f32.mxu0 %v1807
  %2832 = vmatmul.mubr.f32.gmra.mxu0 %v1806
  %v2833 = vpop.f32.mrf.mxu0
  %v2834 = vadd.f32 %v2755, %v2833
  %v2835 = vpop.f32.mrf.mxu0
  %2836 = vmatprep.mubr.f32.mxu0 %v1815
  %2837 = vmatmul.mubr.f32.gmra.mxu0 %v1814
  %v2838 = vpop.f32.mrf.mxu0
  %v2839 = vadd.f32 %v2755, %v2838
  %v2840 = vpop.f32.mrf.mxu0
  %2841 = vdwg.mxu0
  %2842 = vmatprep.subr.mxu0 0.0
  %2843 = vmatpush1.msra.mxu0 %v2285
  %2844 = vmatprep.subr.mxu0 0.0
  %2845 = vmatpush1.msra.mxu0 %v2284
  %2846 = vmatprep.subr.mxu0 0.0
  %2847 = vmatpush1.msra.mxu0 %v2283
  %2848 = vmatprep.subr.mxu0 0.0
  %2849 = vmatpush1.msra.mxu0 %v2282
  %2850 = vmatprep.subr.mxu0 0.0
  %2851 = vmatpush1.msra.mxu0 %v2281
  %2852 = vmatprep.subr.mxu0 0.0
  %2853 = vmatpush1.msra.mxu0 %v2280
  %2854 = vmatprep.subr.mxu0 0.0
  %2855 = vmatpush1.msra.mxu0 %v2279
  %2856 = vmatprep.subr.mxu0 0.0
  %2857 = vmatpush1.msra.mxu0 %v2278
  %2858 = vmatprep.subr.mxu0 0.0
  %2859 = vmatpush1.msra.mxu0 %v2277
  %2860 = vmatprep.subr.mxu0 0.0
  %2861 = vmatpush1.msra.mxu0 %v2276
  %2862 = vmatprep.subr.mxu0 0.0
  %2863 = vmatpush1.msra.mxu0 %v2275
  %2864 = vmatprep.subr.mxu0 0.0
  %2865 = vmatpush1.msra.mxu0 %v2274
  %2866 = vmatprep.subr.mxu0 0.0
  %2867 = vmatpush1.msra.mxu0 %v2273
  %2868 = vmatprep.subr.mxu0 0.0
  %2869 = vmatpush1.msra.mxu0 %v2272
  %2870 = vmatprep.subr.mxu0 0.0
  %2871 = vmatpush1.msra.mxu0 %v2271
  %2872 = vmatprep.subr.mxu0 0.0
  %2873 = vmatpush1.msra.mxu0 %v2270
  %2874 = vmatprep.subr.mxu0 0.0
  %2875 = vmatpush2.msra.mxu0 %v2301
  %2876 = vmatprep.subr.mxu0 0.0
  %2877 = vmatpush2.msra.mxu0 %v2300
  %2878 = vmatprep.subr.mxu0 0.0
  %2879 = vmatpush2.msra.mxu0 %v2299
  %2880 = vmatprep.subr.mxu0 0.0
  %2881 = vmatpush2.msra.mxu0 %v2298
  %2882 = vmatprep.subr.mxu0 0.0
  %2883 = vmatpush2.msra.mxu0 %v2297
  %2884 = vmatprep.subr.mxu0 0.0
  %2885 = vmatpush2.msra.mxu0 %v2296
  %2886 = vmatprep.subr.mxu0 0.0
  %2887 = vmatpush2.msra.mxu0 %v2295
  %2888 = vmatprep.subr.mxu0 0.0
  %2889 = vmatpush2.msra.mxu0 %v2294
  %2890 = vmatprep.subr.mxu0 0.0
  %2891 = vmatpush2.msra.mxu0 %v2293
  %2892 = vmatprep.subr.mxu0 0.0
  %2893 = vmatpush2.msra.mxu0 %v2292
  %2894 = vmatprep.subr.mxu0 0.0
  %2895 = vmatpush2.msra.mxu0 %v2291
  %2896 = vmatprep.subr.mxu0 0.0
  %2897 = vmatpush2.msra.mxu0 %v2290
  %2898 = vmatprep.subr.mxu0 0.0
  %2899 = vmatpush2.msra.mxu0 %v2289
  %2900 = vmatprep.subr.mxu0 0.0
  %2901 = vmatpush2.msra.mxu0 %v2288
  %2902 = vmatprep.subr.mxu0 0.0
  %2903 = vmatpush2.msra.mxu0 %v2287
  %2904 = vmatprep.subr.mxu0 0.0
  %2905 = vmatpush2.msra.mxu0 %v2286
  %2906 = vmatprep.mubr.f32.mxu0 %v1793
  %2907 = vmatmul.mubr.f32.gmra.mxu0 %v1792
  %v2908 = vpop.f32.mrf.mxu0
  %v2909 = vadd.f32 %v2824, %v2908
  %v2910 = vpop.f32.mrf.mxu0
  %2911 = vmatprep.mubr.f32.mxu0 %v1801
  %2912 = vmatmul.mubr.f32.gmra.mxu0 %v1800
  %v2913 = vpop.f32.mrf.mxu0
  %v2914 = vadd.f32 %v2829, %v2913
  %v2915 = vpop.f32.mrf.mxu0
  %2916 = vmatprep.mubr.f32.mxu0 %v1809
  %2917 = vmatmul.mubr.f32.gmra.mxu0 %v1808
  %v2918 = vpop.f32.mrf.mxu0
  %v2919 = vadd.f32 %v2834, %v2918
  %v2920 = vpop.f32.mrf.mxu0
  %2921 = vmatprep.mubr.f32.mxu0 %v1817
  %2922 = vmatmul.mubr.f32.gmra.mxu0 %v1816
  %v2923 = vpop.f32.mrf.mxu0
  %v2924 = vadd.f32 %v2839, %v2923
  %v2925 = vpop.f32.mrf.mxu0
  %2926 = vdwg.mxu0
  %2927 = vmatprep.subr.mxu0 0.0
  %2928 = vmatpush1.msra.mxu0 %v2317
  %2929 = vmatprep.subr.mxu0 0.0
  %2930 = vmatpush1.msra.mxu0 %v2316
  %2931 = vmatprep.subr.mxu0 0.0
  %2932 = vmatpush1.msra.mxu0 %v2315
  %2933 = vmatprep.subr.mxu0 0.0
  %2934 = vmatpush1.msra.mxu0 %v2314
  %2935 = vmatprep.subr.mxu0 0.0
  %2936 = vmatpush1.msra.mxu0 %v2313
  %2937 = vmatprep.subr.mxu0 0.0
  %2938 = vmatpush1.msra.mxu0 %v2312
  %2939 = vmatprep.subr.mxu0 0.0
  %2940 = vmatpush1.msra.mxu0 %v2311
  %2941 = vmatprep.subr.mxu0 0.0
  %2942 = vmatpush1.msra.mxu0 %v2310
  %2943 = vmatprep.subr.mxu0 0.0
  %2944 = vmatpush1.msra.mxu0 %v2309
  %2945 = vmatprep.subr.mxu0 0.0
  %2946 = vmatpush1.msra.mxu0 %v2308
  %2947 = vmatprep.subr.mxu0 0.0
  %2948 = vmatpush1.msra.mxu0 %v2307
  %2949 = vmatprep.subr.mxu0 0.0
  %2950 = vmatpush1.msra.mxu0 %v2306
  %2951 = vmatprep.subr.mxu0 0.0
  %2952 = vmatpush1.msra.mxu0 %v2305
  %2953 = vmatprep.subr.mxu0 0.0
  %2954 = vmatpush1.msra.mxu0 %v2304
  %2955 = vmatprep.subr.mxu0 0.0
  %2956 = vmatpush1.msra.mxu0 %v2303
  %2957 = vmatprep.subr.mxu0 0.0
  %2958 = vmatpush1.msra.mxu0 %v2302
  %2959 = vmatprep.subr.mxu0 0.0
  %2960 = vmatpush2.msra.mxu0 %v2333
  %2961 = vmatprep.subr.mxu0 0.0
  %2962 = vmatpush2.msra.mxu0 %v2332
  %2963 = vmatprep.subr.mxu0 0.0
  %2964 = vmatpush2.msra.mxu0 %v2331
  %2965 = vmatprep.subr.mxu0 0.0
  %2966 = vmatpush2.msra.mxu0 %v2330
  %2967 = vmatprep.subr.mxu0 0.0
  %2968 = vmatpush2.msra.mxu0 %v2329
  %2969 = vmatprep.subr.mxu0 0.0
  %2970 = vmatpush2.msra.mxu0 %v2328
  %2971 = vmatprep.subr.mxu0 0.0
  %2972 = vmatpush2.msra.mxu0 %v2327
  %2973 = vmatprep.subr.mxu0 0.0
  %2974 = vmatpush2.msra.mxu0 %v2326
  %2975 = vmatprep.subr.mxu0 0.0
  %2976 = vmatpush2.msra.mxu0 %v2325
  %2977 = vmatprep.subr.mxu0 0.0
  %2978 = vmatpush2.msra.mxu0 %v2324
  %2979 = vmatprep.subr.mxu0 0.0
  %2980 = vmatpush2.msra.mxu0 %v2323
  %2981 = vmatprep.subr.mxu0 0.0
  %2982 = vmatpush2.msra.mxu0 %v2322
  %2983 = vmatprep.subr.mxu0 0.0
  %2984 = vmatpush2.msra.mxu0 %v2321
  %2985 = vmatprep.subr.mxu0 0.0
  %2986 = vmatpush2.msra.mxu0 %v2320
  %2987 = vmatprep.subr.mxu0 0.0
  %2988 = vmatpush2.msra.mxu0 %v2319
  %2989 = vmatprep.subr.mxu0 0.0
  %2990 = vmatpush2.msra.mxu0 %v2318
  %2991 = vmatprep.mubr.f32.mxu0 %v1795
  %2992 = vmatmul.mubr.f32.gmra.mxu0 %v1794
  %v2993 = vpop.f32.mrf.mxu0
  %v2994 = vadd.f32 %v2909, %v2993
  %v2995 = vpop.f32.mrf.mxu0
  %2996 = vmatprep.mubr.f32.mxu0 %v1803
  %2997 = vmatmul.mubr.f32.gmra.mxu0 %v1802
  %v2998 = vpop.f32.mrf.mxu0
  %v2999 = vadd.f32 %v2914, %v2998
  %v3000 = vpop.f32.mrf.mxu0
  %3001 = vmatprep.mubr.f32.mxu0 %v1811
  %3002 = vmatmul.mubr.f32.gmra.mxu0 %v1810
  %v3003 = vpop.f32.mrf.mxu0
  %v3004 = vadd.f32 %v2919, %v3003
  %v3005 = vpop.f32.mrf.mxu0
  %3006 = vmatprep.mubr.f32.mxu0 %v1819
  %3007 = vmatmul.mubr.f32.gmra.mxu0 %v1818
  %v3008 = vpop.f32.mrf.mxu0
  %v3009 = vadd.f32 %v2924, %v3008
  %v3010 = vpop.f32.mrf.mxu0
  %3011 = vdwg.mxu0
  %3012 = vmatprep.subr.mxu0 0.0
  %3013 = vmatpush1.msra.mxu0 %v2349
  %3014 = vmatprep.subr.mxu0 0.0
  %3015 = vmatpush1.msra.mxu0 %v2348
  %3016 = vmatprep.subr.mxu0 0.0
  %3017 = vmatpush1.msra.mxu0 %v2347
  %3018 = vmatprep.subr.mxu0 0.0
  %3019 = vmatpush1.msra.mxu0 %v2346
  %3020 = vmatprep.subr.mxu0 0.0
  %3021 = vmatpush1.msra.mxu0 %v2345
  %3022 = vmatprep.subr.mxu0 0.0
  %3023 = vmatpush1.msra.mxu0 %v2344
  %3024 = vmatprep.subr.mxu0 0.0
  %3025 = vmatpush1.msra.mxu0 %v2343
  %3026 = vmatprep.subr.mxu0 0.0
  %3027 = vmatpush1.msra.mxu0 %v2342
  %3028 = vmatprep.subr.mxu0 0.0
  %3029 = vmatpush1.msra.mxu0 %v2341
  %3030 = vmatprep.subr.mxu0 0.0
  %3031 = vmatpush1.msra.mxu0 %v2340
  %3032 = vmatprep.subr.mxu0 0.0
  %3033 = vmatpush1.msra.mxu0 %v2339
  %3034 = vmatprep.subr.mxu0 0.0
  %3035 = vmatpush1.msra.mxu0 %v2338
  %3036 = vmatprep.subr.mxu0 0.0
  %3037 = vmatpush1.msra.mxu0 %v2337
  %3038 = vmatprep.subr.mxu0 0.0
  %3039 = vmatpush1.msra.mxu0 %v2336
  %3040 = vmatprep.subr.mxu0 0.0
  %3041 = vmatpush1.msra.mxu0 %v2335
  %3042 = vmatprep.subr.mxu0 0.0
  %3043 = vmatpush1.msra.mxu0 %v2334
  %3044 = vmatprep.subr.mxu0 0.0
  %3045 = vmatpush2.msra.mxu0 %v2365
  %3046 = vmatprep.subr.mxu0 0.0
  %3047 = vmatpush2.msra.mxu0 %v2364
  %3048 = vmatprep.subr.mxu0 0.0
  %3049 = vmatpush2.msra.mxu0 %v2363
  %3050 = vmatprep.subr.mxu0 0.0
  %3051 = vmatpush2.msra.mxu0 %v2362
  %3052 = vmatprep.subr.mxu0 0.0
  %3053 = vmatpush2.msra.mxu0 %v2361
  %3054 = vmatprep.subr.mxu0 0.0
  %3055 = vmatpush2.msra.mxu0 %v2360
  %3056 = vmatprep.subr.mxu0 0.0
  %3057 = vmatpush2.msra.mxu0 %v2359
  %3058 = vmatprep.subr.mxu0 0.0
  %3059 = vmatpush2.msra.mxu0 %v2358
  %3060 = vmatprep.subr.mxu0 0.0
  %3061 = vmatpush2.msra.mxu0 %v2357
  %3062 = vmatprep.subr.mxu0 0.0
  %3063 = vmatpush2.msra.mxu0 %v2356
  %3064 = vmatprep.subr.mxu0 0.0
  %3065 = vmatpush2.msra.mxu0 %v2355
  %3066 = vmatprep.subr.mxu0 0.0
  %3067 = vmatpush2.msra.mxu0 %v2354
  %3068 = vmatprep.subr.mxu0 0.0
  %3069 = vmatpush2.msra.mxu0 %v2353
  %3070 = vmatprep.subr.mxu0 0.0
  %3071 = vmatpush2.msra.mxu0 %v2352
  %3072 = vmatprep.subr.mxu0 0.0
  %3073 = vmatpush2.msra.mxu0 %v2351
  %3074 = vmatprep.subr.mxu0 0.0
  %3075 = vmatpush2.msra.mxu0 %v2350
  %3076 = vmatprep.mubr.f32.mxu0 %v1797
  %3077 = vmatmul.mubr.f32.gmra.mxu0 %v1796
  %v3078 = vpop.f32.mrf.mxu0
  %v3079 = vadd.f32 %v2994, %v3078
  %v3080 = vpop.f32.mrf.mxu0
  %3081 = vmatprep.mubr.f32.mxu0 %v1805
  %3082 = vmatmul.mubr.f32.gmra.mxu0 %v1804
  %v3083 = vpop.f32.mrf.mxu0
  %v3084 = vadd.f32 %v2999, %v3083
  %v3085 = vpop.f32.mrf.mxu0
  %3086 = vmatprep.mubr.f32.mxu0 %v1813
  %3087 = vmatmul.mubr.f32.gmra.mxu0 %v1812
  %v3088 = vpop.f32.mrf.mxu0
  %v3089 = vadd.f32 %v3004, %v3088
  %v3090 = vpop.f32.mrf.mxu0
  %3091 = vmatprep.mubr.f32.mxu0 %v1821
  %3092 = vmatmul.mubr.f32.gmra.mxu0 %v1820
  %v3093 = vpop.f32.mrf.mxu0
  %v3094 = vadd.f32 %v3009, %v3093
  %v3095 = vpop.f32.mrf.mxu0
  %3096 = vdwg.mxu0
  %3097 = vmatprep.subr.mxu0 0.0
  %3098 = vmatpush1.msra.mxu0 %v2381
  %3099 = vmatprep.subr.mxu0 0.0
  %3100 = vmatpush1.msra.mxu0 %v2380
  %3101 = vmatprep.subr.mxu0 0.0
  %3102 = vmatpush1.msra.mxu0 %v2379
  %3103 = vmatprep.subr.mxu0 0.0
  %3104 = vmatpush1.msra.mxu0 %v2378
  %3105 = vmatprep.subr.mxu0 0.0
  %3106 = vmatpush1.msra.mxu0 %v2377
  %3107 = vmatprep.subr.mxu0 0.0
  %3108 = vmatpush1.msra.mxu0 %v2376
  %3109 = vmatprep.subr.mxu0 0.0
  %3110 = vmatpush1.msra.mxu0 %v2375
  %3111 = vmatprep.subr.mxu0 0.0
  %3112 = vmatpush1.msra.mxu0 %v2374
  %3113 = vmatprep.subr.mxu0 0.0
  %3114 = vmatpush1.msra.mxu0 %v2373
  %3115 = vmatprep.subr.mxu0 0.0
  %3116 = vmatpush1.msra.mxu0 %v2372
  %3117 = vmatprep.subr.mxu0 0.0
  %3118 = vmatpush1.msra.mxu0 %v2371
  %3119 = vmatprep.subr.mxu0 0.0
  %3120 = vmatpush1.msra.mxu0 %v2370
  %3121 = vmatprep.subr.mxu0 0.0
  %3122 = vmatpush1.msra.mxu0 %v2369
  %3123 = vmatprep.subr.mxu0 0.0
  %3124 = vmatpush1.msra.mxu0 %v2368
  %3125 = vmatprep.subr.mxu0 0.0
  %3126 = vmatpush1.msra.mxu0 %v2367
  %3127 = vmatprep.subr.mxu0 0.0
  %3128 = vmatpush1.msra.mxu0 %v2366
  %3129 = vmatprep.subr.mxu0 0.0
  %3130 = vmatpush2.msra.mxu0 %v2397
  %3131 = vmatprep.subr.mxu0 0.0
  %3132 = vmatpush2.msra.mxu0 %v2396
  %3133 = vmatprep.subr.mxu0 0.0
  %3134 = vmatpush2.msra.mxu0 %v2395
  %3135 = vmatprep.subr.mxu0 0.0
  %3136 = vmatpush2.msra.mxu0 %v2394
  %3137 = vmatprep.subr.mxu0 0.0
  %3138 = vmatpush2.msra.mxu0 %v2393
  %3139 = vmatprep.subr.mxu0 0.0
  %3140 = vmatpush2.msra.mxu0 %v2392
  %3141 = vmatprep.subr.mxu0 0.0
  %3142 = vmatpush2.msra.mxu0 %v2391
  %3143 = vmatprep.subr.mxu0 0.0
  %3144 = vmatpush2.msra.mxu0 %v2390
  %3145 = vmatprep.subr.mxu0 0.0
  %3146 = vmatpush2.msra.mxu0 %v2389
  %3147 = vmatprep.subr.mxu0 0.0
  %3148 = vmatpush2.msra.mxu0 %v2388
  %3149 = vmatprep.subr.mxu0 0.0
  %3150 = vmatpush2.msra.mxu0 %v2387
  %3151 = vmatprep.subr.mxu0 0.0
  %3152 = vmatpush2.msra.mxu0 %v2386
  %3153 = vmatprep.subr.mxu0 0.0
  %3154 = vmatpush2.msra.mxu0 %v2385
  %3155 = vmatprep.subr.mxu0 0.0
  %3156 = vmatpush2.msra.mxu0 %v2384
  %3157 = vmatprep.subr.mxu0 0.0
  %3158 = vmatpush2.msra.mxu0 %v2383
  %3159 = vmatprep.subr.mxu0 0.0
  %3160 = vmatpush2.msra.mxu0 %v2382
  %3161 = vmatprep.mubr.f32.mxu0 %v1951
  %3162 = vmatmul.mubr.f32.gmra.mxu0 %v1950
  %v3163 = vpop.f32.mrf.mxu0
  %v3164 = vadd.f32 %v3079, %v3163
  %v3165 = vpop.f32.mrf.mxu0
  %3166 = vmatprep.mubr.f32.mxu0 %v1959
  %3167 = vmatmul.mubr.f32.gmra.mxu0 %v1958
  %v3168 = vpop.f32.mrf.mxu0
  %v3169 = vadd.f32 %v3084, %v3168
  %v3170 = vpop.f32.mrf.mxu0
  %3171 = vmatprep.mubr.f32.mxu0 %v1967
  %3172 = vmatmul.mubr.f32.gmra.mxu0 %v1966
  %v3173 = vpop.f32.mrf.mxu0
  %v3174 = vadd.f32 %v3089, %v3173
  %v3175 = vpop.f32.mrf.mxu0
  %3176 = vmatprep.mubr.f32.mxu0 %v1975
  %3177 = vmatmul.mubr.f32.gmra.mxu0 %v1974
  %v3178 = vpop.f32.mrf.mxu0
  %v3179 = vadd.f32 %v3094, %v3178
  %v3180 = vpop.f32.mrf.mxu0
  %3181 = vdwg.mxu0
  %3182 = vmatprep.subr.mxu0 0.0
  %3183 = vmatpush1.msra.mxu0 %v2413
  %3184 = vmatprep.subr.mxu0 0.0
  %3185 = vmatpush1.msra.mxu0 %v2412
  %3186 = vmatprep.subr.mxu0 0.0
  %3187 = vmatpush1.msra.mxu0 %v2411
  %3188 = vmatprep.subr.mxu0 0.0
  %3189 = vmatpush1.msra.mxu0 %v2410
  %3190 = vmatprep.subr.mxu0 0.0
  %3191 = vmatpush1.msra.mxu0 %v2409
  %3192 = vmatprep.subr.mxu0 0.0
  %3193 = vmatpush1.msra.mxu0 %v2408
  %3194 = vmatprep.subr.mxu0 0.0
  %3195 = vmatpush1.msra.mxu0 %v2407
  %3196 = vmatprep.subr.mxu0 0.0
  %3197 = vmatpush1.msra.mxu0 %v2406
  %3198 = vmatprep.subr.mxu0 0.0
  %3199 = vmatpush1.msra.mxu0 %v2405
  %3200 = vmatprep.subr.mxu0 0.0
  %3201 = vmatpush1.msra.mxu0 %v2404
  %3202 = vmatprep.subr.mxu0 0.0
  %3203 = vmatpush1.msra.mxu0 %v2403
  %3204 = vmatprep.subr.mxu0 0.0
  %3205 = vmatpush1.msra.mxu0 %v2402
  %3206 = vmatprep.subr.mxu0 0.0
  %3207 = vmatpush1.msra.mxu0 %v2401
  %3208 = vmatprep.subr.mxu0 0.0
  %3209 = vmatpush1.msra.mxu0 %v2400
  %3210 = vmatprep.subr.mxu0 0.0
  %3211 = vmatpush1.msra.mxu0 %v2399
  %3212 = vmatprep.subr.mxu0 0.0
  %3213 = vmatpush1.msra.mxu0 %v2398
  %3214 = vmatprep.subr.mxu0 0.0
  %3215 = vmatpush2.msra.mxu0 %v2429
  %3216 = vmatprep.subr.mxu0 0.0
  %3217 = vmatpush2.msra.mxu0 %v2428
  %3218 = vmatprep.subr.mxu0 0.0
  %3219 = vmatpush2.msra.mxu0 %v2427
  %3220 = vmatprep.subr.mxu0 0.0
  %3221 = vmatpush2.msra.mxu0 %v2426
  %3222 = vmatprep.subr.mxu0 0.0
  %3223 = vmatpush2.msra.mxu0 %v2425
  %3224 = vmatprep.subr.mxu0 0.0
  %3225 = vmatpush2.msra.mxu0 %v2424
  %3226 = vmatprep.subr.mxu0 0.0
  %3227 = vmatpush2.msra.mxu0 %v2423
  %3228 = vmatprep.subr.mxu0 0.0
  %3229 = vmatpush2.msra.mxu0 %v2422
  %3230 = vmatprep.subr.mxu0 0.0
  %3231 = vmatpush2.msra.mxu0 %v2421
  %3232 = vmatprep.subr.mxu0 0.0
  %3233 = vmatpush2.msra.mxu0 %v2420
  %3234 = vmatprep.subr.mxu0 0.0
  %3235 = vmatpush2.msra.mxu0 %v2419
  %3236 = vmatprep.subr.mxu0 0.0
  %3237 = vmatpush2.msra.mxu0 %v2418
  %3238 = vmatprep.subr.mxu0 0.0
  %3239 = vmatpush2.msra.mxu0 %v2417
  %3240 = vmatprep.subr.mxu0 0.0
  %3241 = vmatpush2.msra.mxu0 %v2416
  %3242 = vmatprep.subr.mxu0 0.0
  %3243 = vmatpush2.msra.mxu0 %v2415
  %3244 = vmatprep.subr.mxu0 0.0
  %3245 = vmatpush2.msra.mxu0 %v2414
  %3246 = vmatprep.mubr.f32.mxu0 %v1953
  %3247 = vmatmul.mubr.f32.gmra.mxu0 %v1952
  %v3248 = vpop.f32.mrf.mxu0
  %v3249 = vadd.f32 %v3164, %v3248
  %v3250 = vpop.f32.mrf.mxu0
  %3251 = vmatprep.mubr.f32.mxu0 %v1961
  %3252 = vmatmul.mubr.f32.gmra.mxu0 %v1960
  %v3253 = vpop.f32.mrf.mxu0
  %v3254 = vadd.f32 %v3169, %v3253
  %v3255 = vpop.f32.mrf.mxu0
  %3256 = vmatprep.mubr.f32.mxu0 %v1969
  %3257 = vmatmul.mubr.f32.gmra.mxu0 %v1968
  %v3258 = vpop.f32.mrf.mxu0
  %v3259 = vadd.f32 %v3174, %v3258
  %v3260 = vpop.f32.mrf.mxu0
  %3261 = vmatprep.mubr.f32.mxu0 %v1977
  %3262 = vmatmul.mubr.f32.gmra.mxu0 %v1976
  %v3263 = vpop.f32.mrf.mxu0
  %v3264 = vadd.f32 %v3179, %v3263
  %v3265 = vpop.f32.mrf.mxu0
  %3266 = vdwg.mxu0
  %3267 = vmatprep.subr.mxu0 0.0
  %3268 = vmatpush1.msra.mxu0 %v2445
  %3269 = vmatprep.subr.mxu0 0.0
  %3270 = vmatpush1.msra.mxu0 %v2444
  %3271 = vmatprep.subr.mxu0 0.0
  %3272 = vmatpush1.msra.mxu0 %v2443
  %3273 = vmatprep.subr.mxu0 0.0
  %3274 = vmatpush1.msra.mxu0 %v2442
  %3275 = vmatprep.subr.mxu0 0.0
  %3276 = vmatpush1.msra.mxu0 %v2441
  %3277 = vmatprep.subr.mxu0 0.0
  %3278 = vmatpush1.msra.mxu0 %v2440
  %3279 = vmatprep.subr.mxu0 0.0
  %3280 = vmatpush1.msra.mxu0 %v2439
  %3281 = vmatprep.subr.mxu0 0.0
  %3282 = vmatpush1.msra.mxu0 %v2438
  %3283 = vmatprep.subr.mxu0 0.0
  %3284 = vmatpush1.msra.mxu0 %v2437
  %3285 = vmatprep.subr.mxu0 0.0
  %3286 = vmatpush1.msra.mxu0 %v2436
  %3287 = vmatprep.subr.mxu0 0.0
  %3288 = vmatpush1.msra.mxu0 %v2435
  %3289 = vmatprep.subr.mxu0 0.0
  %3290 = vmatpush1.msra.mxu0 %v2434
  %3291 = vmatprep.subr.mxu0 0.0
  %3292 = vmatpush1.msra.mxu0 %v2433
  %3293 = vmatprep.subr.mxu0 0.0
  %3294 = vmatpush1.msra.mxu0 %v2432
  %3295 = vmatprep.subr.mxu0 0.0
  %3296 = vmatpush1.msra.mxu0 %v2431
  %3297 = vmatprep.subr.mxu0 0.0
  %3298 = vmatpush1.msra.mxu0 %v2430
  %3299 = vmatprep.subr.mxu0 0.0
  %3300 = vmatpush2.msra.mxu0 %v2461
  %3301 = vmatprep.subr.mxu0 0.0
  %3302 = vmatpush2.msra.mxu0 %v2460
  %3303 = vmatprep.subr.mxu0 0.0
  %3304 = vmatpush2.msra.mxu0 %v2459
  %3305 = vmatprep.subr.mxu0 0.0
  %3306 = vmatpush2.msra.mxu0 %v2458
  %3307 = vmatprep.subr.mxu0 0.0
  %3308 = vmatpush2.msra.mxu0 %v2457
  %3309 = vmatprep.subr.mxu0 0.0
  %3310 = vmatpush2.msra.mxu0 %v2456
  %3311 = vmatprep.subr.mxu0 0.0
  %3312 = vmatpush2.msra.mxu0 %v2455
  %3313 = vmatprep.subr.mxu0 0.0
  %3314 = vmatpush2.msra.mxu0 %v2454
  %3315 = vmatprep.subr.mxu0 0.0
  %3316 = vmatpush2.msra.mxu0 %v2453
  %3317 = vmatprep.subr.mxu0 0.0
  %3318 = vmatpush2.msra.mxu0 %v2452
  %3319 = vmatprep.subr.mxu0 0.0
  %3320 = vmatpush2.msra.mxu0 %v2451
  %3321 = vmatprep.subr.mxu0 0.0
  %3322 = vmatpush2.msra.mxu0 %v2450
  %3323 = vmatprep.subr.mxu0 0.0
  %3324 = vmatpush2.msra.mxu0 %v2449
  %3325 = vmatprep.subr.mxu0 0.0
  %3326 = vmatpush2.msra.mxu0 %v2448
  %3327 = vmatprep.subr.mxu0 0.0
  %3328 = vmatpush2.msra.mxu0 %v2447
  %3329 = vmatprep.subr.mxu0 0.0
  %3330 = vmatpush2.msra.mxu0 %v2446
  %3331 = vmatprep.mubr.f32.mxu0 %v1955
  %3332 = vmatmul.mubr.f32.gmra.mxu0 %v1954
  %v3333 = vpop.f32.mrf.mxu0
  %v3334 = vadd.f32 %v3249, %v3333
  %v3335 = vpop.f32.mrf.mxu0
  %3336 = vmatprep.mubr.f32.mxu0 %v1963
  %3337 = vmatmul.mubr.f32.gmra.mxu0 %v1962
  %v3338 = vpop.f32.mrf.mxu0
  %v3339 = vadd.f32 %v3254, %v3338
  %v3340 = vpop.f32.mrf.mxu0
  %3341 = vmatprep.mubr.f32.mxu0 %v1971
  %3342 = vmatmul.mubr.f32.gmra.mxu0 %v1970
  %v3343 = vpop.f32.mrf.mxu0
  %v3344 = vadd.f32 %v3259, %v3343
  %v3345 = vpop.f32.mrf.mxu0
  %3346 = vmatprep.mubr.f32.mxu0 %v1979
  %3347 = vmatmul.mubr.f32.gmra.mxu0 %v1978
  %v3348 = vpop.f32.mrf.mxu0
  %v3349 = vadd.f32 %v3264, %v3348
  %v3350 = vpop.f32.mrf.mxu0
  %3351 = vdwg.mxu0
  %3352 = vmatprep.subr.mxu0 0.0
  %3353 = vmatpush1.msra.mxu0 %v2477
  %3354 = vmatprep.subr.mxu0 0.0
  %3355 = vmatpush1.msra.mxu0 %v2476
  %3356 = vmatprep.subr.mxu0 0.0
  %3357 = vmatpush1.msra.mxu0 %v2475
  %3358 = vmatprep.subr.mxu0 0.0
  %3359 = vmatpush1.msra.mxu0 %v2474
  %3360 = vmatprep.subr.mxu0 0.0
  %3361 = vmatpush1.msra.mxu0 %v2473
  %3362 = vmatprep.subr.mxu0 0.0
  %3363 = vmatpush1.msra.mxu0 %v2472
  %3364 = vmatprep.subr.mxu0 0.0
  %3365 = vmatpush1.msra.mxu0 %v2471
  %3366 = vmatprep.subr.mxu0 0.0
  %3367 = vmatpush1.msra.mxu0 %v2470
  %3368 = vmatprep.subr.mxu0 0.0
  %3369 = vmatpush1.msra.mxu0 %v2469
  %3370 = vmatprep.subr.mxu0 0.0
  %3371 = vmatpush1.msra.mxu0 %v2468
  %3372 = vmatprep.subr.mxu0 0.0
  %3373 = vmatpush1.msra.mxu0 %v2467
  %3374 = vmatprep.subr.mxu0 0.0
  %3375 = vmatpush1.msra.mxu0 %v2466
  %3376 = vmatprep.subr.mxu0 0.0
  %3377 = vmatpush1.msra.mxu0 %v2465
  %3378 = vmatprep.subr.mxu0 0.0
  %3379 = vmatpush1.msra.mxu0 %v2464
  %3380 = vmatprep.subr.mxu0 0.0
  %3381 = vmatpush1.msra.mxu0 %v2463
  %3382 = vmatprep.subr.mxu0 0.0
  %3383 = vmatpush1.msra.mxu0 %v2462
  %3384 = vmatprep.subr.mxu0 0.0
  %3385 = vmatpush2.msra.mxu0 %v2493
  %3386 = vmatprep.subr.mxu0 0.0
  %3387 = vmatpush2.msra.mxu0 %v2492
  %3388 = vmatprep.subr.mxu0 0.0
  %3389 = vmatpush2.msra.mxu0 %v2491
  %3390 = vmatprep.subr.mxu0 0.0
  %3391 = vmatpush2.msra.mxu0 %v2490
  %3392 = vmatprep.subr.mxu0 0.0
  %3393 = vmatpush2.msra.mxu0 %v2489
  %3394 = vmatprep.subr.mxu0 0.0
  %3395 = vmatpush2.msra.mxu0 %v2488
  %3396 = vmatprep.subr.mxu0 0.0
  %3397 = vmatpush2.msra.mxu0 %v2487
  %3398 = vmatprep.subr.mxu0 0.0
  %3399 = vmatpush2.msra.mxu0 %v2486
  %3400 = vmatprep.subr.mxu0 0.0
  %3401 = vmatpush2.msra.mxu0 %v2485
  %3402 = vmatprep.subr.mxu0 0.0
  %3403 = vmatpush2.msra.mxu0 %v2484
  %3404 = vmatprep.subr.mxu0 0.0
  %3405 = vmatpush2.msra.mxu0 %v2483
  %3406 = vmatprep.subr.mxu0 0.0
  %3407 = vmatpush2.msra.mxu0 %v2482
  %3408 = vmatprep.subr.mxu0 0.0
  %3409 = vmatpush2.msra.mxu0 %v2481
  %3410 = vmatprep.subr.mxu0 0.0
  %3411 = vmatpush2.msra.mxu0 %v2480
  %3412 = vmatprep.subr.mxu0 0.0
  %3413 = vmatpush2.msra.mxu0 %v2479
  %3414 = vmatprep.subr.mxu0 0.0
  %3415 = vmatpush2.msra.mxu0 %v2478
  %3416 = vmatprep.mubr.f32.mxu0 %v1957
  %3417 = vmatmul.mubr.f32.gmra.mxu0 %v1956
  %v3418 = vpop.f32.mrf.mxu0
  %v3419 = vadd.f32 %v3334, %v3418
  %v3420 = vpop.f32.mrf.mxu0
  %3421 = vmatprep.mubr.f32.mxu0 %v1965
  %3422 = vmatmul.mubr.f32.gmra.mxu0 %v1964
  %v3423 = vpop.f32.mrf.mxu0
  %v3424 = vadd.f32 %v3339, %v3423
  %v3425 = vpop.f32.mrf.mxu0
  %3426 = vmatprep.mubr.f32.mxu0 %v1973
  %3427 = vmatmul.mubr.f32.gmra.mxu0 %v1972
  %v3428 = vpop.f32.mrf.mxu0
  %v3429 = vadd.f32 %v3344, %v3428
  %v3430 = vpop.f32.mrf.mxu0
  %3431 = vmatprep.mubr.f32.mxu0 %v1981
  %3432 = vmatmul.mubr.f32.gmra.mxu0 %v1980
  %v3433 = vpop.f32.mrf.mxu0
  %v3434 = vadd.f32 %v3349, %v3433
  %v3435 = vpop.f32.mrf.mxu0
  %3436 = vdwg.mxu0
  %3437 = vmatprep.subr.mxu0 0.0
  %3438 = vmatpush1.msra.mxu0 %v2509
  %3439 = vmatprep.subr.mxu0 0.0
  %3440 = vmatpush1.msra.mxu0 %v2508
  %3441 = vmatprep.subr.mxu0 0.0
  %3442 = vmatpush1.msra.mxu0 %v2507
  %3443 = vmatprep.subr.mxu0 0.0
  %3444 = vmatpush1.msra.mxu0 %v2506
  %3445 = vmatprep.subr.mxu0 0.0
  %3446 = vmatpush1.msra.mxu0 %v2505
  %3447 = vmatprep.subr.mxu0 0.0
  %3448 = vmatpush1.msra.mxu0 %v2504
  %3449 = vmatprep.subr.mxu0 0.0
  %3450 = vmatpush1.msra.mxu0 %v2503
  %3451 = vmatprep.subr.mxu0 0.0
  %3452 = vmatpush1.msra.mxu0 %v2502
  %3453 = vmatprep.subr.mxu0 0.0
  %3454 = vmatpush1.msra.mxu0 %v2501
  %3455 = vmatprep.subr.mxu0 0.0
  %3456 = vmatpush1.msra.mxu0 %v2500
  %3457 = vmatprep.subr.mxu0 0.0
  %3458 = vmatpush1.msra.mxu0 %v2499
  %3459 = vmatprep.subr.mxu0 0.0
  %3460 = vmatpush1.msra.mxu0 %v2498
  %3461 = vmatprep.subr.mxu0 0.0
  %3462 = vmatpush1.msra.mxu0 %v2497
  %3463 = vmatprep.subr.mxu0 0.0
  %3464 = vmatpush1.msra.mxu0 %v2496
  %3465 = vmatprep.subr.mxu0 0.0
  %3466 = vmatpush1.msra.mxu0 %v2495
  %3467 = vmatprep.subr.mxu0 0.0
  %3468 = vmatpush1.msra.mxu0 %v2494
  %3469 = vmatprep.subr.mxu0 0.0
  %3470 = vmatpush2.msra.mxu0 %v2525
  %3471 = vmatprep.subr.mxu0 0.0
  %3472 = vmatpush2.msra.mxu0 %v2524
  %3473 = vmatprep.subr.mxu0 0.0
  %3474 = vmatpush2.msra.mxu0 %v2523
  %3475 = vmatprep.subr.mxu0 0.0
  %3476 = vmatpush2.msra.mxu0 %v2522
  %3477 = vmatprep.subr.mxu0 0.0
  %3478 = vmatpush2.msra.mxu0 %v2521
  %3479 = vmatprep.subr.mxu0 0.0
  %3480 = vmatpush2.msra.mxu0 %v2520
  %3481 = vmatprep.subr.mxu0 0.0
  %3482 = vmatpush2.msra.mxu0 %v2519
  %3483 = vmatprep.subr.mxu0 0.0
  %3484 = vmatpush2.msra.mxu0 %v2518
  %3485 = vmatprep.subr.mxu0 0.0
  %3486 = vmatpush2.msra.mxu0 %v2517
  %3487 = vmatprep.subr.mxu0 0.0
  %3488 = vmatpush2.msra.mxu0 %v2516
  %3489 = vmatprep.subr.mxu0 0.0
  %3490 = vmatpush2.msra.mxu0 %v2515
  %3491 = vmatprep.subr.mxu0 0.0
  %3492 = vmatpush2.msra.mxu0 %v2514
  %3493 = vmatprep.subr.mxu0 0.0
  %3494 = vmatpush2.msra.mxu0 %v2513
  %3495 = vmatprep.subr.mxu0 0.0
  %3496 = vmatpush2.msra.mxu0 %v2512
  %3497 = vmatprep.subr.mxu0 0.0
  %3498 = vmatpush2.msra.mxu0 %v2511
  %3499 = vmatprep.subr.mxu0 0.0
  %3500 = vmatpush2.msra.mxu0 %v2510
  %3501 = vmatprep.mubr.f32.mxu0 %v2079
  %3502 = vmatmul.mubr.f32.gmra.mxu0 %v2078
  %v3503 = vpop.f32.mrf.mxu0
  %v3504 = vadd.f32 %v3419, %v3503
  %v3505 = vpop.f32.mrf.mxu0
  %3506 = vmatprep.mubr.f32.mxu0 %v2087
  %3507 = vmatmul.mubr.f32.gmra.mxu0 %v2086
  %v3508 = vpop.f32.mrf.mxu0
  %v3509 = vadd.f32 %v3424, %v3508
  %v3510 = vpop.f32.mrf.mxu0
  %3511 = vmatprep.mubr.f32.mxu0 %v2095
  %3512 = vmatmul.mubr.f32.gmra.mxu0 %v2094
  %v3513 = vpop.f32.mrf.mxu0
  %v3514 = vadd.f32 %v3429, %v3513
  %v3515 = vpop.f32.mrf.mxu0
  %3516 = vmatprep.mubr.f32.mxu0 %v2103
  %3517 = vmatmul.mubr.f32.gmra.mxu0 %v2102
  %v3518 = vpop.f32.mrf.mxu0
  %v3519 = vadd.f32 %v3434, %v3518
  %v3520 = vpop.f32.mrf.mxu0
  %3521 = vdwg.mxu0
  %3522 = vmatprep.subr.mxu0 0.0
  %3523 = vmatpush1.msra.mxu0 %v2541
  %3524 = vmatprep.subr.mxu0 0.0
  %3525 = vmatpush1.msra.mxu0 %v2540
  %3526 = vmatprep.subr.mxu0 0.0
  %3527 = vmatpush1.msra.mxu0 %v2539
  %3528 = vmatprep.subr.mxu0 0.0
  %3529 = vmatpush1.msra.mxu0 %v2538
  %3530 = vmatprep.subr.mxu0 0.0
  %3531 = vmatpush1.msra.mxu0 %v2537
  %3532 = vmatprep.subr.mxu0 0.0
  %3533 = vmatpush1.msra.mxu0 %v2536
  %3534 = vmatprep.subr.mxu0 0.0
  %3535 = vmatpush1.msra.mxu0 %v2535
  %3536 = vmatprep.subr.mxu0 0.0
  %3537 = vmatpush1.msra.mxu0 %v2534
  %3538 = vmatprep.subr.mxu0 0.0
  %3539 = vmatpush1.msra.mxu0 %v2533
  %3540 = vmatprep.subr.mxu0 0.0
  %3541 = vmatpush1.msra.mxu0 %v2532
  %3542 = vmatprep.subr.mxu0 0.0
  %3543 = vmatpush1.msra.mxu0 %v2531
  %3544 = vmatprep.subr.mxu0 0.0
  %3545 = vmatpush1.msra.mxu0 %v2530
  %3546 = vmatprep.subr.mxu0 0.0
  %3547 = vmatpush1.msra.mxu0 %v2529
  %3548 = vmatprep.subr.mxu0 0.0
  %3549 = vmatpush1.msra.mxu0 %v2528
  %3550 = vmatprep.subr.mxu0 0.0
  %3551 = vmatpush1.msra.mxu0 %v2527
  %3552 = vmatprep.subr.mxu0 0.0
  %3553 = vmatpush1.msra.mxu0 %v2526
  %3554 = vmatprep.subr.mxu0 0.0
  %3555 = vmatpush2.msra.mxu0 %v2557
  %3556 = vmatprep.subr.mxu0 0.0
  %3557 = vmatpush2.msra.mxu0 %v2556
  %3558 = vmatprep.subr.mxu0 0.0
  %3559 = vmatpush2.msra.mxu0 %v2555
  %3560 = vmatprep.subr.mxu0 0.0
  %3561 = vmatpush2.msra.mxu0 %v2554
  %3562 = vmatprep.subr.mxu0 0.0
  %3563 = vmatpush2.msra.mxu0 %v2553
  %3564 = vmatprep.subr.mxu0 0.0
  %3565 = vmatpush2.msra.mxu0 %v2552
  %3566 = vmatprep.subr.mxu0 0.0
  %3567 = vmatpush2.msra.mxu0 %v2551
  %3568 = vmatprep.subr.mxu0 0.0
  %3569 = vmatpush2.msra.mxu0 %v2550
  %3570 = vmatprep.subr.mxu0 0.0
  %3571 = vmatpush2.msra.mxu0 %v2549
  %3572 = vmatprep.subr.mxu0 0.0
  %3573 = vmatpush2.msra.mxu0 %v2548
  %3574 = vmatprep.subr.mxu0 0.0
  %3575 = vmatpush2.msra.mxu0 %v2547
  %3576 = vmatprep.subr.mxu0 0.0
  %3577 = vmatpush2.msra.mxu0 %v2546
  %3578 = vmatprep.subr.mxu0 0.0
  %3579 = vmatpush2.msra.mxu0 %v2545
  %3580 = vmatprep.subr.mxu0 0.0
  %3581 = vmatpush2.msra.mxu0 %v2544
  %3582 = vmatprep.subr.mxu0 0.0
  %3583 = vmatpush2.msra.mxu0 %v2543
  %3584 = vmatprep.subr.mxu0 0.0
  %3585 = vmatpush2.msra.mxu0 %v2542
  %3586 = vmatprep.mubr.f32.mxu0 %v2081
  %3587 = vmatmul.mubr.f32.gmra.mxu0 %v2080
  %v3588 = vpop.f32.mrf.mxu0
  %v3589 = vadd.f32 %v3504, %v3588
  %v3590 = vpop.f32.mrf.mxu0
  %3591 = vmatprep.mubr.f32.mxu0 %v2089
  %3592 = vmatmul.mubr.f32.gmra.mxu0 %v2088
  %v3593 = vpop.f32.mrf.mxu0
  %v3594 = vadd.f32 %v3509, %v3593
  %v3595 = vpop.f32.mrf.mxu0
  %3596 = vmatprep.mubr.f32.mxu0 %v2097
  %3597 = vmatmul.mubr.f32.gmra.mxu0 %v2096
  %v3598 = vpop.f32.mrf.mxu0
  %v3599 = vadd.f32 %v3514, %v3598
  %v3600 = vpop.f32.mrf.mxu0
  %3601 = vmatprep.mubr.f32.mxu0 %v2105
  %3602 = vmatmul.mubr.f32.gmra.mxu0 %v2104
  %v3603 = vpop.f32.mrf.mxu0
  %v3604 = vadd.f32 %v3519, %v3603
  %v3605 = vpop.f32.mrf.mxu0
  %3606 = vdwg.mxu0
  %3607 = vmatprep.subr.mxu0 0.0
  %3608 = vmatpush1.msra.mxu0 %v2573
  %3609 = vmatprep.subr.mxu0 0.0
  %3610 = vmatpush1.msra.mxu0 %v2572
  %3611 = vmatprep.subr.mxu0 0.0
  %3612 = vmatpush1.msra.mxu0 %v2571
  %3613 = vmatprep.subr.mxu0 0.0
  %3614 = vmatpush1.msra.mxu0 %v2570
  %3615 = vmatprep.subr.mxu0 0.0
  %3616 = vmatpush1.msra.mxu0 %v2569
  %3617 = vmatprep.subr.mxu0 0.0
  %3618 = vmatpush1.msra.mxu0 %v2568
  %3619 = vmatprep.subr.mxu0 0.0
  %3620 = vmatpush1.msra.mxu0 %v2567
  %3621 = vmatprep.subr.mxu0 0.0
  %3622 = vmatpush1.msra.mxu0 %v2566
  %3623 = vmatprep.subr.mxu0 0.0
  %3624 = vmatpush1.msra.mxu0 %v2565
  %3625 = vmatprep.subr.mxu0 0.0
  %3626 = vmatpush1.msra.mxu0 %v2564
  %3627 = vmatprep.subr.mxu0 0.0
  %3628 = vmatpush1.msra.mxu0 %v2563
  %3629 = vmatprep.subr.mxu0 0.0
  %3630 = vmatpush1.msra.mxu0 %v2562
  %3631 = vmatprep.subr.mxu0 0.0
  %3632 = vmatpush1.msra.mxu0 %v2561
  %3633 = vmatprep.subr.mxu0 0.0
  %3634 = vmatpush1.msra.mxu0 %v2560
  %3635 = vmatprep.subr.mxu0 0.0
  %3636 = vmatpush1.msra.mxu0 %v2559
  %3637 = vmatprep.subr.mxu0 0.0
  %3638 = vmatpush1.msra.mxu0 %v2558
  %3639 = vmatprep.subr.mxu0 0.0
  %3640 = vmatpush2.msra.mxu0 %v2589
  %3641 = vmatprep.subr.mxu0 0.0
  %3642 = vmatpush2.msra.mxu0 %v2588
  %3643 = vmatprep.subr.mxu0 0.0
  %3644 = vmatpush2.msra.mxu0 %v2587
  %3645 = vmatprep.subr.mxu0 0.0
  %3646 = vmatpush2.msra.mxu0 %v2586
  %3647 = vmatprep.subr.mxu0 0.0
  %3648 = vmatpush2.msra.mxu0 %v2585
  %3649 = vmatprep.subr.mxu0 0.0
  %3650 = vmatpush2.msra.mxu0 %v2584
  %3651 = vmatprep.subr.mxu0 0.0
  %3652 = vmatpush2.msra.mxu0 %v2583
  %3653 = vmatprep.subr.mxu0 0.0
  %3654 = vmatpush2.msra.mxu0 %v2582
  %3655 = vmatprep.subr.mxu0 0.0
  %3656 = vmatpush2.msra.mxu0 %v2581
  %3657 = vmatprep.subr.mxu0 0.0
  %3658 = vmatpush2.msra.mxu0 %v2580
  %3659 = vmatprep.subr.mxu0 0.0
  %3660 = vmatpush2.msra.mxu0 %v2579
  %3661 = vmatprep.subr.mxu0 0.0
  %3662 = vmatpush2.msra.mxu0 %v2578
  %3663 = vmatprep.subr.mxu0 0.0
  %3664 = vmatpush2.msra.mxu0 %v2577
  %3665 = vmatprep.subr.mxu0 0.0
  %3666 = vmatpush2.msra.mxu0 %v2576
  %3667 = vmatprep.subr.mxu0 0.0
  %3668 = vmatpush2.msra.mxu0 %v2575
  %3669 = vmatprep.subr.mxu0 0.0
  %3670 = vmatpush2.msra.mxu0 %v2574
  %3671 = vmatprep.mubr.f32.mxu0 %v2083
  %3672 = vmatmul.mubr.f32.gmra.mxu0 %v2082
  %v3673 = vpop.f32.mrf.mxu0
  %v3674 = vadd.f32 %v3589, %v3673
  %v3675 = vpop.f32.mrf.mxu0
  %3676 = vmatprep.mubr.f32.mxu0 %v2091
  %3677 = vmatmul.mubr.f32.gmra.mxu0 %v2090
  %v3678 = vpop.f32.mrf.mxu0
  %v3679 = vadd.f32 %v3594, %v3678
  %v3680 = vpop.f32.mrf.mxu0
  %3681 = vmatprep.mubr.f32.mxu0 %v2099
  %3682 = vmatmul.mubr.f32.gmra.mxu0 %v2098
  %v3683 = vpop.f32.mrf.mxu0
  %v3684 = vadd.f32 %v3599, %v3683
  %v3685 = vpop.f32.mrf.mxu0
  %3686 = vmatprep.mubr.f32.mxu0 %v2107
  %3687 = vmatmul.mubr.f32.gmra.mxu0 %v2106
  %v3688 = vpop.f32.mrf.mxu0
  %v3689 = vadd.f32 %v3604, %v3688
  %v3690 = vpop.f32.mrf.mxu0
  %3691 = vdwg.mxu0
  %3692 = vmatprep.subr.mxu0 0.0
  %3693 = vmatpush1.msra.mxu0 %v2605
  %3694 = vmatprep.subr.mxu0 0.0
  %3695 = vmatpush1.msra.mxu0 %v2604
  %3696 = vmatprep.subr.mxu0 0.0
  %3697 = vmatpush1.msra.mxu0 %v2603
  %3698 = vmatprep.subr.mxu0 0.0
  %3699 = vmatpush1.msra.mxu0 %v2602
  %3700 = vmatprep.subr.mxu0 0.0
  %3701 = vmatpush1.msra.mxu0 %v2601
  %3702 = vmatprep.subr.mxu0 0.0
  %3703 = vmatpush1.msra.mxu0 %v2600
  %3704 = vmatprep.subr.mxu0 0.0
  %3705 = vmatpush1.msra.mxu0 %v2599
  %3706 = vmatprep.subr.mxu0 0.0
  %3707 = vmatpush1.msra.mxu0 %v2598
  %3708 = vmatprep.subr.mxu0 0.0
  %3709 = vmatpush1.msra.mxu0 %v2597
  %3710 = vmatprep.subr.mxu0 0.0
  %3711 = vmatpush1.msra.mxu0 %v2596
  %3712 = vmatprep.subr.mxu0 0.0
  %3713 = vmatpush1.msra.mxu0 %v2595
  %3714 = vmatprep.subr.mxu0 0.0
  %3715 = vmatpush1.msra.mxu0 %v2594
  %3716 = vmatprep.subr.mxu0 0.0
  %3717 = vmatpush1.msra.mxu0 %v2593
  %3718 = vmatprep.subr.mxu0 0.0
  %3719 = vmatpush1.msra.mxu0 %v2592
  %3720 = vmatprep.subr.mxu0 0.0
  %3721 = vmatpush1.msra.mxu0 %v2591
  %3722 = vmatprep.subr.mxu0 0.0
  %3723 = vmatpush1.msra.mxu0 %v2590
  %3724 = vmatprep.subr.mxu0 0.0
  %3725 = vmatpush2.msra.mxu0 %v2621
  %3726 = vmatprep.subr.mxu0 0.0
  %3727 = vmatpush2.msra.mxu0 %v2620
  %3728 = vmatprep.subr.mxu0 0.0
  %3729 = vmatpush2.msra.mxu0 %v2619
  %3730 = vmatprep.subr.mxu0 0.0
  %3731 = vmatpush2.msra.mxu0 %v2618
  %3732 = vmatprep.subr.mxu0 0.0
  %3733 = vmatpush2.msra.mxu0 %v2617
  %3734 = vmatprep.subr.mxu0 0.0
  %3735 = vmatpush2.msra.mxu0 %v2616
  %3736 = vmatprep.subr.mxu0 0.0
  %3737 = vmatpush2.msra.mxu0 %v2615
  %3738 = vmatprep.subr.mxu0 0.0
  %3739 = vmatpush2.msra.mxu0 %v2614
  %3740 = vmatprep.subr.mxu0 0.0
  %3741 = vmatpush2.msra.mxu0 %v2613
  %3742 = vmatprep.subr.mxu0 0.0
  %3743 = vmatpush2.msra.mxu0 %v2612
  %3744 = vmatprep.subr.mxu0 0.0
  %3745 = vmatpush2.msra.mxu0 %v2611
  %3746 = vmatprep.subr.mxu0 0.0
  %3747 = vmatpush2.msra.mxu0 %v2610
  %3748 = vmatprep.subr.mxu0 0.0
  %3749 = vmatpush2.msra.mxu0 %v2609
  %3750 = vmatprep.subr.mxu0 0.0
  %3751 = vmatpush2.msra.mxu0 %v2608
  %3752 = vmatprep.subr.mxu0 0.0
  %3753 = vmatpush2.msra.mxu0 %v2607
  %3754 = vmatprep.subr.mxu0 0.0
  %3755 = vmatpush2.msra.mxu0 %v2606
  %3756 = vmatprep.mubr.f32.mxu0 %v2085
  %3757 = vmatmul.mubr.f32.gmra.mxu0 %v2084
  %v3758 = vpop.f32.mrf.mxu0
  %v3759 = vadd.f32 %v3674, %v3758
  %v3760 = vpop.f32.mrf.mxu0
  %3761 = vmatprep.mubr.f32.mxu0 %v2093
  %3762 = vmatmul.mubr.f32.gmra.mxu0 %v2092
  %v3763 = vpop.f32.mrf.mxu0
  %v3764 = vadd.f32 %v3679, %v3763
  %v3765 = vpop.f32.mrf.mxu0
  %3766 = vmatprep.mubr.f32.mxu0 %v2101
  %3767 = vmatmul.mubr.f32.gmra.mxu0 %v2100
  %v3768 = vpop.f32.mrf.mxu0
  %v3769 = vadd.f32 %v3684, %v3768
  %v3770 = vpop.f32.mrf.mxu0
  %3771 = vmatprep.mubr.f32.mxu0 %v2109
  %3772 = vmatmul.mubr.f32.gmra.mxu0 %v2108
  %v3773 = vpop.f32.mrf.mxu0
  %v3774 = vadd.f32 %v3689, %v3773
  %v3775 = vpop.f32.mrf.mxu0
  %3776 = vdwg.mxu0
  %3777 = vmatprep.subr.mxu0 0.0
  %3778 = vmatpush1.msra.mxu0 %v2637
  %3779 = vmatprep.subr.mxu0 0.0
  %3780 = vmatpush1.msra.mxu0 %v2636
  %3781 = vmatprep.subr.mxu0 0.0
  %3782 = vmatpush1.msra.mxu0 %v2635
  %3783 = vmatprep.subr.mxu0 0.0
  %3784 = vmatpush1.msra.mxu0 %v2634
  %3785 = vmatprep.subr.mxu0 0.0
  %3786 = vmatpush1.msra.mxu0 %v2633
  %3787 = vmatprep.subr.mxu0 0.0
  %3788 = vmatpush1.msra.mxu0 %v2632
  %3789 = vmatprep.subr.mxu0 0.0
  %3790 = vmatpush1.msra.mxu0 %v2631
  %3791 = vmatprep.subr.mxu0 0.0
  %3792 = vmatpush1.msra.mxu0 %v2630
  %3793 = vmatprep.subr.mxu0 0.0
  %3794 = vmatpush1.msra.mxu0 %v2629
  %3795 = vmatprep.subr.mxu0 0.0
  %3796 = vmatpush1.msra.mxu0 %v2628
  %3797 = vmatprep.subr.mxu0 0.0
  %3798 = vmatpush1.msra.mxu0 %v2627
  %3799 = vmatprep.subr.mxu0 0.0
  %3800 = vmatpush1.msra.mxu0 %v2626
  %3801 = vmatprep.subr.mxu0 0.0
  %3802 = vmatpush1.msra.mxu0 %v2625
  %3803 = vmatprep.subr.mxu0 0.0
  %3804 = vmatpush1.msra.mxu0 %v2624
  %3805 = vmatprep.subr.mxu0 0.0
  %3806 = vmatpush1.msra.mxu0 %v2623
  %3807 = vmatprep.subr.mxu0 0.0
  %3808 = vmatpush1.msra.mxu0 %v2622
  %3809 = vmatprep.subr.mxu0 0.0
  %3810 = vmatpush2.msra.mxu0 %v2653
  %3811 = vmatprep.subr.mxu0 0.0
  %3812 = vmatpush2.msra.mxu0 %v2652
  %3813 = vmatprep.subr.mxu0 0.0
  %3814 = vmatpush2.msra.mxu0 %v2651
  %3815 = vmatprep.subr.mxu0 0.0
  %3816 = vmatpush2.msra.mxu0 %v2650
  %3817 = vmatprep.subr.mxu0 0.0
  %3818 = vmatpush2.msra.mxu0 %v2649
  %3819 = vmatprep.subr.mxu0 0.0
  %3820 = vmatpush2.msra.mxu0 %v2648
  %3821 = vmatprep.subr.mxu0 0.0
  %3822 = vmatpush2.msra.mxu0 %v2647
  %3823 = vmatprep.subr.mxu0 0.0
  %3824 = vmatpush2.msra.mxu0 %v2646
  %3825 = vmatprep.subr.mxu0 0.0
  %3826 = vmatpush2.msra.mxu0 %v2645
  %3827 = vmatprep.subr.mxu0 0.0
  %3828 = vmatpush2.msra.mxu0 %v2644
  %3829 = vmatprep.subr.mxu0 0.0
  %3830 = vmatpush2.msra.mxu0 %v2643
  %3831 = vmatprep.subr.mxu0 0.0
  %3832 = vmatpush2.msra.mxu0 %v2642
  %3833 = vmatprep.subr.mxu0 0.0
  %3834 = vmatpush2.msra.mxu0 %v2641
  %3835 = vmatprep.subr.mxu0 0.0
  %3836 = vmatpush2.msra.mxu0 %v2640
  %3837 = vmatprep.subr.mxu0 0.0
  %3838 = vmatpush2.msra.mxu0 %v2639
  %3839 = vmatprep.subr.mxu0 0.0
  %3840 = vmatpush2.msra.mxu0 %v2638
  %3841 = vmatprep.mubr.f32.mxu0 %v2207
  %3842 = vmatmul.mubr.f32.gmra.mxu0 %v2206
  %v3843 = vpop.f32.mrf.mxu0
  %v3844 = vadd.f32 %v3759, %v3843
  %v3845 = vpop.f32.mrf.mxu0
  %3846 = vmatprep.mubr.f32.mxu0 %v2215
  %3847 = vmatmul.mubr.f32.gmra.mxu0 %v2214
  %v3848 = vpop.f32.mrf.mxu0
  %v3849 = vadd.f32 %v3764, %v3848
  %v3850 = vpop.f32.mrf.mxu0
  %3851 = vmatprep.mubr.f32.mxu0 %v2223
  %3852 = vmatmul.mubr.f32.gmra.mxu0 %v2222
  %v3853 = vpop.f32.mrf.mxu0
  %v3854 = vadd.f32 %v3769, %v3853
  %v3855 = vpop.f32.mrf.mxu0
  %3856 = vmatprep.mubr.f32.mxu0 %v2231
  %3857 = vmatmul.mubr.f32.gmra.mxu0 %v2230
  %v3858 = vpop.f32.mrf.mxu0
  %v3859 = vadd.f32 %v3774, %v3858
  %v3860 = vpop.f32.mrf.mxu0
  %3861 = vdwg.mxu0
  %3862 = vmatprep.subr.mxu0 0.0
  %3863 = vmatpush1.msra.mxu0 %v2669
  %3864 = vmatprep.subr.mxu0 0.0
  %3865 = vmatpush1.msra.mxu0 %v2668
  %3866 = vmatprep.subr.mxu0 0.0
  %3867 = vmatpush1.msra.mxu0 %v2667
  %3868 = vmatprep.subr.mxu0 0.0
  %3869 = vmatpush1.msra.mxu0 %v2666
  %3870 = vmatprep.subr.mxu0 0.0
  %3871 = vmatpush1.msra.mxu0 %v2665
  %3872 = vmatprep.subr.mxu0 0.0
  %3873 = vmatpush1.msra.mxu0 %v2664
  %3874 = vmatprep.subr.mxu0 0.0
  %3875 = vmatpush1.msra.mxu0 %v2663
  %3876 = vmatprep.subr.mxu0 0.0
  %3877 = vmatpush1.msra.mxu0 %v2662
  %3878 = vmatprep.subr.mxu0 0.0
  %3879 = vmatpush1.msra.mxu0 %v2661
  %3880 = vmatprep.subr.mxu0 0.0
  %3881 = vmatpush1.msra.mxu0 %v2660
  %3882 = vmatprep.subr.mxu0 0.0
  %3883 = vmatpush1.msra.mxu0 %v2659
  %3884 = vmatprep.subr.mxu0 0.0
  %3885 = vmatpush1.msra.mxu0 %v2658
  %3886 = vmatprep.subr.mxu0 0.0
  %3887 = vmatpush1.msra.mxu0 %v2657
  %3888 = vmatprep.subr.mxu0 0.0
  %3889 = vmatpush1.msra.mxu0 %v2656
  %3890 = vmatprep.subr.mxu0 0.0
  %3891 = vmatpush1.msra.mxu0 %v2655
  %3892 = vmatprep.subr.mxu0 0.0
  %3893 = vmatpush1.msra.mxu0 %v2654
  %3894 = vmatprep.subr.mxu0 0.0
  %3895 = vmatpush2.msra.mxu0 %v2685
  %3896 = vmatprep.subr.mxu0 0.0
  %3897 = vmatpush2.msra.mxu0 %v2684
  %3898 = vmatprep.subr.mxu0 0.0
  %3899 = vmatpush2.msra.mxu0 %v2683
  %3900 = vmatprep.subr.mxu0 0.0
  %3901 = vmatpush2.msra.mxu0 %v2682
  %3902 = vmatprep.subr.mxu0 0.0
  %3903 = vmatpush2.msra.mxu0 %v2681
  %3904 = vmatprep.subr.mxu0 0.0
  %3905 = vmatpush2.msra.mxu0 %v2680
  %3906 = vmatprep.subr.mxu0 0.0
  %3907 = vmatpush2.msra.mxu0 %v2679
  %3908 = vmatprep.subr.mxu0 0.0
  %3909 = vmatpush2.msra.mxu0 %v2678
  %3910 = vmatprep.subr.mxu0 0.0
  %3911 = vmatpush2.msra.mxu0 %v2677
  %3912 = vmatprep.subr.mxu0 0.0
  %3913 = vmatpush2.msra.mxu0 %v2676
  %3914 = vmatprep.subr.mxu0 0.0
  %3915 = vmatpush2.msra.mxu0 %v2675
  %3916 = vmatprep.subr.mxu0 0.0
  %3917 = vmatpush2.msra.mxu0 %v2674
  %3918 = vmatprep.subr.mxu0 0.0
  %3919 = vmatpush2.msra.mxu0 %v2673
  %3920 = vmatprep.subr.mxu0 0.0
  %3921 = vmatpush2.msra.mxu0 %v2672
  %3922 = vmatprep.subr.mxu0 0.0
  %3923 = vmatpush2.msra.mxu0 %v2671
  %3924 = vmatprep.subr.mxu0 0.0
  %3925 = vmatpush2.msra.mxu0 %v2670
  %3926 = vmatprep.mubr.f32.mxu0 %v2209
  %3927 = vmatmul.mubr.f32.gmra.mxu0 %v2208
  %v3928 = vpop.f32.mrf.mxu0
  %v3929 = vadd.f32 %v3844, %v3928
  %v3930 = vpop.f32.mrf.mxu0
  %3931 = vmatprep.mubr.f32.mxu0 %v2217
  %3932 = vmatmul.mubr.f32.gmra.mxu0 %v2216
  %v3933 = vpop.f32.mrf.mxu0
  %v3934 = vadd.f32 %v3849, %v3933
  %v3935 = vpop.f32.mrf.mxu0
  %3936 = vmatprep.mubr.f32.mxu0 %v2225
  %3937 = vmatmul.mubr.f32.gmra.mxu0 %v2224
  %v3938 = vpop.f32.mrf.mxu0
  %v3939 = vadd.f32 %v3854, %v3938
  %v3940 = vpop.f32.mrf.mxu0
  %3941 = vmatprep.mubr.f32.mxu0 %v2233
  %3942 = vmatmul.mubr.f32.gmra.mxu0 %v2232
  %v3943 = vpop.f32.mrf.mxu0
  %v3944 = vadd.f32 %v3859, %v3943
  %v3945 = vpop.f32.mrf.mxu0
  %3946 = vdwg.mxu0
  %3947 = vmatprep.subr.mxu0 0.0
  %3948 = vmatpush1.msra.mxu0 %v2701
  %3949 = vmatprep.subr.mxu0 0.0
  %3950 = vmatpush1.msra.mxu0 %v2700
  %3951 = vmatprep.subr.mxu0 0.0
  %3952 = vmatpush1.msra.mxu0 %v2699
  %3953 = vmatprep.subr.mxu0 0.0
  %3954 = vmatpush1.msra.mxu0 %v2698
  %3955 = vmatprep.subr.mxu0 0.0
  %3956 = vmatpush1.msra.mxu0 %v2697
  %3957 = vmatprep.subr.mxu0 0.0
  %3958 = vmatpush1.msra.mxu0 %v2696
  %3959 = vmatprep.subr.mxu0 0.0
  %3960 = vmatpush1.msra.mxu0 %v2695
  %3961 = vmatprep.subr.mxu0 0.0
  %3962 = vmatpush1.msra.mxu0 %v2694
  %3963 = vmatprep.subr.mxu0 0.0
  %3964 = vmatpush1.msra.mxu0 %v2693
  %3965 = vmatprep.subr.mxu0 0.0
  %3966 = vmatpush1.msra.mxu0 %v2692
  %3967 = vmatprep.subr.mxu0 0.0
  %3968 = vmatpush1.msra.mxu0 %v2691
  %3969 = vmatprep.subr.mxu0 0.0
  %3970 = vmatpush1.msra.mxu0 %v2690
  %3971 = vmatprep.subr.mxu0 0.0
  %3972 = vmatpush1.msra.mxu0 %v2689
  %3973 = vmatprep.subr.mxu0 0.0
  %3974 = vmatpush1.msra.mxu0 %v2688
  %3975 = vmatprep.subr.mxu0 0.0
  %3976 = vmatpush1.msra.mxu0 %v2687
  %3977 = vmatprep.subr.mxu0 0.0
  %3978 = vmatpush1.msra.mxu0 %v2686
  %3979 = vmatprep.subr.mxu0 0.0
  %3980 = vmatpush2.msra.mxu0 %v2717
  %3981 = vmatprep.subr.mxu0 0.0
  %3982 = vmatpush2.msra.mxu0 %v2716
  %3983 = vmatprep.subr.mxu0 0.0
  %3984 = vmatpush2.msra.mxu0 %v2715
  %3985 = vmatprep.subr.mxu0 0.0
  %3986 = vmatpush2.msra.mxu0 %v2714
  %3987 = vmatprep.subr.mxu0 0.0
  %3988 = vmatpush2.msra.mxu0 %v2713
  %3989 = vmatprep.subr.mxu0 0.0
  %3990 = vmatpush2.msra.mxu0 %v2712
  %3991 = vmatprep.subr.mxu0 0.0
  %3992 = vmatpush2.msra.mxu0 %v2711
  %3993 = vmatprep.subr.mxu0 0.0
  %3994 = vmatpush2.msra.mxu0 %v2710
  %3995 = vmatprep.subr.mxu0 0.0
  %3996 = vmatpush2.msra.mxu0 %v2709
  %3997 = vmatprep.subr.mxu0 0.0
  %3998 = vmatpush2.msra.mxu0 %v2708
  %3999 = vmatprep.subr.mxu0 0.0
  %4000 = vmatpush2.msra.mxu0 %v2707
  %4001 = vmatprep.subr.mxu0 0.0
  %4002 = vmatpush2.msra.mxu0 %v2706
  %4003 = vmatprep.subr.mxu0 0.0
  %4004 = vmatpush2.msra.mxu0 %v2705
  %4005 = vmatprep.subr.mxu0 0.0
  %4006 = vmatpush2.msra.mxu0 %v2704
  %4007 = vmatprep.subr.mxu0 0.0
  %4008 = vmatpush2.msra.mxu0 %v2703
  %4009 = vmatprep.subr.mxu0 0.0
  %4010 = vmatpush2.msra.mxu0 %v2702
  %4011 = vmatprep.mubr.f32.mxu0 %v2211
  %4012 = vmatmul.mubr.f32.gmra.mxu0 %v2210
  %v4013 = vpop.f32.mrf.mxu0
  %v4014 = vadd.f32 %v3929, %v4013
  %v4015 = vpop.f32.mrf.mxu0
  %4016 = vmatprep.mubr.f32.mxu0 %v2219
  %4017 = vmatmul.mubr.f32.gmra.mxu0 %v2218
  %v4018 = vpop.f32.mrf.mxu0
  %v4019 = vadd.f32 %v3934, %v4018
  %v4020 = vpop.f32.mrf.mxu0
  %4021 = vmatprep.mubr.f32.mxu0 %v2227
  %4022 = vmatmul.mubr.f32.gmra.mxu0 %v2226
  %v4023 = vpop.f32.mrf.mxu0
  %v4024 = vadd.f32 %v3939, %v4023
  %v4025 = vpop.f32.mrf.mxu0
  %4026 = vmatprep.mubr.f32.mxu0 %v2235
  %4027 = vmatmul.mubr.f32.gmra.mxu0 %v2234
  %v4028 = vpop.f32.mrf.mxu0
  %v4029 = vadd.f32 %v3944, %v4028
  %v4030 = vpop.f32.mrf.mxu0
  %4031 = vdwg.mxu0
  %4032 = vmatprep.subr.mxu0 0.0
  %4033 = vmatpush1.msra.mxu0 %v2733
  %4034 = vmatprep.subr.mxu0 0.0
  %4035 = vmatpush1.msra.mxu0 %v2732
  %4036 = vmatprep.subr.mxu0 0.0
  %4037 = vmatpush1.msra.mxu0 %v2731
  %4038 = vmatprep.subr.mxu0 0.0
  %4039 = vmatpush1.msra.mxu0 %v2730
  %4040 = vmatprep.subr.mxu0 0.0
  %4041 = vmatpush1.msra.mxu0 %v2729
  %4042 = vmatprep.subr.mxu0 0.0
  %4043 = vmatpush1.msra.mxu0 %v2728
  %4044 = vmatprep.subr.mxu0 0.0
  %4045 = vmatpush1.msra.mxu0 %v2727
  %4046 = vmatprep.subr.mxu0 0.0
  %4047 = vmatpush1.msra.mxu0 %v2726
  %4048 = vmatprep.subr.mxu0 0.0
  %4049 = vmatpush1.msra.mxu0 %v2725
  %4050 = vmatprep.subr.mxu0 0.0
  %4051 = vmatpush1.msra.mxu0 %v2724
  %4052 = vmatprep.subr.mxu0 0.0
  %4053 = vmatpush1.msra.mxu0 %v2723
  %4054 = vmatprep.subr.mxu0 0.0
  %4055 = vmatpush1.msra.mxu0 %v2722
  %4056 = vmatprep.subr.mxu0 0.0
  %4057 = vmatpush1.msra.mxu0 %v2721
  %4058 = vmatprep.subr.mxu0 0.0
  %4059 = vmatpush1.msra.mxu0 %v2720
  %4060 = vmatprep.subr.mxu0 0.0
  %4061 = vmatpush1.msra.mxu0 %v2719
  %4062 = vmatprep.subr.mxu0 0.0
  %4063 = vmatpush1.msra.mxu0 %v2718
  %4064 = vmatprep.subr.mxu0 0.0
  %4065 = vmatpush2.msra.mxu0 %v2749
  %4066 = vmatprep.subr.mxu0 0.0
  %4067 = vmatpush2.msra.mxu0 %v2748
  %4068 = vmatprep.subr.mxu0 0.0
  %4069 = vmatpush2.msra.mxu0 %v2747
  %4070 = vmatprep.subr.mxu0 0.0
  %4071 = vmatpush2.msra.mxu0 %v2746
  %4072 = vmatprep.subr.mxu0 0.0
  %4073 = vmatpush2.msra.mxu0 %v2745
  %4074 = vmatprep.subr.mxu0 0.0
  %4075 = vmatpush2.msra.mxu0 %v2744
  %4076 = vmatprep.subr.mxu0 0.0
  %4077 = vmatpush2.msra.mxu0 %v2743
  %4078 = vmatprep.subr.mxu0 0.0
  %4079 = vmatpush2.msra.mxu0 %v2742
  %4080 = vmatprep.subr.mxu0 0.0
  %4081 = vmatpush2.msra.mxu0 %v2741
  %4082 = vmatprep.subr.mxu0 0.0
  %4083 = vmatpush2.msra.mxu0 %v2740
  %4084 = vmatprep.subr.mxu0 0.0
  %4085 = vmatpush2.msra.mxu0 %v2739
  %4086 = vmatprep.subr.mxu0 0.0
  %4087 = vmatpush2.msra.mxu0 %v2738
  %4088 = vmatprep.subr.mxu0 0.0
  %4089 = vmatpush2.msra.mxu0 %v2737
  %4090 = vmatprep.subr.mxu0 0.0
  %4091 = vmatpush2.msra.mxu0 %v2736
  %4092 = vmatprep.subr.mxu0 0.0
  %4093 = vmatpush2.msra.mxu0 %v2735
  %4094 = vmatprep.subr.mxu0 0.0
  %4095 = vmatpush2.msra.mxu0 %v2734
  %4096 = vmatprep.mubr.f32.mxu0 %v2213
  %4097 = vmatmul.mubr.f32.gmra.mxu0 %v2212
  %v4098 = vpop.f32.mrf.mxu0
  %v4099 = vadd.f32 %v4014, %v4098
  %v4100 = vpop.f32.mrf.mxu0
  %4101 = vmatprep.mubr.f32.mxu0 %v2221
  %4102 = vmatmul.mubr.f32.gmra.mxu0 %v2220
  %v4103 = vpop.f32.mrf.mxu0
  %v4104 = vadd.f32 %v4019, %v4103
  %v4105 = vpop.f32.mrf.mxu0
  %4106 = vmatprep.mubr.f32.mxu0 %v2229
  %4107 = vmatmul.mubr.f32.gmra.mxu0 %v2228
  %v4108 = vpop.f32.mrf.mxu0
  %v4109 = vadd.f32 %v4024, %v4108
  %v4110 = vpop.f32.mrf.mxu0
  %4111 = vmatprep.mubr.f32.mxu0 %v2237
  %4112 = vmatmul.mubr.f32.gmra.mxu0 %v2236
  %v4113 = vpop.f32.mrf.mxu0
  %v4114 = vadd.f32 %v4029, %v4113
  %v4115 = vpop.f32.mrf.mxu0
  %4116 = vdwg.mxu0
  %v4117 = vmax.f32 %v4099, 0.0
  %v4118 = vmax.f32 %v4104, 0.0
  %v4119 = vmax.f32 %v4109, 0.0
  %v4120 = vmax.f32 %v4114, 0.0
  %4121 = vst.msk [vmem:[%s12] sm:$0xff] %vm370, %v4117
  %4122 = vst.msk [vmem:[%s12 + $0x8] sm:$0xff] %vm370, %v4118
  %4123 = vst.msk [vmem:[%s12 + $0x10] sm:$0xff] %vm370, %v4119
  %4124 = vst.msk [vmem:[%s12 + $0x18] sm:$0xff] %vm370, %v4120
  // Predicated region
  $region50: #{deconvnet_forward.1} parent=0 // pred_check
    _
  $region51: #{deconvnet_forward.1} parent=0 // pred_check_branch
    %4126 = sbr.rel (0) target = $region53
  $region52: #{deconvnet_forward.1} parent=0 // pred_region
    _
  $region53: #{deconvnet_forward.1} parent=0 // pred_fallthru
    _
  // Predicated region
  $region54: #{deconvnet_forward.1} parent=0 // pred_check
    _
  $region55: #{deconvnet_forward.1} parent=0 // pred_check_branch
    %4128 = sbr.rel (0) target = $region57
  $region56: #{deconvnet_forward.1} parent=0 // pred_region
    _
  $region57: #{deconvnet_forward.1} parent=0 // pred_fallthru
    _

</llo_original>
